<compile_context>
chip_gen: v7x
topology: tpu7x:2x2x1
jax: 0.10.0
libtpu: 0.0.40
codegen_flags: <defaults>
</compile_context>

<pallas_src>
import math
import functools

import numpy as np
import jax
import jax.numpy as jnp
from jax.experimental import pallas as pl
from jax.experimental.pallas import tpu as pltpu


def _round_up(x, m):
    return ((x + m - 1) // m) * m


def fine_matching_kernel(f1_ref, prep_ref, red_ref, g_ref, out_ref, *, WW, C, wchunk):
    tm = out_ref.shape[0]
    lanes = wchunk * C            # == 128: one full lane tile per chunk
    nchunks = WW // wchunk

    prep = prep_ref[...]          # (tm, 128): temp-scaled center feature, lane-tiled

    # sim[m, r] = <feat_f0_picked[m] / sqrt(C), feat_f1[m, r]>, computed on
    # 128-lane chunks of the flat (WW*C) layout.  Each chunk's per-window
    # channel sum is an MXU matmul against a precomputed block-diagonal matrix
    # whose block sits at columns j*wchunk:(j+1)*wchunk, so every chunk lands
    # directly in its final lanes and we only accumulate lane-dense tiles
    # (no lane-sparse concatenate, no in-kernel iota).
    sim = jnp.zeros((tm, WW), jnp.float32)
    for j in range(nchunks):
        prod = f1_ref[:, j * lanes:(j + 1) * lanes] * prep           # VPU (bf16 on v6e/v7x)
        sim = sim + jnp.dot(prod, red_ref[j],
                            preferred_element_type=jnp.float32)       # (tm, WW) via MXU

    # Numerically stable softmax with deferred normalization.
    mx = jnp.max(sim, axis=-1, keepdims=True)
    e = jnp.exp(sim - mx)                                              # (tm, WW)

    # One MXU matmul fuses all WW-axis weighted sums:
    #   g columns = [1, gx, gy, gx^2, gy^2]   (precomputed in the wrapper)
    agg = jnp.dot(e, g_ref[...], preferred_element_type=jnp.float32)  # (tm, 5)

    inv = 1.0 / agg[:, 0:1]        # exact reciprocal (approx=True was too inaccurate)
    cx = agg[:, 1:2] * inv                                             # E[gx]
    cy = agg[:, 2:3] * inv                                             # E[gy]
    vx = agg[:, 3:4] * inv - cx * cx
    vy = agg[:, 4:5] * inv - cy * cy
    std = (jnp.sqrt(jnp.maximum(vx, 1e-10)) +
           jnp.sqrt(jnp.maximum(vy, 1e-10)))                           # (tm, 1)

    out_ref[...] = jnp.concatenate([cx, cy, std], axis=-1)             # (tm, 3)


def fine_matching(feat_f0, feat_f1, mkpts0_c, mkpts1_c, scale, *,
                  tm_max=512, stream_dtype=jnp.bfloat16):
    """Pallas implementation of FineMatching.forward (scalar-scale path).

    Returns (expec_f [M,3], mkpts0_f [M,2], mkpts1_f [M,2]).
    """
    M, WW, C = feat_f0.shape
    W = int(round(math.sqrt(WW)))
    assert W * W == WW
    assert C <= 128 and 128 % C == 0, "C must be a power of two that divides 128"
    wchunk = 128 // C                        # window positions per 128-lane chunk
    assert WW % wchunk == 0, "WW must be a multiple of 128 // C"
    nchunks = WW // wchunk

    if M == 0:
        # TODO(synk): mirrors the module's M == 0 early exit (inference only).
        return jnp.zeros((0, 3), jnp.float32), mkpts0_c, mkpts1_c

    # TODO(synk): only the scalar-scale path is kerneled; the per-match
    # scale1[data['b_ids']] branch of get_fine_match is a data-dependent
    # host-side gather and stays outside the kernel.
    inv_temp = 1.0 / math.sqrt(C)
    coord_scale = float(scale) * (W // 2)

    # Only the center row of feat_f0 is used: pick it host-side (tiny read),
    # fold in the softmax temperature, lane-tile it to one 128-lane tile, and
    # cast to the stream dtype (bf16 halves the HBM bytes of this mem-bound
    # kernel; pass stream_dtype=jnp.float32 for exact parity).
    picked = feat_f0[:, WW // 2, :] * jnp.float32(inv_temp)            # (M, C)
    prep = jnp.tile(picked, (1, wchunk)).astype(stream_dtype)          # (M, 128)
    f1_flat = feat_f1.reshape(M, WW * C).astype(stream_dtype)          # (M, WW*C), lane dense

    # Hoisted constants (built once with numpy, constant index_map -> DMA'd once).
    # red[j, r*C + c, j*wchunk + r] = 1 : per-chunk shifted block-diagonal.
    red_np = np.zeros((nchunks, wchunk * C, WW), np.float32)
    for j in range(nchunks):
        for r in range(wchunk):
            red_np[j, r * C:(r + 1) * C, j * wchunk + r] = 1.0
    red = jnp.asarray(red_np).astype(stream_dtype)
    # g columns = [1, gx, gy, gx^2, gy^2] of the normalized meshgrid
    # (kornia create_meshgrid ordering: gx = r % W, gy = r // W).
    xs = np.linspace(-1.0, 1.0, W, dtype=np.float32)
    gx = np.tile(xs, W)
    gy = np.repeat(xs, W)
    g = jnp.asarray(np.stack(
        [np.ones(WW, np.float32), gx, gy, gx * gx, gy * gy], axis=1))  # (WW, 5) f32

    # Tile rows: aim for >= ~4 grid steps (pipelining; v7x has 2 TensorCores)
    # while capping the block; no host-side padding — the grid is ragged.
    tm = max(8, min(tm_max, _round_up(-(-M // 4), 8)))
    grid = (pl.cdiv(M, tm),)

    kernel = functools.partial(fine_matching_kernel, WW=WW, C=C, wchunk=wchunk)

    out = pl.pallas_call(
        kernel,
        out_shape=jax.ShapeDtypeStruct((M, 3), jnp.float32),
        grid_spec=pltpu.PrefetchScalarGridSpec(
            num_scalar_prefetch=0,
            grid=grid,
            in_specs=[
                pl.BlockSpec((tm, WW * C), lambda i: (i, 0)),                 # feat_f1 (flat)
                pl.BlockSpec((tm, wchunk * C), lambda i: (i, 0)),             # center feature
                pl.BlockSpec((nchunks, wchunk * C, WW), lambda i: (0, 0, 0)), # red (constant)
                pl.BlockSpec((WW, 5), lambda i: (0, 0)),                      # meshgrid moments
            ],
            out_specs=pl.BlockSpec((tm, 3), lambda i: (i, 0)),
        ),
        compiler_params=pltpu.CompilerParams(
            dimension_semantics=("parallel",),
            vmem_limit_bytes=32 * 1024 * 1024),
    )(f1_flat, prep, red, g)

    expec_f = out                                          # [cx, cy, std]
    mkpts1_f = mkpts1_c + out[:, 0:2] * jnp.float32(coord_scale)
    mkpts0_f = mkpts0_c                                    # passthrough, as in the reference
    return expec_f, mkpts0_f, mkpts1_f


def fine_matching_ref(feat_f0, feat_f1, mkpts1_c, scale):
    """Pure-JAX reference mirroring the PyTorch forward (f32 everywhere)."""
    M, WW, C = feat_f0.shape
    W = int(round(math.sqrt(WW)))
    picked = feat_f0[:, WW // 2, :]
    sim = jnp.einsum('mc,mrc->mr', picked, feat_f1,
                     precision=jax.lax.Precision.HIGHEST)
    heat = jax.nn.softmax(sim / math.sqrt(C), axis=1)                  # (M, WW)
    xs = jnp.linspace(-1.0, 1.0, W, dtype=jnp.float32)
    gx = jnp.tile(xs, W)                                               # r % W
    gy = jnp.repeat(xs, W)                                             # r // W
    cx = jnp.sum(heat * gx, axis=1)
    cy = jnp.sum(heat * gy, axis=1)
    vx = jnp.sum(heat * gx * gx, axis=1) - cx * cx
    vy = jnp.sum(heat * gy * gy, axis=1) - cy * cy
    std = jnp.sqrt(jnp.clip(vx, 1e-10)) + jnp.sqrt(jnp.clip(vy, 1e-10))
    expec_f = jnp.stack([cx, cy, std], axis=-1)
    coords = jnp.stack([cx, cy], axis=-1)
    mkpts1_f = mkpts1_c + coords * (W // 2) * scale
    return expec_f, mkpts1_f


if __name__ == "__main__":
    # Small shapes consistent with the module: M matches (NOT a multiple of the
    # tile -> exercises the ragged last block), W x W fine window, C channels.
    M, W, C = 300, 8, 32
    WW = W * W
    hw0_i, hw0_f = 256.0, 32.0
    scale = hw0_i / hw0_f                          # 8.0

    key = jax.random.PRNGKey(0)
    k0, k1, k2, k3 = jax.random.split(key, 4)
    feat_f0 = jax.random.normal(k0, (M, WW, C), dtype=jnp.float32)
    feat_f1 = jax.random.normal(k1, (M, WW, C), dtype=jnp.float32)
    mkpts0_c = jax.random.uniform(k2, (M, 2), dtype=jnp.float32) * hw0_i
    mkpts1_c = jax.random.uniform(k3, (M, 2), dtype=jnp.float32) * hw0_i

    expec_ref, mkpts1_ref = fine_matching_ref(feat_f0, feat_f1, mkpts1_c, scale)

    # 1) Exact path (f32 stream): tight parity with the f32 reference.
    ef32, mk0_f32, mk1_f32 = fine_matching(
        feat_f0, feat_f1, mkpts0_c, mkpts1_c, scale, stream_dtype=jnp.float32)
    jax.block_until_ready((ef32, mk0_f32, mk1_f32))
    np.testing.assert_allclose(np.asarray(ef32), np.asarray(expec_ref),
                               rtol=1e-3, atol=1e-3)
    np.testing.assert_allclose(np.asarray(mk1_f32), np.asarray(mkpts1_ref),
                               rtol=1e-3, atol=1e-2)
    np.testing.assert_allclose(np.asarray(mk0_f32), np.asarray(mkpts0_c))

    # 2) Perf path (bf16 stream, the default): tolerance reflects bf16 input
    #    quantization of the similarity logits (~2e-3 abs), not kernel structure.
    ebf, mk0_bf, mk1_bf = fine_matching(feat_f0, feat_f1, mkpts0_c, mkpts1_c, scale)
    jax.block_until_ready((ebf, mk0_bf, mk1_bf))
    np.testing.assert_allclose(np.asarray(ebf), np.asarray(expec_ref),
                               rtol=2e-2, atol=2e-2)
    np.testing.assert_allclose(np.asarray(mk1_bf), np.asarray(mkpts1_ref),
                               rtol=1e-2, atol=0.5)
    np.testing.assert_allclose(np.asarray(mk0_bf), np.asarray(mkpts0_c))

    print("KERNEL_OK")
</pallas_src>

<mosaic_0001>
module attributes {stable_mosaic.version = 11 : i64} {
  func.func @fine_matching_kernel(%arg0: i32, %arg1: memref<80x2048xf32, #tpu.memory_space<vmem>>, %arg2: memref<80x128xf32, #tpu.memory_space<vmem>>, %arg3: memref<16x128x64xf32, #tpu.memory_space<vmem>>, %arg4: memref<64x5xf32, #tpu.memory_space<vmem>>, %arg5: memref<80x3xf32, #tpu.memory_space<vmem>>) attributes {dimension_semantics = [#tpu.dimension_semantics<parallel>], iteration_bounds = array<i64: 4>, scalar_prefetch = 0 : i64, scratch_operands = 0 : i64, tpu.core_type = #tpu.core_type<tc>, window_params = [{transform_indices = @transform_0, window_bounds = array<i64: 80, 2048>}, {transform_indices = @transform_1, window_bounds = array<i64: 80, 128>}, {pipeline_mode = #tpu.pipeline_mode<synchronous>, transform_indices = @transform_2, window_bounds = array<i64: 16, 128, 64>}, {pipeline_mode = #tpu.pipeline_mode<synchronous>, transform_indices = @transform_3, window_bounds = array<i64: 64, 5>}, {transform_indices = @transform_4, window_bounds = array<i64: 80, 3>}]} {
    %c0 = arith.constant 0 : index
    %c0_0 = arith.constant 0 : index
    %0 = vector.load %arg2[%c0, %c0_0] : memref<80x128xf32, #tpu.memory_space<vmem>>, vector<80x128xf32>
    %cst = arith.constant 0.000000e+00 : f32
    %1 = vector.broadcast %cst : f32 to vector<80x64xf32>
    %c0_1 = arith.constant 0 : index
    %c0_2 = arith.constant 0 : index
    %2 = vector.load %arg1[%c0_1, %c0_2] : memref<80x2048xf32, #tpu.memory_space<vmem>>, vector<80x128xf32>
    %3 = arith.mulf %2, %0 : vector<80x128xf32>
    %c0_3 = arith.constant 0 : index
    %c0_4 = arith.constant 0 : index
    %c0_5 = arith.constant 0 : index
    %4 = vector.load %arg3[%c0_3, %c0_4, %c0_5] : memref<16x128x64xf32, #tpu.memory_space<vmem>>, vector<1x128x64xf32>
    %5 = vector.shape_cast %4 : vector<1x128x64xf32> to vector<128x64xf32>
    %cst_6 = arith.constant dense<0.000000e+00> : vector<80x64xf32>
    %6 = tpu.matmul %3, %5, %cst_6 {dimension_numbers = #tpu.dot_dimension_numbers<[1], [0], [0], [1], [0, 0, 1, 1], [], []>} : vector<80x128xf32>, vector<128x64xf32>, vector<80x64xf32> -> vector<80x64xf32>
    %7 = arith.addf %1, %6 : vector<80x64xf32>
    %c0_7 = arith.constant 0 : index
    %c128 = arith.constant 128 : index
    %8 = vector.load %arg1[%c0_7, %c128] : memref<80x2048xf32, #tpu.memory_space<vmem>>, vector<80x128xf32>
    %9 = arith.mulf %8, %0 : vector<80x128xf32>
    %c1 = arith.constant 1 : index
    %c0_8 = arith.constant 0 : index
    %c0_9 = arith.constant 0 : index
    %10 = vector.load %arg3[%c1, %c0_8, %c0_9] : memref<16x128x64xf32, #tpu.memory_space<vmem>>, vector<1x128x64xf32>
    %11 = vector.shape_cast %10 : vector<1x128x64xf32> to vector<128x64xf32>
    %cst_10 = arith.constant dense<0.000000e+00> : vector<80x64xf32>
    %12 = tpu.matmul %9, %11, %cst_10 {dimension_numbers = #tpu.dot_dimension_numbers<[1], [0], [0], [1], [0, 0, 1, 1], [], []>} : vector<80x128xf32>, vector<128x64xf32>, vector<80x64xf32> -> vector<80x64xf32>
    %13 = arith.addf %7, %12 : vector<80x64xf32>
    %c0_11 = arith.constant 0 : index
    %c256 = arith.constant 256 : index
    %14 = vector.load %arg1[%c0_11, %c256] : memref<80x2048xf32, #tpu.memory_space<vmem>>, vector<80x128xf32>
    %15 = arith.mulf %14, %0 : vector<80x128xf32>
    %c2 = arith.constant 2 : index
    %c0_12 = arith.constant 0 : index
    %c0_13 = arith.constant 0 : index
    %16 = vector.load %arg3[%c2, %c0_12, %c0_13] : memref<16x128x64xf32, #tpu.memory_space<vmem>>, vector<1x128x64xf32>
    %17 = vector.shape_cast %16 : vector<1x128x64xf32> to vector<128x64xf32>
    %cst_14 = arith.constant dense<0.000000e+00> : vector<80x64xf32>
    %18 = tpu.matmul %15, %17, %cst_14 {dimension_numbers = #tpu.dot_dimension_numbers<[1], [0], [0], [1], [0, 0, 1, 1], [], []>} : vector<80x128xf32>, vector<128x64xf32>, vector<80x64xf32> -> vector<80x64xf32>
    %19 = arith.addf %13, %18 : vector<80x64xf32>
    %c0_15 = arith.constant 0 : index
    %c384 = arith.constant 384 : index
    %20 = vector.load %arg1[%c0_15, %c384] : memref<80x2048xf32, #tpu.memory_space<vmem>>, vector<80x128xf32>
    %21 = arith.mulf %20, %0 : vector<80x128xf32>
    %c3 = arith.constant 3 : index
    %c0_16 = arith.constant 0 : index
    %c0_17 = arith.constant 0 : index
    %22 = vector.load %arg3[%c3, %c0_16, %c0_17] : memref<16x128x64xf32, #tpu.memory_space<vmem>>, vector<1x128x64xf32>
    %23 = vector.shape_cast %22 : vector<1x128x64xf32> to vector<128x64xf32>
    %cst_18 = arith.constant dense<0.000000e+00> : vector<80x64xf32>
    %24 = tpu.matmul %21, %23, %cst_18 {dimension_numbers = #tpu.dot_dimension_numbers<[1], [0], [0], [1], [0, 0, 1, 1], [], []>} : vector<80x128xf32>, vector<128x64xf32>, vector<80x64xf32> -> vector<80x64xf32>
    %25 = arith.addf %19, %24 : vector<80x64xf32>
    %c0_19 = arith.constant 0 : index
    %c512 = arith.constant 512 : index
    %26 = vector.load %arg1[%c0_19, %c512] : memref<80x2048xf32, #tpu.memory_space<vmem>>, vector<80x128xf32>
    %27 = arith.mulf %26, %0 : vector<80x128xf32>
    %c4 = arith.constant 4 : index
    %c0_20 = arith.constant 0 : index
    %c0_21 = arith.constant 0 : index
    %28 = vector.load %arg3[%c4, %c0_20, %c0_21] : memref<16x128x64xf32, #tpu.memory_space<vmem>>, vector<1x128x64xf32>
    %29 = vector.shape_cast %28 : vector<1x128x64xf32> to vector<128x64xf32>
    %cst_22 = arith.constant dense<0.000000e+00> : vector<80x64xf32>
    %30 = tpu.matmul %27, %29, %cst_22 {dimension_numbers = #tpu.dot_dimension_numbers<[1], [0], [0], [1], [0, 0, 1, 1], [], []>} : vector<80x128xf32>, vector<128x64xf32>, vector<80x64xf32> -> vector<80x64xf32>
    %31 = arith.addf %25, %30 : vector<80x64xf32>
    %c0_23 = arith.constant 0 : index
    %c640 = arith.constant 640 : index
    %32 = vector.load %arg1[%c0_23, %c640] : memref<80x2048xf32, #tpu.memory_space<vmem>>, vector<80x128xf32>
    %33 = arith.mulf %32, %0 : vector<80x128xf32>
    %c5 = arith.constant 5 : index
    %c0_24 = arith.constant 0 : index
    %c0_25 = arith.constant 0 : index
    %34 = vector.load %arg3[%c5, %c0_24, %c0_25] : memref<16x128x64xf32, #tpu.memory_space<vmem>>, vector<1x128x64xf32>
    %35 = vector.shape_cast %34 : vector<1x128x64xf32> to vector<128x64xf32>
    %cst_26 = arith.constant dense<0.000000e+00> : vector<80x64xf32>
    %36 = tpu.matmul %33, %35, %cst_26 {dimension_numbers = #tpu.dot_dimension_numbers<[1], [0], [0], [1], [0, 0, 1, 1], [], []>} : vector<80x128xf32>, vector<128x64xf32>, vector<80x64xf32> -> vector<80x64xf32>
    %37 = arith.addf %31, %36 : vector<80x64xf32>
    %c0_27 = arith.constant 0 : index
    %c768 = arith.constant 768 : index
    %38 = vector.load %arg1[%c0_27, %c768] : memref<80x2048xf32, #tpu.memory_space<vmem>>, vector<80x128xf32>
    %39 = arith.mulf %38, %0 : vector<80x128xf32>
    %c6 = arith.constant 6 : index
    %c0_28 = arith.constant 0 : index
    %c0_29 = arith.constant 0 : index
    %40 = vector.load %arg3[%c6, %c0_28, %c0_29] : memref<16x128x64xf32, #tpu.memory_space<vmem>>, vector<1x128x64xf32>
    %41 = vector.shape_cast %40 : vector<1x128x64xf32> to vector<128x64xf32>
    %cst_30 = arith.constant dense<0.000000e+00> : vector<80x64xf32>
    %42 = tpu.matmul %39, %41, %cst_30 {dimension_numbers = #tpu.dot_dimension_numbers<[1], [0], [0], [1], [0, 0, 1, 1], [], []>} : vector<80x128xf32>, vector<128x64xf32>, vector<80x64xf32> -> vector<80x64xf32>
    %43 = arith.addf %37, %42 : vector<80x64xf32>
    %c0_31 = arith.constant 0 : index
    %c896 = arith.constant 896 : index
    %44 = vector.load %arg1[%c0_31, %c896] : memref<80x2048xf32, #tpu.memory_space<vmem>>, vector<80x128xf32>
    %45 = arith.mulf %44, %0 : vector<80x128xf32>
    %c7 = arith.constant 7 : index
    %c0_32 = arith.constant 0 : index
    %c0_33 = arith.constant 0 : index
    %46 = vector.load %arg3[%c7, %c0_32, %c0_33] : memref<16x128x64xf32, #tpu.memory_space<vmem>>, vector<1x128x64xf32>
    %47 = vector.shape_cast %46 : vector<1x128x64xf32> to vector<128x64xf32>
    %cst_34 = arith.constant dense<0.000000e+00> : vector<80x64xf32>
    %48 = tpu.matmul %45, %47, %cst_34 {dimension_numbers = #tpu.dot_dimension_numbers<[1], [0], [0], [1], [0, 0, 1, 1], [], []>} : vector<80x128xf32>, vector<128x64xf32>, vector<80x64xf32> -> vector<80x64xf32>
    %49 = arith.addf %43, %48 : vector<80x64xf32>
    %c0_35 = arith.constant 0 : index
    %c1024 = arith.constant 1024 : index
    %50 = vector.load %arg1[%c0_35, %c1024] : memref<80x2048xf32, #tpu.memory_space<vmem>>, vector<80x128xf32>
    %51 = arith.mulf %50, %0 : vector<80x128xf32>
    %c8 = arith.constant 8 : index
    %c0_36 = arith.constant 0 : index
    %c0_37 = arith.constant 0 : index
    %52 = vector.load %arg3[%c8, %c0_36, %c0_37] : memref<16x128x64xf32, #tpu.memory_space<vmem>>, vector<1x128x64xf32>
    %53 = vector.shape_cast %52 : vector<1x128x64xf32> to vector<128x64xf32>
    %cst_38 = arith.constant dense<0.000000e+00> : vector<80x64xf32>
    %54 = tpu.matmul %51, %53, %cst_38 {dimension_numbers = #tpu.dot_dimension_numbers<[1], [0], [0], [1], [0, 0, 1, 1], [], []>} : vector<80x128xf32>, vector<128x64xf32>, vector<80x64xf32> -> vector<80x64xf32>
    %55 = arith.addf %49, %54 : vector<80x64xf32>
    %c0_39 = arith.constant 0 : index
    %c1152 = arith.constant 1152 : index
    %56 = vector.load %arg1[%c0_39, %c1152] : memref<80x2048xf32, #tpu.memory_space<vmem>>, vector<80x128xf32>
    %57 = arith.mulf %56, %0 : vector<80x128xf32>
    %c9 = arith.constant 9 : index
    %c0_40 = arith.constant 0 : index
    %c0_41 = arith.constant 0 : index
    %58 = vector.load %arg3[%c9, %c0_40, %c0_41] : memref<16x128x64xf32, #tpu.memory_space<vmem>>, vector<1x128x64xf32>
    %59 = vector.shape_cast %58 : vector<1x128x64xf32> to vector<128x64xf32>
    %cst_42 = arith.constant dense<0.000000e+00> : vector<80x64xf32>
    %60 = tpu.matmul %57, %59, %cst_42 {dimension_numbers = #tpu.dot_dimension_numbers<[1], [0], [0], [1], [0, 0, 1, 1], [], []>} : vector<80x128xf32>, vector<128x64xf32>, vector<80x64xf32> -> vector<80x64xf32>
    %61 = arith.addf %55, %60 : vector<80x64xf32>
    %c0_43 = arith.constant 0 : index
    %c1280 = arith.constant 1280 : index
    %62 = vector.load %arg1[%c0_43, %c1280] : memref<80x2048xf32, #tpu.memory_space<vmem>>, vector<80x128xf32>
    %63 = arith.mulf %62, %0 : vector<80x128xf32>
    %c10 = arith.constant 10 : index
    %c0_44 = arith.constant 0 : index
    %c0_45 = arith.constant 0 : index
    %64 = vector.load %arg3[%c10, %c0_44, %c0_45] : memref<16x128x64xf32, #tpu.memory_space<vmem>>, vector<1x128x64xf32>
    %65 = vector.shape_cast %64 : vector<1x128x64xf32> to vector<128x64xf32>
    %cst_46 = arith.constant dense<0.000000e+00> : vector<80x64xf32>
    %66 = tpu.matmul %63, %65, %cst_46 {dimension_numbers = #tpu.dot_dimension_numbers<[1], [0], [0], [1], [0, 0, 1, 1], [], []>} : vector<80x128xf32>, vector<128x64xf32>, vector<80x64xf32> -> vector<80x64xf32>
    %67 = arith.addf %61, %66 : vector<80x64xf32>
    %c0_47 = arith.constant 0 : index
    %c1408 = arith.constant 1408 : index
    %68 = vector.load %arg1[%c0_47, %c1408] : memref<80x2048xf32, #tpu.memory_space<vmem>>, vector<80x128xf32>
    %69 = arith.mulf %68, %0 : vector<80x128xf32>
    %c11 = arith.constant 11 : index
    %c0_48 = arith.constant 0 : index
    %c0_49 = arith.constant 0 : index
    %70 = vector.load %arg3[%c11, %c0_48, %c0_49] : memref<16x128x64xf32, #tpu.memory_space<vmem>>, vector<1x128x64xf32>
    %71 = vector.shape_cast %70 : vector<1x128x64xf32> to vector<128x64xf32>
    %cst_50 = arith.constant dense<0.000000e+00> : vector<80x64xf32>
    %72 = tpu.matmul %69, %71, %cst_50 {dimension_numbers = #tpu.dot_dimension_numbers<[1], [0], [0], [1], [0, 0, 1, 1], [], []>} : vector<80x128xf32>, vector<128x64xf32>, vector<80x64xf32> -> vector<80x64xf32>
    %73 = arith.addf %67, %72 : vector<80x64xf32>
    %c0_51 = arith.constant 0 : index
    %c1536 = arith.constant 1536 : index
    %74 = vector.load %arg1[%c0_51, %c1536] : memref<80x2048xf32, #tpu.memory_space<vmem>>, vector<80x128xf32>
    %75 = arith.mulf %74, %0 : vector<80x128xf32>
    %c12 = arith.constant 12 : index
    %c0_52 = arith.constant 0 : index
    %c0_53 = arith.constant 0 : index
    %76 = vector.load %arg3[%c12, %c0_52, %c0_53] : memref<16x128x64xf32, #tpu.memory_space<vmem>>, vector<1x128x64xf32>
    %77 = vector.shape_cast %76 : vector<1x128x64xf32> to vector<128x64xf32>
    %cst_54 = arith.constant dense<0.000000e+00> : vector<80x64xf32>
    %78 = tpu.matmul %75, %77, %cst_54 {dimension_numbers = #tpu.dot_dimension_numbers<[1], [0], [0], [1], [0, 0, 1, 1], [], []>} : vector<80x128xf32>, vector<128x64xf32>, vector<80x64xf32> -> vector<80x64xf32>
    %79 = arith.addf %73, %78 : vector<80x64xf32>
    %c0_55 = arith.constant 0 : index
    %c1664 = arith.constant 1664 : index
    %80 = vector.load %arg1[%c0_55, %c1664] : memref<80x2048xf32, #tpu.memory_space<vmem>>, vector<80x128xf32>
    %81 = arith.mulf %80, %0 : vector<80x128xf32>
    %c13 = arith.constant 13 : index
    %c0_56 = arith.constant 0 : index
    %c0_57 = arith.constant 0 : index
    %82 = vector.load %arg3[%c13, %c0_56, %c0_57] : memref<16x128x64xf32, #tpu.memory_space<vmem>>, vector<1x128x64xf32>
    %83 = vector.shape_cast %82 : vector<1x128x64xf32> to vector<128x64xf32>
    %cst_58 = arith.constant dense<0.000000e+00> : vector<80x64xf32>
    %84 = tpu.matmul %81, %83, %cst_58 {dimension_numbers = #tpu.dot_dimension_numbers<[1], [0], [0], [1], [0, 0, 1, 1], [], []>} : vector<80x128xf32>, vector<128x64xf32>, vector<80x64xf32> -> vector<80x64xf32>
    %85 = arith.addf %79, %84 : vector<80x64xf32>
    %c0_59 = arith.constant 0 : index
    %c1792 = arith.constant 1792 : index
    %86 = vector.load %arg1[%c0_59, %c1792] : memref<80x2048xf32, #tpu.memory_space<vmem>>, vector<80x128xf32>
    %87 = arith.mulf %86, %0 : vector<80x128xf32>
    %c14 = arith.constant 14 : index
    %c0_60 = arith.constant 0 : index
    %c0_61 = arith.constant 0 : index
    %88 = vector.load %arg3[%c14, %c0_60, %c0_61] : memref<16x128x64xf32, #tpu.memory_space<vmem>>, vector<1x128x64xf32>
    %89 = vector.shape_cast %88 : vector<1x128x64xf32> to vector<128x64xf32>
    %cst_62 = arith.constant dense<0.000000e+00> : vector<80x64xf32>
    %90 = tpu.matmul %87, %89, %cst_62 {dimension_numbers = #tpu.dot_dimension_numbers<[1], [0], [0], [1], [0, 0, 1, 1], [], []>} : vector<80x128xf32>, vector<128x64xf32>, vector<80x64xf32> -> vector<80x64xf32>
    %91 = arith.addf %85, %90 : vector<80x64xf32>
    %c0_63 = arith.constant 0 : index
    %c1920 = arith.constant 1920 : index
    %92 = vector.load %arg1[%c0_63, %c1920] : memref<80x2048xf32, #tpu.memory_space<vmem>>, vector<80x128xf32>
    %93 = arith.mulf %92, %0 : vector<80x128xf32>
    %c15 = arith.constant 15 : index
    %c0_64 = arith.constant 0 : index
    %c0_65 = arith.constant 0 : index
    %94 = vector.load %arg3[%c15, %c0_64, %c0_65] : memref<16x128x64xf32, #tpu.memory_space<vmem>>, vector<1x128x64xf32>
    %95 = vector.shape_cast %94 : vector<1x128x64xf32> to vector<128x64xf32>
    %cst_66 = arith.constant dense<0.000000e+00> : vector<80x64xf32>
    %96 = tpu.matmul %93, %95, %cst_66 {dimension_numbers = #tpu.dot_dimension_numbers<[1], [0], [0], [1], [0, 0, 1, 1], [], []>} : vector<80x128xf32>, vector<128x64xf32>, vector<80x64xf32> -> vector<80x64xf32>
    %97 = arith.addf %91, %96 : vector<80x64xf32>
    %cst_67 = arith.constant dense<0xFF800000> : vector<80xf32>
    %98 = vector.multi_reduction <maximumf>, %97, %cst_67 [1] : vector<80x64xf32> to vector<80xf32>
    %99 = vector.shape_cast %98 : vector<80xf32> to vector<80x1xf32>
    %100 = vector.broadcast %99 : vector<80x1xf32> to vector<80x64xf32>
    %101 = arith.subf %97, %100 : vector<80x64xf32>
    %102 = math.exp %101 : vector<80x64xf32>
    %c0_68 = arith.constant 0 : index
    %c0_69 = arith.constant 0 : index
    %103 = vector.load %arg4[%c0_68, %c0_69] : memref<64x5xf32, #tpu.memory_space<vmem>>, vector<64x5xf32>
    %cst_70 = arith.constant dense<0.000000e+00> : vector<80x5xf32>
    %104 = tpu.matmul %102, %103, %cst_70 {dimension_numbers = #tpu.dot_dimension_numbers<[1], [0], [0], [1], [0, 0, 1, 1], [], []>} : vector<80x64xf32>, vector<64x5xf32>, vector<80x5xf32> -> vector<80x5xf32>
    %105 = vector.extract_strided_slice %104 {offsets = [0, 0], sizes = [80, 1], strides = [1, 1]} : vector<80x5xf32> to vector<80x1xf32>
    %cst_71 = arith.constant 1.000000e+00 : f32
    %106 = vector.broadcast %cst_71 : f32 to vector<80x1xf32>
    %107 = arith.divf %106, %105 : vector<80x1xf32>
    %108 = vector.extract_strided_slice %104 {offsets = [0, 1], sizes = [80, 1], strides = [1, 1]} : vector<80x5xf32> to vector<80x1xf32>
    %109 = arith.mulf %108, %107 : vector<80x1xf32>
    %110 = vector.extract_strided_slice %104 {offsets = [0, 2], sizes = [80, 1], strides = [1, 1]} : vector<80x5xf32> to vector<80x1xf32>
    %111 = arith.mulf %110, %107 : vector<80x1xf32>
    %112 = vector.extract_strided_slice %104 {offsets = [0, 3], sizes = [80, 1], strides = [1, 1]} : vector<80x5xf32> to vector<80x1xf32>
    %113 = arith.mulf %112, %107 : vector<80x1xf32>
    %114 = arith.mulf %109, %109 : vector<80x1xf32>
    %115 = arith.subf %113, %114 : vector<80x1xf32>
    %116 = vector.extract_strided_slice %104 {offsets = [0, 4], sizes = [80, 1], strides = [1, 1]} : vector<80x5xf32> to vector<80x1xf32>
    %117 = arith.mulf %116, %107 : vector<80x1xf32>
    %118 = arith.mulf %111, %111 : vector<80x1xf32>
    %119 = arith.subf %117, %118 : vector<80x1xf32>
    %cst_72 = arith.constant 1.000000e-10 : f32
    %120 = vector.broadcast %cst_72 : f32 to vector<80x1xf32>
    %121 = arith.maximumf %115, %120 : vector<80x1xf32>
    %122 = math.sqrt %121 : vector<80x1xf32>
    %cst_73 = arith.constant 1.000000e-10 : f32
    %123 = vector.broadcast %cst_73 : f32 to vector<80x1xf32>
    %124 = arith.maximumf %119, %123 : vector<80x1xf32>
    %125 = math.sqrt %124 : vector<80x1xf32>
    %126 = arith.addf %122, %125 : vector<80x1xf32>
    %127 = tpu.concatenate %109, %111, %126 in 1 : vector<80x1xf32>, vector<80x1xf32>, vector<80x1xf32> -> vector<80x3xf32>
    %c0_74 = arith.constant 0 : index
    %c0_75 = arith.constant 0 : index
    %128 = vector.load %arg5[%c0_74, %c0_75] : memref<80x3xf32, #tpu.memory_space<vmem>>, vector<80x3xf32>
    tpu.vector_store %arg5[%c0_74, %c0_75], %127 {strides = array<i32>} : memref<80x3xf32, #tpu.memory_space<vmem>>, vector<80x3xf32>,
    return
  }
  func.func @transform_0(%arg0: i32) -> (i32, i32) {
    %c0_i32 = arith.constant 0 : i32
    %c0_i32_0 = arith.constant 0 : i32
    return %arg0, %c0_i32 : i32, i32
  }
  func.func @transform_1(%arg0: i32) -> (i32, i32) {
    %c0_i32 = arith.constant 0 : i32
    %c0_i32_0 = arith.constant 0 : i32
    return %arg0, %c0_i32 : i32, i32
  }
  func.func @transform_2(%arg0: i32) -> (i32, i32, i32) {
    %c0_i32 = arith.constant 0 : i32
    %c0_i32_0 = arith.constant 0 : i32
    %c0_i32_1 = arith.constant 0 : i32
    %c0_i32_2 = arith.constant 0 : i32
    return %c0_i32, %c0_i32_0, %c0_i32_1 : i32, i32, i32
  }
  func.func @transform_3(%arg0: i32) -> (i32, i32) {
    %c0_i32 = arith.constant 0 : i32
    %c0_i32_0 = arith.constant 0 : i32
    %c0_i32_1 = arith.constant 0 : i32
    return %c0_i32, %c0_i32_0 : i32, i32
  }
  func.func @transform_4(%arg0: i32) -> (i32, i32) {
    %c0_i32 = arith.constant 0 : i32
    %c0_i32_0 = arith.constant 0 : i32
    return %arg0, %c0_i32 : i32, i32
  }
}

</mosaic_0001>

<llo_original>
// kernel: tpu_custom_call.1
$region0: #{tpu_custom_call.1}
  #allocation0 [shape = 'u32[]', space=smem, size = 0x4, offset = 0x4, fixed_abs, tag = 'smem constant byte address 0x4 - core index']
  #allocation1 [shape = 'u32[144,128]{1,0:T(1,128)}', space=vmem, size = 0x12000, scoped, tag = 'internal scratch']
  %s0 = inlined_call_operand.hbm [shape: f32[300,2048], index: 0, kind: input, shape index: {}]
  %s1 = inlined_call_operand.hbm [shape: f32[300,128], index: 1, kind: input, shape index: {}]
  %s2 = inlined_call_operand.vmem [shape: f32[16,128,64], index: 2, kind: input, shape index: {}]
  %s3 = inlined_call_operand.vmem [shape: f32[64,5], index: 3, kind: input, shape index: {}]
  %s4 = inlined_call_operand.vmem [shape: f32[300,3], index: 4, kind: output, shape index: {}]
  %s5 = sld [smem:[#allocation0]]
  $region105: #{tpu_custom_call.1} parent=0
    _
  %s7 = ssub.s32 1, %s5
  %s8 = scalar_select 0, %s7, %s5
  $region1: #{tpu_custom_call.1} parent=0
    #allocation2 [shape = 'u8[1310720]{0}', space=vmem, size = 0x140000, scoped, tag = 'input window, operand 0']
    #allocation3 [shape = 's32[2]{0}', space=sflag, size = 0x8, scoped, tag = 'scoped memory for tpu_custom_call.1']
    #allocation4 [shape = 'u8[81920]{0}', space=vmem, size = 0x14000, scoped, tag = 'input window, operand 1']
    #allocation5 [shape = 's32[2]{0}', space=sflag, size = 0x8, scoped, tag = 'scoped memory for tpu_custom_call.1']
    #allocation6 [shape = 'u8[81920]{0}', space=vmem, size = 0x14000, scoped, tag = 'output window, operand 0']
    %9 = vsyncpa [#allocation3], 0
    %s10 = scalar_lea.sflag [#allocation3], 1
    %11 = vsyncpa %s10, 0
    %12 = vsyncpa [#allocation5], 0
    %s13 = scalar_lea.sflag [#allocation5], 1
    %14 = vsyncpa %s13, 0
    loop: start=0, step=1, limit=6
    $region2: #{tpu_custom_call.1} parent=1 // loop_pre_header
      _
    $region3: #{tpu_custom_call.1} parent=1 // loop_header
      %s16 = sphi 0, %s20
      %p17 = scmp.ge.s32.totalorder %s16, 6
      %s26 = sphi 0, %s28
      %s29 = sphi 0, %s26
      %s30 = sphi 0, %s29
      %s46 = sphi 0, %s30
      %s52 = sphi 0, %s54
      %s55 = sphi 0, %s52
      %s56 = sphi 0, %s55
      %s72 = sphi 0, %s56
      %s76 = sphi 0, %s76
      %s78 = sphi 0, %s76
      %s79 = sphi 0, %s78
      %s93 = sphi 0, %s79
      %s97 = sphi 0, %s97
      %s99 = sphi 0, %s97
      %s100 = sphi 0, %s99
      %s114 = sphi 0, %s100
      %s120 = sphi 0, %s122
      %s123 = sphi 0, %s120
      %s124 = sphi 0, %s123
      %s140 = sphi 0, %s124
    $region4: #{tpu_custom_call.1} parent=1 // loop_header_branch
      %19 = sbr.rel (%p17) target = $region8
    $region5: #{tpu_custom_call.1} parent=1 // loop_body
      %s21 = ssub.s32 %s16, 1
      %s22 = ssub.s32 %s16, 2
      %s23 = sadd.s32 %s16, 1
      %s24 = ssub.s32 %s16, %s23
      %p25 = scmp.eq.s32.totalorder %s24, 0
      %s27 = sadd.s32 %s26, 1
      %s28 = scalar_select %p25, %s26, %s27
      %p31 = pneg %p25
      %p32 = scmp.eq.s32.totalorder %s16, 3
      %p33 = por %p31, %p32
      %p34 = scmp.ne.s32.totalorder %s26, %s29
      %p35 = scmp.eq.s32.totalorder %s16, 0
      %p36 = por %p34, %p35
      %p37 = scmp.ne.s32.totalorder %s26, %s29
      %p38 = scmp.eq.s32.totalorder %s21, 3
      %p39 = por %p37, %p38
      %p40 = scmp.ne.s32.totalorder %s29, %s30
      %p41 = scmp.eq.s32.totalorder %s21, 0
      %p42 = por %p40, %p41
      %p43 = scmp.ne.s32.totalorder %s29, %s30
      %p44 = scmp.eq.s32.totalorder %s22, 3
      %p45 = por %p43, %p44
      %p47 = scmp.ne.s32.totalorder %s30, %s46
      %p48 = scmp.eq.s32.totalorder %s22, 0
      %p49 = por %p47, %p48
      %s50 = ssub.s32 %s16, %s23
      %p51 = scmp.eq.s32.totalorder %s50, 0
      %s53 = sadd.s32 %s52, 1
      %s54 = scalar_select %p51, %s52, %s53
      %p57 = pneg %p51
      %p58 = scmp.eq.s32.totalorder %s16, 3
      %p59 = por %p57, %p58
      %p60 = scmp.ne.s32.totalorder %s52, %s55
      %p61 = scmp.eq.s32.totalorder %s16, 0
      %p62 = por %p60, %p61
      %p63 = scmp.ne.s32.totalorder %s52, %s55
      %p64 = scmp.eq.s32.totalorder %s21, 3
      %p65 = por %p63, %p64
      %p66 = scmp.ne.s32.totalorder %s55, %s56
      %p67 = scmp.eq.s32.totalorder %s21, 0
      %p68 = por %p66, %p67
      %p69 = scmp.ne.s32.totalorder %s55, %s56
      %p70 = scmp.eq.s32.totalorder %s22, 3
      %p71 = por %p69, %p70
      %p73 = scmp.ne.s32.totalorder %s56, %s72
      %p74 = scmp.eq.s32.totalorder %s22, 0
      %p75 = por %p73, %p74
      %s77 = sadd.s32 %s76, 1
      %p80 = scmp.eq.s32.totalorder %s16, 3
      %p81 = scmp.ne.s32.totalorder %s76, %s78
      %p82 = scmp.eq.s32.totalorder %s16, 0
      %p83 = por %p81, %p82
      %p84 = scmp.ne.s32.totalorder %s76, %s78
      %p85 = scmp.eq.s32.totalorder %s21, 3
      %p86 = por %p84, %p85
      %p87 = scmp.ne.s32.totalorder %s78, %s79
      %p88 = scmp.eq.s32.totalorder %s21, 0
      %p89 = por %p87, %p88
      %p90 = scmp.ne.s32.totalorder %s78, %s79
      %p91 = scmp.eq.s32.totalorder %s22, 3
      %p92 = por %p90, %p91
      %p94 = scmp.ne.s32.totalorder %s79, %s93
      %p95 = scmp.eq.s32.totalorder %s22, 0
      %p96 = por %p94, %p95
      %s98 = sadd.s32 %s97, 1
      %p101 = scmp.eq.s32.totalorder %s16, 3
      %p102 = scmp.ne.s32.totalorder %s97, %s99
      %p103 = scmp.eq.s32.totalorder %s16, 0
      %p104 = por %p102, %p103
      %p105 = scmp.ne.s32.totalorder %s97, %s99
      %p106 = scmp.eq.s32.totalorder %s21, 3
      %p107 = por %p105, %p106
      %p108 = scmp.ne.s32.totalorder %s99, %s100
      %p109 = scmp.eq.s32.totalorder %s21, 0
      %p110 = por %p108, %p109
      %p111 = scmp.ne.s32.totalorder %s99, %s100
      %p112 = scmp.eq.s32.totalorder %s22, 3
      %p113 = por %p111, %p112
      %p115 = scmp.ne.s32.totalorder %s100, %s114
      %p116 = scmp.eq.s32.totalorder %s22, 0
      %p117 = por %p115, %p116
      %s118 = ssub.s32 %s16, %s23
      %p119 = scmp.eq.s32.totalorder %s118, 0
      %s121 = sadd.s32 %s120, 1
      %s122 = scalar_select %p119, %s120, %s121
      %p125 = pneg %p119
      %p126 = scmp.eq.s32.totalorder %s16, 3
      %p127 = por %p125, %p126
      %p128 = scmp.ne.s32.totalorder %s120, %s123
      %p129 = scmp.eq.s32.totalorder %s16, 0
      %p130 = por %p128, %p129
      %p131 = scmp.ne.s32.totalorder %s120, %s123
      %p132 = scmp.eq.s32.totalorder %s21, 3
      %p133 = por %p131, %p132
      %p134 = scmp.ne.s32.totalorder %s123, %s124
      %p135 = scmp.eq.s32.totalorder %s21, 0
      %p136 = por %p134, %p135
      %p137 = scmp.ne.s32.totalorder %s123, %s124
      %p138 = scmp.eq.s32.totalorder %s22, 3
      %p139 = por %p137, %p138
      %p141 = scmp.ne.s32.totalorder %s124, %s140
      %p142 = scmp.eq.s32.totalorder %s22, 0
      %p143 = por %p141, %p142
      %p144 = scmp.le.s32.totalorder 1, %s16
      %p145 = scmp.lt.s32.totalorder %s16, 5
      %p146 = pnand %p144, %p145
      %p147 = pneg %p146
      // Predicated region
      $region9: #{tpu_custom_call.1} parent=5 // pred_check
        _
      $region10: #{tpu_custom_call.1} parent=5 // pred_check_branch
        %149 = sbr.rel (%p146) target = $region12
      $region11: #{tpu_custom_call.1} parent=5 // pred_region
        %s150 = ssub.s32 %s16, 1
        // Predicated region
        $region13: #{tpu_custom_call.1} parent=11 // pred_check
          %p151 = pneg %p89
        $region14: #{tpu_custom_call.1} parent=11 // pred_check_branch
          %153 = sbr.rel (%p151) target = $region16
        $region15: #{tpu_custom_call.1} parent=11 // pred_region
          _
        $region16: #{tpu_custom_call.1} parent=11 // pred_fallthru
          _
        // Predicated region
        $region17: #{tpu_custom_call.1} parent=11 // pred_check
          %p154 = pneg %p110
        $region18: #{tpu_custom_call.1} parent=11 // pred_check_branch
          %156 = sbr.rel (%p154) target = $region20
        $region19: #{tpu_custom_call.1} parent=11 // pred_region
          _
        $region20: #{tpu_custom_call.1} parent=11 // pred_fallthru
          _
      $region12: #{tpu_custom_call.1} parent=5 // pred_fallthru
        _
      %p157 = scmp.lt.s32.totalorder %s16, 4
      // Predicated region
      $region21: #{tpu_custom_call.1} parent=5 // pred_check
        %p158 = pneg %p157
      $region22: #{tpu_custom_call.1} parent=5 // pred_check_branch
        %160 = sbr.rel (%p158) target = $region24
      $region23: #{tpu_custom_call.1} parent=5 // pred_region
        // Predicated region
        $region25: #{tpu_custom_call.1} parent=23 // pred_check
          %p161 = pneg %p36
        $region26: #{tpu_custom_call.1} parent=23 // pred_check_branch
          %163 = sbr.rel (%p161) target = $region28
        $region27: #{tpu_custom_call.1} parent=23 // pred_region
          %s164 = sand.u32 %s26, 1
          %s165 = scalar_lea.sflag [#allocation3], %s164
          %s166 = sand.u32 %s26, 1
          %s167 = smul.addr %s166, 1280
          %s168 = scalar_lea.vmem [#allocation2], %s167
          %s169 = smul.u32 10, %s16
          %s170 = ssub.s32 38, %s169
          %p171 = scmp.lt.s32.totalorder %s170, 10
          %s172 = scalar_select %p171, %s170, 10
          %s173 = smul.u32 128, %s172
          %s174 = smul.u32 %s173, 16
          %s176 = ssub.s32 20480, %s174
          %177 = vsyncadd %s165, %s176
          %p178 = scmp.ne.s32.totalorder 0, %s174
          %s179 = smul.addr %s169, 16
          %s180 = smul.addr %s179, 128
          %s181 = scalar_lea.hbm %s0, %s180
          %s182 = smul.u32 128, %s172
          %s183 = sshll.u32 %s168, 4
          %s184 = int_to_ptr.vmem [resolvable:$true] %s183
          %s185 = sshll.u32 %s182, 4
          %189 = dma.hbm_to_vmem [thread:$0]  (%p178), %s181, %s185, %s184, %s165, 2048, 2048, 128
        $region28: #{tpu_custom_call.1} parent=23 // pred_fallthru
          _
        // Predicated region
        $region29: #{tpu_custom_call.1} parent=23 // pred_check
          %p190 = pneg %p62
        $region30: #{tpu_custom_call.1} parent=23 // pred_check_branch
          %192 = sbr.rel (%p190) target = $region32
        $region31: #{tpu_custom_call.1} parent=23 // pred_region
          %s193 = sand.u32 %s52, 1
          %s194 = scalar_lea.sflag [#allocation5], %s193
          %s195 = sand.u32 %s52, 1
          %s196 = smul.addr %s195, 80
          %s197 = scalar_lea.vmem [#allocation4], %s196
          %s198 = smul.u32 10, %s16
          %s199 = ssub.s32 38, %s198
          %p200 = scmp.lt.s32.totalorder %s199, 10
          %s201 = scalar_select %p200, %s199, 10
          %s202 = smul.u32 128, %s201
          %s204 = ssub.s32 1280, %s202
          %205 = vsyncadd %s194, %s204
          %p206 = scmp.ne.s32.totalorder 0, %s202
          %s207 = smul.addr %s198, 128
          %s208 = scalar_lea.hbm %s1, %s207
          %s209 = smul.u32 8, %s201
          %s210 = sshll.u32 %s197, 4
          %s211 = int_to_ptr.vmem [resolvable:$true] %s210
          %s212 = sshll.u32 %s209, 4
          %216 = dma.hbm_to_vmem [thread:$0]  (%p206), %s208, %s212, %s211, %s194, 128, 128, 8
        $region32: #{tpu_custom_call.1} parent=23 // pred_fallthru
          _
      $region24: #{tpu_custom_call.1} parent=5 // pred_fallthru
        _
      %p217 = scmp.le.s32.totalorder 1, %s16
      %p218 = scmp.lt.s32.totalorder %s16, 5
      %p219 = pnand %p217, %p218
      %p220 = pneg %p219
      // Predicated region
      $region33: #{tpu_custom_call.1} parent=5 // pred_check
        _
      $region34: #{tpu_custom_call.1} parent=5 // pred_check_branch
        %222 = sbr.rel (%p219) target = $region36
      $region35: #{tpu_custom_call.1} parent=5 // pred_region
        %s223 = ssub.s32 %s16, 1
        %s224 = sand.u32 %s29, 1
        %s225 = scalar_lea.sflag [#allocation3], %s224
        %s226 = sand.u32 %s29, 1
        %s227 = smul.addr %s226, 1280
        %s228 = scalar_lea.vmem [#allocation2], %s227
        // Predicated region
        $region37: #{tpu_custom_call.1} parent=35 // pred_check
          %p229 = pneg %p42
        $region38: #{tpu_custom_call.1} parent=35 // pred_check_branch
          %231 = sbr.rel (%p229) target = $region40
        $region39: #{tpu_custom_call.1} parent=35 // pred_region
          %232 = dma.done %s225, 20480
        $region40: #{tpu_custom_call.1} parent=35 // pred_fallthru
          _
        %s233 = sand.u32 %s55, 1
        %s234 = scalar_lea.sflag [#allocation5], %s233
        %s235 = sand.u32 %s55, 1
        %s236 = smul.addr %s235, 80
        %s237 = scalar_lea.vmem [#allocation4], %s236
        // Predicated region
        $region41: #{tpu_custom_call.1} parent=35 // pred_check
          %p238 = pneg %p68
        $region42: #{tpu_custom_call.1} parent=35 // pred_check_branch
          %240 = sbr.rel (%p238) target = $region44
        $region43: #{tpu_custom_call.1} parent=35 // pred_region
          %241 = dma.done %s234, 1280
        $region44: #{tpu_custom_call.1} parent=35 // pred_fallthru
          _
        %s242 = sand.u32 %s29, 1
        %s243 = scalar_lea.sflag [#allocation3], %s242
        %s244 = sand.u32 %s29, 1
        %s245 = smul.addr %s244, 1280
        %s246 = scalar_lea.vmem [#allocation2], %s245
        %p247 = pneg %p42
        %p248 = pneg %p39
        %s249 = sand.u32 %s55, 1
        %s250 = scalar_lea.sflag [#allocation5], %s249
        %s251 = sand.u32 %s55, 1
        %s252 = smul.addr %s251, 80
        %s253 = scalar_lea.vmem [#allocation4], %s252
        %p254 = pneg %p68
        %p255 = pneg %p65
        %p256 = pneg %p89
        %p257 = pneg %p86
        %p258 = pneg %p110
        %p259 = pneg %p107
        %p260 = pneg %p136
        %p261 = pneg %p133
        %s262 = sand.u32 %s123, 1
        %s263 = sand.u32 %s123, 1
        %s264 = smul.addr %s263, 80
        %s265 = scalar_lea.vmem [#allocation6], %s264
        %s266 = smul.u32 10, %s21
        %s267 = ssub.s32 38, %s266
        %p268 = scmp.lt.s32.totalorder %s267, 10
        %s269 = scalar_select %p268, %s267, 10
        %s270 = smul.u32 128, %s269
        %s271 = smul.u32 %s270, 16
        %s272 = smul.u32 10, %s21
        %s273 = ssub.s32 38, %s272
        %p274 = scmp.lt.s32.totalorder %s273, 10
        %s275 = scalar_select %p274, %s273, 10
        %s276 = smul.u32 128, %s275
        %s277 = smul.u32 10, %s21
        %s278 = ssub.s32 38, %s277
        %p279 = scmp.lt.s32.totalorder %s278, 10
        %s280 = scalar_select %p279, %s278, 10
        %s281 = smul.u32 128, %s280
        %v282 = vld [vmem:[%s237] sm:$0xff]
        %v283 = vld [vmem:[%s237 + $0x8] sm:$0xff]
        %v284 = vld [vmem:[%s237 + $0x10] sm:$0xff]
        %v285 = vld [vmem:[%s237 + $0x18] sm:$0xff]
        %v286 = vld [vmem:[%s237 + $0x20] sm:$0xff]
        %v287 = vld [vmem:[%s237 + $0x28] sm:$0xff]
        %v288 = vld [vmem:[%s237 + $0x30] sm:$0xff]
        %v289 = vld [vmem:[%s237 + $0x38] sm:$0xff]
        %v290 = vld [vmem:[%s237 + $0x40] sm:$0xff]
        %v291 = vld [vmem:[%s237 + $0x48] sm:$0xff]
        %v292 = vld [vmem:[%s228] sm:$0xff]
        %v293 = vld [vmem:[%s228 + $0x80] sm:$0xff]
        %v294 = vld [vmem:[%s228 + $0x100] sm:$0xff]
        %v295 = vld [vmem:[%s228 + $0x180] sm:$0xff]
        %v296 = vld [vmem:[%s228 + $0x200] sm:$0xff]
        %v297 = vld [vmem:[%s228 + $0x280] sm:$0xff]
        %v298 = vld [vmem:[%s228 + $0x300] sm:$0xff]
        %v299 = vld [vmem:[%s228 + $0x380] sm:$0xff]
        %v300 = vld [vmem:[%s228 + $0x400] sm:$0xff]
        %v301 = vld [vmem:[%s228 + $0x480] sm:$0xff]
        %v302 = vmul.f32 %v292, %v282
        %v303 = vmul.f32 %v293, %v283
        %v304 = vmul.f32 %v294, %v284
        %v305 = vmul.f32 %v295, %v285
        %v306 = vmul.f32 %v296, %v286
        %v307 = vmul.f32 %v297, %v287
        %v308 = vmul.f32 %v298, %v288
        %v309 = vmul.f32 %v299, %v289
        %v310 = vmul.f32 %v300, %v290
        %v311 = vmul.f32 %v301, %v291
        %v312 = vld [vmem:[%s2] sm:$0xff]
        %v313 = vld [vmem:[%s2 + $0x8] sm:$0xff]
        %v314 = vld [vmem:[%s2 + $0x10] sm:$0xff]
        %v315 = vld [vmem:[%s2 + $0x18] sm:$0xff]
        %v316 = vld [vmem:[%s2 + $0x20] sm:$0xff]
        %v317 = vld [vmem:[%s2 + $0x28] sm:$0xff]
        %v318 = vld [vmem:[%s2 + $0x30] sm:$0xff]
        %v319 = vld [vmem:[%s2 + $0x38] sm:$0xff]
        %v320 = vld [vmem:[%s2 + $0x40] sm:$0xff]
        %v321 = vld [vmem:[%s2 + $0x48] sm:$0xff]
        %v322 = vld [vmem:[%s2 + $0x50] sm:$0xff]
        %v323 = vld [vmem:[%s2 + $0x58] sm:$0xff]
        %v324 = vld [vmem:[%s2 + $0x60] sm:$0xff]
        %v325 = vld [vmem:[%s2 + $0x68] sm:$0xff]
        %v326 = vld [vmem:[%s2 + $0x70] sm:$0xff]
        %v327 = vld [vmem:[%s2 + $0x78] sm:$0xff]
        %v328 = vld [vmem:[%s228 + $0x8] sm:$0xff]
        %v329 = vld [vmem:[%s228 + $0x88] sm:$0xff]
        %v330 = vld [vmem:[%s228 + $0x108] sm:$0xff]
        %v331 = vld [vmem:[%s228 + $0x188] sm:$0xff]
        %v332 = vld [vmem:[%s228 + $0x208] sm:$0xff]
        %v333 = vld [vmem:[%s228 + $0x288] sm:$0xff]
        %v334 = vld [vmem:[%s228 + $0x308] sm:$0xff]
        %v335 = vld [vmem:[%s228 + $0x388] sm:$0xff]
        %v336 = vld [vmem:[%s228 + $0x408] sm:$0xff]
        %v337 = vld [vmem:[%s228 + $0x488] sm:$0xff]
        %v338 = vmul.f32 %v328, %v282
        %v339 = vmul.f32 %v329, %v283
        %v340 = vmul.f32 %v330, %v284
        %v341 = vmul.f32 %v331, %v285
        %v342 = vmul.f32 %v332, %v286
        %v343 = vmul.f32 %v333, %v287
        %v344 = vmul.f32 %v334, %v288
        %v345 = vmul.f32 %v335, %v289
        %v346 = vmul.f32 %v336, %v290
        %v347 = vmul.f32 %v337, %v291
        %s348 = scalar_lea.vmem %s2, 128
        %v349 = vld [vmem:[%s348] sm:$0xff]
        %v350 = vld [vmem:[%s348 + $0x8] sm:$0xff]
        %v351 = vld [vmem:[%s348 + $0x10] sm:$0xff]
        %v352 = vld [vmem:[%s348 + $0x18] sm:$0xff]
        %v353 = vld [vmem:[%s348 + $0x20] sm:$0xff]
        %v354 = vld [vmem:[%s348 + $0x28] sm:$0xff]
        %v355 = vld [vmem:[%s348 + $0x30] sm:$0xff]
        %v356 = vld [vmem:[%s348 + $0x38] sm:$0xff]
        %v357 = vld [vmem:[%s348 + $0x40] sm:$0xff]
        %v358 = vld [vmem:[%s348 + $0x48] sm:$0xff]
        %v359 = vld [vmem:[%s348 + $0x50] sm:$0xff]
        %v360 = vld [vmem:[%s348 + $0x58] sm:$0xff]
        %v361 = vld [vmem:[%s348 + $0x60] sm:$0xff]
        %v362 = vld [vmem:[%s348 + $0x68] sm:$0xff]
        %v363 = vld [vmem:[%s348 + $0x70] sm:$0xff]
        %v364 = vld [vmem:[%s348 + $0x78] sm:$0xff]
        %365 = vmatprep.subr.mxu0 0.0
        %366 = vmatpush1.msra.mxu0 %v349
        %367 = vmatprep.subr.mxu0 0.0
        %368 = vmatpush1.msra.mxu0 %v350
        %369 = vmatprep.subr.mxu0 0.0
        %370 = vmatpush1.msra.mxu0 %v351
        %371 = vmatprep.subr.mxu0 0.0
        %372 = vmatpush1.msra.mxu0 %v352
        %373 = vmatprep.subr.mxu0 0.0
        %374 = vmatpush1.msra.mxu0 %v353
        %375 = vmatprep.subr.mxu0 0.0
        %376 = vmatpush1.msra.mxu0 %v354
        %377 = vmatprep.subr.mxu0 0.0
        %378 = vmatpush1.msra.mxu0 %v355
        %379 = vmatprep.subr.mxu0 0.0
        %380 = vmatpush1.msra.mxu0 %v356
        %381 = vmatprep.subr.mxu0 0.0
        %382 = vmatpush1.msra.mxu0 %v357
        %383 = vmatprep.subr.mxu0 0.0
        %384 = vmatpush1.msra.mxu0 %v358
        %385 = vmatprep.subr.mxu0 0.0
        %386 = vmatpush1.msra.mxu0 %v359
        %387 = vmatprep.subr.mxu0 0.0
        %388 = vmatpush1.msra.mxu0 %v360
        %389 = vmatprep.subr.mxu0 0.0
        %390 = vmatpush1.msra.mxu0 %v361
        %391 = vmatprep.subr.mxu0 0.0
        %392 = vmatpush1.msra.mxu0 %v362
        %393 = vmatprep.subr.mxu0 0.0
        %394 = vmatpush1.msra.mxu0 %v363
        %395 = vmatprep.subr.mxu0 0.0
        %396 = vmatpush1.msra.mxu0 %v364
        %397 = vmatprep.subr.mxu0 0.0
        %398 = vmatpush1.msra.mxu0 0.0
        %399 = vmatprep.subr.mxu0 0.0
        %400 = vmatpush1.msra.mxu0 0.0
        %401 = vmatprep.subr.mxu0 0.0
        %402 = vmatpush1.msra.mxu0 0.0
        %403 = vmatprep.subr.mxu0 0.0
        %404 = vmatpush1.msra.mxu0 0.0
        %405 = vmatprep.subr.mxu0 0.0
        %406 = vmatpush1.msra.mxu0 0.0
        %407 = vmatprep.subr.mxu0 0.0
        %408 = vmatpush1.msra.mxu0 0.0
        %409 = vmatprep.subr.mxu0 0.0
        %410 = vmatpush1.msra.mxu0 0.0
        %411 = vmatprep.subr.mxu0 0.0
        %412 = vmatpush1.msra.mxu0 0.0
        %413 = vmatprep.subr.mxu0 0.0
        %414 = vmatpush1.msra.mxu0 0.0
        %415 = vmatprep.subr.mxu0 0.0
        %416 = vmatpush1.msra.mxu0 0.0
        %417 = vmatprep.subr.mxu0 0.0
        %418 = vmatpush1.msra.mxu0 0.0
        %419 = vmatprep.subr.mxu0 0.0
        %420 = vmatpush1.msra.mxu0 0.0
        %421 = vmatprep.subr.mxu0 0.0
        %422 = vmatpush1.msra.mxu0 0.0
        %423 = vmatprep.subr.mxu0 0.0
        %424 = vmatpush1.msra.mxu0 0.0
        %425 = vmatprep.subr.mxu0 0.0
        %426 = vmatpush1.msra.mxu0 0.0
        %427 = vmatprep.subr.mxu0 0.0
        %428 = vmatpush1.msra.mxu0 0.0
        %429 = vmatprep.mubr.f32.mxu0 0.0
        %430 = vmatmul.mubr.f32.gmra.mrb[0].mxu0 %v338
        %v431 = vpop.f32.mrb[0].mxu0
        %v432 = vadd.f32 0.0, %v431
        %v433 = vpop.f32.mrb[0].mxu0
        %434 = vmatprep.mubr.f32.mxu0 0.0
        %435 = vmatmul.mubr.f32.gmra.mrb[0].mxu0 %v339
        %v436 = vpop.f32.mrb[0].mxu0
        %v437 = vadd.f32 0.0, %v436
        %v438 = vpop.f32.mrb[0].mxu0
        %439 = vmatprep.mubr.f32.mxu0 0.0
        %440 = vmatmul.mubr.f32.gmra.mrb[0].mxu0 %v340
        %v441 = vpop.f32.mrb[0].mxu0
        %v442 = vadd.f32 0.0, %v441
        %v443 = vpop.f32.mrb[0].mxu0
        %444 = vmatprep.mubr.f32.mxu0 0.0
        %445 = vmatmul.mubr.f32.gmra.mrb[0].mxu0 %v341
        %v446 = vpop.f32.mrb[0].mxu0
        %v447 = vadd.f32 0.0, %v446
        %v448 = vpop.f32.mrb[0].mxu0
        %449 = vmatprep.mubr.f32.mxu0 0.0
        %450 = vmatmul.mubr.f32.gmra.mrb[0].mxu0 %v342
        %v451 = vpop.f32.mrb[0].mxu0
        %v452 = vadd.f32 0.0, %v451
        %v453 = vpop.f32.mrb[0].mxu0
        %454 = vmatprep.mubr.f32.mxu0 0.0
        %455 = vmatmul.mubr.f32.gmra.mrb[0].mxu0 %v343
        %v456 = vpop.f32.mrb[0].mxu0
        %v457 = vadd.f32 0.0, %v456
        %v458 = vpop.f32.mrb[0].mxu0
        %459 = vmatprep.mubr.f32.mxu0 0.0
        %460 = vmatmul.mubr.f32.gmra.mrb[0].mxu0 %v344
        %v461 = vpop.f32.mrb[0].mxu0
        %v462 = vadd.f32 0.0, %v461
        %v463 = vpop.f32.mrb[0].mxu0
        %464 = vmatprep.mubr.f32.mxu0 0.0
        %465 = vmatmul.mubr.f32.gmra.mrb[0].mxu0 %v345
        %v466 = vpop.f32.mrb[0].mxu0
        %v467 = vadd.f32 0.0, %v466
        %v468 = vpop.f32.mrb[0].mxu0
        %469 = vmatprep.mubr.f32.mxu0 0.0
        %470 = vmatmul.mubr.f32.gmra.mrb[0].mxu0 %v346
        %v471 = vpop.f32.mrb[0].mxu0
        %v472 = vadd.f32 0.0, %v471
        %v473 = vpop.f32.mrb[0].mxu0
        %474 = vmatprep.mubr.f32.mxu0 0.0
        %475 = vmatmul.mubr.f32.gmra.mrb[0].mxu0 %v347
        %v476 = vpop.f32.mrb[0].mxu0
        %v477 = vadd.f32 0.0, %v476
        %v478 = vpop.f32.mrb[0].mxu0
        %479 = vdwg.mxu0
        %480 = vmatprep.subr.mxu0 0.0
        %481 = vmatpush1.msra.mxu0 %v312
        %482 = vmatprep.subr.mxu0 0.0
        %483 = vmatpush1.msra.mxu0 %v313
        %484 = vmatprep.subr.mxu0 0.0
        %485 = vmatpush1.msra.mxu0 %v314
        %486 = vmatprep.subr.mxu0 0.0
        %487 = vmatpush1.msra.mxu0 %v315
        %488 = vmatprep.subr.mxu0 0.0
        %489 = vmatpush1.msra.mxu0 %v316
        %490 = vmatprep.subr.mxu0 0.0
        %491 = vmatpush1.msra.mxu0 %v317
        %492 = vmatprep.subr.mxu0 0.0
        %493 = vmatpush1.msra.mxu0 %v318
        %494 = vmatprep.subr.mxu0 0.0
        %495 = vmatpush1.msra.mxu0 %v319
        %496 = vmatprep.subr.mxu0 0.0
        %497 = vmatpush1.msra.mxu0 %v320
        %498 = vmatprep.subr.mxu0 0.0
        %499 = vmatpush1.msra.mxu0 %v321
        %500 = vmatprep.subr.mxu0 0.0
        %501 = vmatpush1.msra.mxu0 %v322
        %502 = vmatprep.subr.mxu0 0.0
        %503 = vmatpush1.msra.mxu0 %v323
        %504 = vmatprep.subr.mxu0 0.0
        %505 = vmatpush1.msra.mxu0 %v324
        %506 = vmatprep.subr.mxu0 0.0
        %507 = vmatpush1.msra.mxu0 %v325
        %508 = vmatprep.subr.mxu0 0.0
        %509 = vmatpush1.msra.mxu0 %v326
        %510 = vmatprep.subr.mxu0 0.0
        %511 = vmatpush1.msra.mxu0 %v327
        %512 = vmatprep.subr.mxu0 0.0
        %513 = vmatpush1.msra.mxu0 0.0
        %514 = vmatprep.subr.mxu0 0.0
        %515 = vmatpush1.msra.mxu0 0.0
        %516 = vmatprep.subr.mxu0 0.0
        %517 = vmatpush1.msra.mxu0 0.0
        %518 = vmatprep.subr.mxu0 0.0
        %519 = vmatpush1.msra.mxu0 0.0
        %520 = vmatprep.subr.mxu0 0.0
        %521 = vmatpush1.msra.mxu0 0.0
        %522 = vmatprep.subr.mxu0 0.0
        %523 = vmatpush1.msra.mxu0 0.0
        %524 = vmatprep.subr.mxu0 0.0
        %525 = vmatpush1.msra.mxu0 0.0
        %526 = vmatprep.subr.mxu0 0.0
        %527 = vmatpush1.msra.mxu0 0.0
        %528 = vmatprep.subr.mxu0 0.0
        %529 = vmatpush1.msra.mxu0 0.0
        %530 = vmatprep.subr.mxu0 0.0
        %531 = vmatpush1.msra.mxu0 0.0
        %532 = vmatprep.subr.mxu0 0.0
        %533 = vmatpush1.msra.mxu0 0.0
        %534 = vmatprep.subr.mxu0 0.0
        %535 = vmatpush1.msra.mxu0 0.0
        %536 = vmatprep.subr.mxu0 0.0
        %537 = vmatpush1.msra.mxu0 0.0
        %538 = vmatprep.subr.mxu0 0.0
        %539 = vmatpush1.msra.mxu0 0.0
        %540 = vmatprep.subr.mxu0 0.0
        %541 = vmatpush1.msra.mxu0 0.0
        %542 = vmatprep.subr.mxu0 0.0
        %543 = vmatpush1.msra.mxu0 0.0
        %544 = vmatprep.mubr.f32.mxu0 0.0
        %545 = vmatmul.mubr.f32.gmra.mrb[0].mxu0 %v302
        %v546 = vpop.f32.mrb[0].mxu0
        %v547 = vadd.f32 %v432, %v546
        %v548 = vpop.f32.mrb[0].mxu0
        %549 = vmatprep.mubr.f32.mxu0 0.0
        %550 = vmatmul.mubr.f32.gmra.mrb[0].mxu0 %v303
        %v551 = vpop.f32.mrb[0].mxu0
        %v552 = vadd.f32 %v437, %v551
        %v553 = vpop.f32.mrb[0].mxu0
        %554 = vmatprep.mubr.f32.mxu0 0.0
        %555 = vmatmul.mubr.f32.gmra.mrb[0].mxu0 %v304
        %v556 = vpop.f32.mrb[0].mxu0
        %v557 = vadd.f32 %v442, %v556
        %v558 = vpop.f32.mrb[0].mxu0
        %559 = vmatprep.mubr.f32.mxu0 0.0
        %560 = vmatmul.mubr.f32.gmra.mrb[0].mxu0 %v305
        %v561 = vpop.f32.mrb[0].mxu0
        %v562 = vadd.f32 %v447, %v561
        %v563 = vpop.f32.mrb[0].mxu0
        %564 = vmatprep.mubr.f32.mxu0 0.0
        %565 = vmatmul.mubr.f32.gmra.mrb[0].mxu0 %v306
        %v566 = vpop.f32.mrb[0].mxu0
        %v567 = vadd.f32 %v452, %v566
        %v568 = vpop.f32.mrb[0].mxu0
        %569 = vmatprep.mubr.f32.mxu0 0.0
        %570 = vmatmul.mubr.f32.gmra.mrb[0].mxu0 %v307
        %v571 = vpop.f32.mrb[0].mxu0
        %v572 = vadd.f32 %v457, %v571
        %v573 = vpop.f32.mrb[0].mxu0
        %574 = vmatprep.mubr.f32.mxu0 0.0
        %575 = vmatmul.mubr.f32.gmra.mrb[0].mxu0 %v308
        %v576 = vpop.f32.mrb[0].mxu0
        %v577 = vadd.f32 %v462, %v576
        %v578 = vpop.f32.mrb[0].mxu0
        %579 = vmatprep.mubr.f32.mxu0 0.0
        %580 = vmatmul.mubr.f32.gmra.mrb[0].mxu0 %v309
        %v581 = vpop.f32.mrb[0].mxu0
        %v582 = vadd.f32 %v467, %v581
        %v583 = vpop.f32.mrb[0].mxu0
        %584 = vmatprep.mubr.f32.mxu0 0.0
        %585 = vmatmul.mubr.f32.gmra.mrb[0].mxu0 %v310
        %v586 = vpop.f32.mrb[0].mxu0
        %v587 = vadd.f32 %v472, %v586
        %v588 = vpop.f32.mrb[0].mxu0
        %589 = vmatprep.mubr.f32.mxu0 0.0
        %590 = vmatmul.mubr.f32.gmra.mrb[0].mxu0 %v311
        %v591 = vpop.f32.mrb[0].mxu0
        %v592 = vadd.f32 %v477, %v591
        %v593 = vpop.f32.mrb[0].mxu0
        %594 = vdwg.mxu0
        %v595 = vld [vmem:[%s228 + $0x10] sm:$0xff]
        %v596 = vld [vmem:[%s228 + $0x90] sm:$0xff]
        %v597 = vld [vmem:[%s228 + $0x110] sm:$0xff]
        %v598 = vld [vmem:[%s228 + $0x190] sm:$0xff]
        %v599 = vld [vmem:[%s228 + $0x210] sm:$0xff]
        %v600 = vld [vmem:[%s228 + $0x290] sm:$0xff]
        %v601 = vld [vmem:[%s228 + $0x310] sm:$0xff]
        %v602 = vld [vmem:[%s228 + $0x390] sm:$0xff]
        %v603 = vld [vmem:[%s228 + $0x410] sm:$0xff]
        %v604 = vld [vmem:[%s228 + $0x490] sm:$0xff]
        %v605 = vmul.f32 %v595, %v282
        %v606 = vmul.f32 %v596, %v283
        %v607 = vmul.f32 %v597, %v284
        %v608 = vmul.f32 %v598, %v285
        %v609 = vmul.f32 %v599, %v286
        %v610 = vmul.f32 %v600, %v287
        %v611 = vmul.f32 %v601, %v288
        %v612 = vmul.f32 %v602, %v289
        %v613 = vmul.f32 %v603, %v290
        %v614 = vmul.f32 %v604, %v291
        %s615 = scalar_lea.vmem %s2, 256
        %v616 = vld [vmem:[%s615] sm:$0xff]
        %v617 = vld [vmem:[%s615 + $0x8] sm:$0xff]
        %v618 = vld [vmem:[%s615 + $0x10] sm:$0xff]
        %v619 = vld [vmem:[%s615 + $0x18] sm:$0xff]
        %v620 = vld [vmem:[%s615 + $0x20] sm:$0xff]
        %v621 = vld [vmem:[%s615 + $0x28] sm:$0xff]
        %v622 = vld [vmem:[%s615 + $0x30] sm:$0xff]
        %v623 = vld [vmem:[%s615 + $0x38] sm:$0xff]
        %v624 = vld [vmem:[%s615 + $0x40] sm:$0xff]
        %v625 = vld [vmem:[%s615 + $0x48] sm:$0xff]
        %v626 = vld [vmem:[%s615 + $0x50] sm:$0xff]
        %v627 = vld [vmem:[%s615 + $0x58] sm:$0xff]
        %v628 = vld [vmem:[%s615 + $0x60] sm:$0xff]
        %v629 = vld [vmem:[%s615 + $0x68] sm:$0xff]
        %v630 = vld [vmem:[%s615 + $0x70] sm:$0xff]
        %v631 = vld [vmem:[%s615 + $0x78] sm:$0xff]
        %632 = vmatprep.subr.mxu0 0.0
        %633 = vmatpush1.msra.mxu0 %v616
        %634 = vmatprep.subr.mxu0 0.0
        %635 = vmatpush1.msra.mxu0 %v617
        %636 = vmatprep.subr.mxu0 0.0
        %637 = vmatpush1.msra.mxu0 %v618
        %638 = vmatprep.subr.mxu0 0.0
        %639 = vmatpush1.msra.mxu0 %v619
        %640 = vmatprep.subr.mxu0 0.0
        %641 = vmatpush1.msra.mxu0 %v620
        %642 = vmatprep.subr.mxu0 0.0
        %643 = vmatpush1.msra.mxu0 %v621
        %644 = vmatprep.subr.mxu0 0.0
        %645 = vmatpush1.msra.mxu0 %v622
        %646 = vmatprep.subr.mxu0 0.0
        %647 = vmatpush1.msra.mxu0 %v623
        %648 = vmatprep.subr.mxu0 0.0
        %649 = vmatpush1.msra.mxu0 %v624
        %650 = vmatprep.subr.mxu0 0.0
        %651 = vmatpush1.msra.mxu0 %v625
        %652 = vmatprep.subr.mxu0 0.0
        %653 = vmatpush1.msra.mxu0 %v626
        %654 = vmatprep.subr.mxu0 0.0
        %655 = vmatpush1.msra.mxu0 %v627
        %656 = vmatprep.subr.mxu0 0.0
        %657 = vmatpush1.msra.mxu0 %v628
        %658 = vmatprep.subr.mxu0 0.0
        %659 = vmatpush1.msra.mxu0 %v629
        %660 = vmatprep.subr.mxu0 0.0
        %661 = vmatpush1.msra.mxu0 %v630
        %662 = vmatprep.subr.mxu0 0.0
        %663 = vmatpush1.msra.mxu0 %v631
        %664 = vmatprep.subr.mxu0 0.0
        %665 = vmatpush1.msra.mxu0 0.0
        %666 = vmatprep.subr.mxu0 0.0
        %667 = vmatpush1.msra.mxu0 0.0
        %668 = vmatprep.subr.mxu0 0.0
        %669 = vmatpush1.msra.mxu0 0.0
        %670 = vmatprep.subr.mxu0 0.0
        %671 = vmatpush1.msra.mxu0 0.0
        %672 = vmatprep.subr.mxu0 0.0
        %673 = vmatpush1.msra.mxu0 0.0
        %674 = vmatprep.subr.mxu0 0.0
        %675 = vmatpush1.msra.mxu0 0.0
        %676 = vmatprep.subr.mxu0 0.0
        %677 = vmatpush1.msra.mxu0 0.0
        %678 = vmatprep.subr.mxu0 0.0
        %679 = vmatpush1.msra.mxu0 0.0
        %680 = vmatprep.subr.mxu0 0.0
        %681 = vmatpush1.msra.mxu0 0.0
        %682 = vmatprep.subr.mxu0 0.0
        %683 = vmatpush1.msra.mxu0 0.0
        %684 = vmatprep.subr.mxu0 0.0
        %685 = vmatpush1.msra.mxu0 0.0
        %686 = vmatprep.subr.mxu0 0.0
        %687 = vmatpush1.msra.mxu0 0.0
        %688 = vmatprep.subr.mxu0 0.0
        %689 = vmatpush1.msra.mxu0 0.0
        %690 = vmatprep.subr.mxu0 0.0
        %691 = vmatpush1.msra.mxu0 0.0
        %692 = vmatprep.subr.mxu0 0.0
        %693 = vmatpush1.msra.mxu0 0.0
        %694 = vmatprep.subr.mxu0 0.0
        %695 = vmatpush1.msra.mxu0 0.0
        %696 = vmatprep.mubr.f32.mxu0 0.0
        %697 = vmatmul.mubr.f32.gmra.mrb[0].mxu0 %v605
        %v698 = vpop.f32.mrb[0].mxu0
        %v699 = vadd.f32 0.0, %v698
        %v700 = vpop.f32.mrb[0].mxu0
        %701 = vmatprep.mubr.f32.mxu0 0.0
        %702 = vmatmul.mubr.f32.gmra.mrb[0].mxu0 %v606
        %v703 = vpop.f32.mrb[0].mxu0
        %v704 = vadd.f32 0.0, %v703
        %v705 = vpop.f32.mrb[0].mxu0
        %706 = vmatprep.mubr.f32.mxu0 0.0
        %707 = vmatmul.mubr.f32.gmra.mrb[0].mxu0 %v607
        %v708 = vpop.f32.mrb[0].mxu0
        %v709 = vadd.f32 0.0, %v708
        %v710 = vpop.f32.mrb[0].mxu0
        %711 = vmatprep.mubr.f32.mxu0 0.0
        %712 = vmatmul.mubr.f32.gmra.mrb[0].mxu0 %v608
        %v713 = vpop.f32.mrb[0].mxu0
        %v714 = vadd.f32 0.0, %v713
        %v715 = vpop.f32.mrb[0].mxu0
        %716 = vmatprep.mubr.f32.mxu0 0.0
        %717 = vmatmul.mubr.f32.gmra.mrb[0].mxu0 %v609
        %v718 = vpop.f32.mrb[0].mxu0
        %v719 = vadd.f32 0.0, %v718
        %v720 = vpop.f32.mrb[0].mxu0
        %721 = vmatprep.mubr.f32.mxu0 0.0
        %722 = vmatmul.mubr.f32.gmra.mrb[0].mxu0 %v610
        %v723 = vpop.f32.mrb[0].mxu0
        %v724 = vadd.f32 0.0, %v723
        %v725 = vpop.f32.mrb[0].mxu0
        %726 = vmatprep.mubr.f32.mxu0 0.0
        %727 = vmatmul.mubr.f32.gmra.mrb[0].mxu0 %v611
        %v728 = vpop.f32.mrb[0].mxu0
        %v729 = vadd.f32 0.0, %v728
        %v730 = vpop.f32.mrb[0].mxu0
        %731 = vmatprep.mubr.f32.mxu0 0.0
        %732 = vmatmul.mubr.f32.gmra.mrb[0].mxu0 %v612
        %v733 = vpop.f32.mrb[0].mxu0
        %v734 = vadd.f32 0.0, %v733
        %v735 = vpop.f32.mrb[0].mxu0
        %736 = vmatprep.mubr.f32.mxu0 0.0
        %737 = vmatmul.mubr.f32.gmra.mrb[0].mxu0 %v613
        %v738 = vpop.f32.mrb[0].mxu0
        %v739 = vadd.f32 0.0, %v738
        %v740 = vpop.f32.mrb[0].mxu0
        %741 = vmatprep.mubr.f32.mxu0 0.0
        %742 = vmatmul.mubr.f32.gmra.mrb[0].mxu0 %v614
        %v743 = vpop.f32.mrb[0].mxu0
        %v744 = vadd.f32 0.0, %v743
        %v745 = vpop.f32.mrb[0].mxu0
        %746 = vdwg.mxu0
        %v747 = vadd.f32 %v547, %v699
        %v748 = vadd.f32 %v552, %v704
        %v749 = vadd.f32 %v557, %v709
        %v750 = vadd.f32 %v562, %v714
        %v751 = vadd.f32 %v567, %v719
        %v752 = vadd.f32 %v572, %v724
        %v753 = vadd.f32 %v577, %v729
        %v754 = vadd.f32 %v582, %v734
        %v755 = vadd.f32 %v587, %v739
        %v756 = vadd.f32 %v592, %v744
        %v757 = vld [vmem:[%s228 + $0x18] sm:$0xff]
        %v758 = vld [vmem:[%s228 + $0x98] sm:$0xff]
        %v759 = vld [vmem:[%s228 + $0x118] sm:$0xff]
        %v760 = vld [vmem:[%s228 + $0x198] sm:$0xff]
        %v761 = vld [vmem:[%s228 + $0x218] sm:$0xff]
        %v762 = vld [vmem:[%s228 + $0x298] sm:$0xff]
        %v763 = vld [vmem:[%s228 + $0x318] sm:$0xff]
        %v764 = vld [vmem:[%s228 + $0x398] sm:$0xff]
        %v765 = vld [vmem:[%s228 + $0x418] sm:$0xff]
        %v766 = vld [vmem:[%s228 + $0x498] sm:$0xff]
        %v767 = vmul.f32 %v757, %v282
        %v768 = vmul.f32 %v758, %v283
        %v769 = vmul.f32 %v759, %v284
        %v770 = vmul.f32 %v760, %v285
        %v771 = vmul.f32 %v761, %v286
        %v772 = vmul.f32 %v762, %v287
        %v773 = vmul.f32 %v763, %v288
        %v774 = vmul.f32 %v764, %v289
        %v775 = vmul.f32 %v765, %v290
        %v776 = vmul.f32 %v766, %v291
        %s777 = scalar_lea.vmem %s2, 384
        %v778 = vld [vmem:[%s777] sm:$0xff]
        %v779 = vld [vmem:[%s777 + $0x8] sm:$0xff]
        %v780 = vld [vmem:[%s777 + $0x10] sm:$0xff]
        %v781 = vld [vmem:[%s777 + $0x18] sm:$0xff]
        %v782 = vld [vmem:[%s777 + $0x20] sm:$0xff]
        %v783 = vld [vmem:[%s777 + $0x28] sm:$0xff]
        %v784 = vld [vmem:[%s777 + $0x30] sm:$0xff]
        %v785 = vld [vmem:[%s777 + $0x38] sm:$0xff]
        %v786 = vld [vmem:[%s777 + $0x40] sm:$0xff]
        %v787 = vld [vmem:[%s777 + $0x48] sm:$0xff]
        %v788 = vld [vmem:[%s777 + $0x50] sm:$0xff]
        %v789 = vld [vmem:[%s777 + $0x58] sm:$0xff]
        %v790 = vld [vmem:[%s777 + $0x60] sm:$0xff]
        %v791 = vld [vmem:[%s777 + $0x68] sm:$0xff]
        %v792 = vld [vmem:[%s777 + $0x70] sm:$0xff]
        %v793 = vld [vmem:[%s777 + $0x78] sm:$0xff]
        %794 = vmatprep.subr.mxu0 0.0
        %795 = vmatpush1.msra.mxu0 %v778
        %796 = vmatprep.subr.mxu0 0.0
        %797 = vmatpush1.msra.mxu0 %v779
        %798 = vmatprep.subr.mxu0 0.0
        %799 = vmatpush1.msra.mxu0 %v780
        %800 = vmatprep.subr.mxu0 0.0
        %801 = vmatpush1.msra.mxu0 %v781
        %802 = vmatprep.subr.mxu0 0.0
        %803 = vmatpush1.msra.mxu0 %v782
        %804 = vmatprep.subr.mxu0 0.0
        %805 = vmatpush1.msra.mxu0 %v783
        %806 = vmatprep.subr.mxu0 0.0
        %807 = vmatpush1.msra.mxu0 %v784
        %808 = vmatprep.subr.mxu0 0.0
        %809 = vmatpush1.msra.mxu0 %v785
        %810 = vmatprep.subr.mxu0 0.0
        %811 = vmatpush1.msra.mxu0 %v786
        %812 = vmatprep.subr.mxu0 0.0
        %813 = vmatpush1.msra.mxu0 %v787
        %814 = vmatprep.subr.mxu0 0.0
        %815 = vmatpush1.msra.mxu0 %v788
        %816 = vmatprep.subr.mxu0 0.0
        %817 = vmatpush1.msra.mxu0 %v789
        %818 = vmatprep.subr.mxu0 0.0
        %819 = vmatpush1.msra.mxu0 %v790
        %820 = vmatprep.subr.mxu0 0.0
        %821 = vmatpush1.msra.mxu0 %v791
        %822 = vmatprep.subr.mxu0 0.0
        %823 = vmatpush1.msra.mxu0 %v792
        %824 = vmatprep.subr.mxu0 0.0
        %825 = vmatpush1.msra.mxu0 %v793
        %826 = vmatprep.subr.mxu0 0.0
        %827 = vmatpush1.msra.mxu0 0.0
        %828 = vmatprep.subr.mxu0 0.0
        %829 = vmatpush1.msra.mxu0 0.0
        %830 = vmatprep.subr.mxu0 0.0
        %831 = vmatpush1.msra.mxu0 0.0
        %832 = vmatprep.subr.mxu0 0.0
        %833 = vmatpush1.msra.mxu0 0.0
        %834 = vmatprep.subr.mxu0 0.0
        %835 = vmatpush1.msra.mxu0 0.0
        %836 = vmatprep.subr.mxu0 0.0
        %837 = vmatpush1.msra.mxu0 0.0
        %838 = vmatprep.subr.mxu0 0.0
        %839 = vmatpush1.msra.mxu0 0.0
        %840 = vmatprep.subr.mxu0 0.0
        %841 = vmatpush1.msra.mxu0 0.0
        %842 = vmatprep.subr.mxu0 0.0
        %843 = vmatpush1.msra.mxu0 0.0
        %844 = vmatprep.subr.mxu0 0.0
        %845 = vmatpush1.msra.mxu0 0.0
        %846 = vmatprep.subr.mxu0 0.0
        %847 = vmatpush1.msra.mxu0 0.0
        %848 = vmatprep.subr.mxu0 0.0
        %849 = vmatpush1.msra.mxu0 0.0
        %850 = vmatprep.subr.mxu0 0.0
        %851 = vmatpush1.msra.mxu0 0.0
        %852 = vmatprep.subr.mxu0 0.0
        %853 = vmatpush1.msra.mxu0 0.0
        %854 = vmatprep.subr.mxu0 0.0
        %855 = vmatpush1.msra.mxu0 0.0
        %856 = vmatprep.subr.mxu0 0.0
        %857 = vmatpush1.msra.mxu0 0.0
        %858 = vmatprep.mubr.f32.mxu0 0.0
        %859 = vmatmul.mubr.f32.gmra.mrb[0].mxu0 %v767
        %v860 = vpop.f32.mrb[0].mxu0
        %v861 = vadd.f32 0.0, %v860
        %v862 = vpop.f32.mrb[0].mxu0
        %863 = vmatprep.mubr.f32.mxu0 0.0
        %864 = vmatmul.mubr.f32.gmra.mrb[0].mxu0 %v768
        %v865 = vpop.f32.mrb[0].mxu0
        %v866 = vadd.f32 0.0, %v865
        %v867 = vpop.f32.mrb[0].mxu0
        %868 = vmatprep.mubr.f32.mxu0 0.0
        %869 = vmatmul.mubr.f32.gmra.mrb[0].mxu0 %v769
        %v870 = vpop.f32.mrb[0].mxu0
        %v871 = vadd.f32 0.0, %v870
        %v872 = vpop.f32.mrb[0].mxu0
        %873 = vmatprep.mubr.f32.mxu0 0.0
        %874 = vmatmul.mubr.f32.gmra.mrb[0].mxu0 %v770
        %v875 = vpop.f32.mrb[0].mxu0
        %v876 = vadd.f32 0.0, %v875
        %v877 = vpop.f32.mrb[0].mxu0
        %878 = vmatprep.mubr.f32.mxu0 0.0
        %879 = vmatmul.mubr.f32.gmra.mrb[0].mxu0 %v771
        %v880 = vpop.f32.mrb[0].mxu0
        %v881 = vadd.f32 0.0, %v880
        %v882 = vpop.f32.mrb[0].mxu0
        %883 = vmatprep.mubr.f32.mxu0 0.0
        %884 = vmatmul.mubr.f32.gmra.mrb[0].mxu0 %v772
        %v885 = vpop.f32.mrb[0].mxu0
        %v886 = vadd.f32 0.0, %v885
        %v887 = vpop.f32.mrb[0].mxu0
        %888 = vmatprep.mubr.f32.mxu0 0.0
        %889 = vmatmul.mubr.f32.gmra.mrb[0].mxu0 %v773
        %v890 = vpop.f32.mrb[0].mxu0
        %v891 = vadd.f32 0.0, %v890
        %v892 = vpop.f32.mrb[0].mxu0
        %893 = vmatprep.mubr.f32.mxu0 0.0
        %894 = vmatmul.mubr.f32.gmra.mrb[0].mxu0 %v774
        %v895 = vpop.f32.mrb[0].mxu0
        %v896 = vadd.f32 0.0, %v895
        %v897 = vpop.f32.mrb[0].mxu0
        %898 = vmatprep.mubr.f32.mxu0 0.0
        %899 = vmatmul.mubr.f32.gmra.mrb[0].mxu0 %v775
        %v900 = vpop.f32.mrb[0].mxu0
        %v901 = vadd.f32 0.0, %v900
        %v902 = vpop.f32.mrb[0].mxu0
        %903 = vmatprep.mubr.f32.mxu0 0.0
        %904 = vmatmul.mubr.f32.gmra.mrb[0].mxu0 %v776
        %v905 = vpop.f32.mrb[0].mxu0
        %v906 = vadd.f32 0.0, %v905
        %v907 = vpop.f32.mrb[0].mxu0
        %908 = vdwg.mxu0
        %v909 = vadd.f32 %v747, %v861
        %v910 = vadd.f32 %v748, %v866
        %v911 = vadd.f32 %v749, %v871
        %v912 = vadd.f32 %v750, %v876
        %v913 = vadd.f32 %v751, %v881
        %v914 = vadd.f32 %v752, %v886
        %v915 = vadd.f32 %v753, %v891
        %v916 = vadd.f32 %v754, %v896
        %v917 = vadd.f32 %v755, %v901
        %v918 = vadd.f32 %v756, %v906
        %v919 = vld [vmem:[%s228 + $0x20] sm:$0xff]
        %v920 = vld [vmem:[%s228 + $0xa0] sm:$0xff]
        %v921 = vld [vmem:[%s228 + $0x120] sm:$0xff]
        %v922 = vld [vmem:[%s228 + $0x1a0] sm:$0xff]
        %v923 = vld [vmem:[%s228 + $0x220] sm:$0xff]
        %v924 = vld [vmem:[%s228 + $0x2a0] sm:$0xff]
        %v925 = vld [vmem:[%s228 + $0x320] sm:$0xff]
        %v926 = vld [vmem:[%s228 + $0x3a0] sm:$0xff]
        %v927 = vld [vmem:[%s228 + $0x420] sm:$0xff]
        %v928 = vld [vmem:[%s228 + $0x4a0] sm:$0xff]
        %v929 = vmul.f32 %v919, %v282
        %v930 = vmul.f32 %v920, %v283
        %v931 = vmul.f32 %v921, %v284
        %v932 = vmul.f32 %v922, %v285
        %v933 = vmul.f32 %v923, %v286
        %v934 = vmul.f32 %v924, %v287
        %v935 = vmul.f32 %v925, %v288
        %v936 = vmul.f32 %v926, %v289
        %v937 = vmul.f32 %v927, %v290
        %v938 = vmul.f32 %v928, %v291
        %s939 = scalar_lea.vmem %s2, 512
        %v940 = vld [vmem:[%s939] sm:$0xff]
        %v941 = vld [vmem:[%s939 + $0x8] sm:$0xff]
        %v942 = vld [vmem:[%s939 + $0x10] sm:$0xff]
        %v943 = vld [vmem:[%s939 + $0x18] sm:$0xff]
        %v944 = vld [vmem:[%s939 + $0x20] sm:$0xff]
        %v945 = vld [vmem:[%s939 + $0x28] sm:$0xff]
        %v946 = vld [vmem:[%s939 + $0x30] sm:$0xff]
        %v947 = vld [vmem:[%s939 + $0x38] sm:$0xff]
        %v948 = vld [vmem:[%s939 + $0x40] sm:$0xff]
        %v949 = vld [vmem:[%s939 + $0x48] sm:$0xff]
        %v950 = vld [vmem:[%s939 + $0x50] sm:$0xff]
        %v951 = vld [vmem:[%s939 + $0x58] sm:$0xff]
        %v952 = vld [vmem:[%s939 + $0x60] sm:$0xff]
        %v953 = vld [vmem:[%s939 + $0x68] sm:$0xff]
        %v954 = vld [vmem:[%s939 + $0x70] sm:$0xff]
        %v955 = vld [vmem:[%s939 + $0x78] sm:$0xff]
        %956 = vmatprep.subr.mxu0 0.0
        %957 = vmatpush1.msra.mxu0 %v940
        %958 = vmatprep.subr.mxu0 0.0
        %959 = vmatpush1.msra.mxu0 %v941
        %960 = vmatprep.subr.mxu0 0.0
        %961 = vmatpush1.msra.mxu0 %v942
        %962 = vmatprep.subr.mxu0 0.0
        %963 = vmatpush1.msra.mxu0 %v943
        %964 = vmatprep.subr.mxu0 0.0
        %965 = vmatpush1.msra.mxu0 %v944
        %966 = vmatprep.subr.mxu0 0.0
        %967 = vmatpush1.msra.mxu0 %v945
        %968 = vmatprep.subr.mxu0 0.0
        %969 = vmatpush1.msra.mxu0 %v946
        %970 = vmatprep.subr.mxu0 0.0
        %971 = vmatpush1.msra.mxu0 %v947
        %972 = vmatprep.subr.mxu0 0.0
        %973 = vmatpush1.msra.mxu0 %v948
        %974 = vmatprep.subr.mxu0 0.0
        %975 = vmatpush1.msra.mxu0 %v949
        %976 = vmatprep.subr.mxu0 0.0
        %977 = vmatpush1.msra.mxu0 %v950
        %978 = vmatprep.subr.mxu0 0.0
        %979 = vmatpush1.msra.mxu0 %v951
        %980 = vmatprep.subr.mxu0 0.0
        %981 = vmatpush1.msra.mxu0 %v952
        %982 = vmatprep.subr.mxu0 0.0
        %983 = vmatpush1.msra.mxu0 %v953
        %984 = vmatprep.subr.mxu0 0.0
        %985 = vmatpush1.msra.mxu0 %v954
        %986 = vmatprep.subr.mxu0 0.0
        %987 = vmatpush1.msra.mxu0 %v955
        %988 = vmatprep.subr.mxu0 0.0
        %989 = vmatpush1.msra.mxu0 0.0
        %990 = vmatprep.subr.mxu0 0.0
        %991 = vmatpush1.msra.mxu0 0.0
        %992 = vmatprep.subr.mxu0 0.0
        %993 = vmatpush1.msra.mxu0 0.0
        %994 = vmatprep.subr.mxu0 0.0
        %995 = vmatpush1.msra.mxu0 0.0
        %996 = vmatprep.subr.mxu0 0.0
        %997 = vmatpush1.msra.mxu0 0.0
        %998 = vmatprep.subr.mxu0 0.0
        %999 = vmatpush1.msra.mxu0 0.0
        %1000 = vmatprep.subr.mxu0 0.0
        %1001 = vmatpush1.msra.mxu0 0.0
        %1002 = vmatprep.subr.mxu0 0.0
        %1003 = vmatpush1.msra.mxu0 0.0
        %1004 = vmatprep.subr.mxu0 0.0
        %1005 = vmatpush1.msra.mxu0 0.0
        %1006 = vmatprep.subr.mxu0 0.0
        %1007 = vmatpush1.msra.mxu0 0.0
        %1008 = vmatprep.subr.mxu0 0.0
        %1009 = vmatpush1.msra.mxu0 0.0
        %1010 = vmatprep.subr.mxu0 0.0
        %1011 = vmatpush1.msra.mxu0 0.0
        %1012 = vmatprep.subr.mxu0 0.0
        %1013 = vmatpush1.msra.mxu0 0.0
        %1014 = vmatprep.subr.mxu0 0.0
        %1015 = vmatpush1.msra.mxu0 0.0
        %1016 = vmatprep.subr.mxu0 0.0
        %1017 = vmatpush1.msra.mxu0 0.0
        %1018 = vmatprep.subr.mxu0 0.0
        %1019 = vmatpush1.msra.mxu0 0.0
        %1020 = vmatprep.mubr.f32.mxu0 0.0
        %1021 = vmatmul.mubr.f32.gmra.mrb[0].mxu0 %v929
        %v1022 = vpop.f32.mrb[0].mxu0
        %v1023 = vadd.f32 0.0, %v1022
        %v1024 = vpop.f32.mrb[0].mxu0
        %1025 = vmatprep.mubr.f32.mxu0 0.0
        %1026 = vmatmul.mubr.f32.gmra.mrb[0].mxu0 %v930
        %v1027 = vpop.f32.mrb[0].mxu0
        %v1028 = vadd.f32 0.0, %v1027
        %v1029 = vpop.f32.mrb[0].mxu0
        %1030 = vmatprep.mubr.f32.mxu0 0.0
        %1031 = vmatmul.mubr.f32.gmra.mrb[0].mxu0 %v931
        %v1032 = vpop.f32.mrb[0].mxu0
        %v1033 = vadd.f32 0.0, %v1032
        %v1034 = vpop.f32.mrb[0].mxu0
        %1035 = vmatprep.mubr.f32.mxu0 0.0
        %1036 = vmatmul.mubr.f32.gmra.mrb[0].mxu0 %v932
        %v1037 = vpop.f32.mrb[0].mxu0
        %v1038 = vadd.f32 0.0, %v1037
        %v1039 = vpop.f32.mrb[0].mxu0
        %1040 = vmatprep.mubr.f32.mxu0 0.0
        %1041 = vmatmul.mubr.f32.gmra.mrb[0].mxu0 %v933
        %v1042 = vpop.f32.mrb[0].mxu0
        %v1043 = vadd.f32 0.0, %v1042
        %v1044 = vpop.f32.mrb[0].mxu0
        %1045 = vmatprep.mubr.f32.mxu0 0.0
        %1046 = vmatmul.mubr.f32.gmra.mrb[0].mxu0 %v934
        %v1047 = vpop.f32.mrb[0].mxu0
        %v1048 = vadd.f32 0.0, %v1047
        %v1049 = vpop.f32.mrb[0].mxu0
        %1050 = vmatprep.mubr.f32.mxu0 0.0
        %1051 = vmatmul.mubr.f32.gmra.mrb[0].mxu0 %v935
        %v1052 = vpop.f32.mrb[0].mxu0
        %v1053 = vadd.f32 0.0, %v1052
        %v1054 = vpop.f32.mrb[0].mxu0
        %1055 = vmatprep.mubr.f32.mxu0 0.0
        %1056 = vmatmul.mubr.f32.gmra.mrb[0].mxu0 %v936
        %v1057 = vpop.f32.mrb[0].mxu0
        %v1058 = vadd.f32 0.0, %v1057
        %v1059 = vpop.f32.mrb[0].mxu0
        %1060 = vmatprep.mubr.f32.mxu0 0.0
        %1061 = vmatmul.mubr.f32.gmra.mrb[0].mxu0 %v937
        %v1062 = vpop.f32.mrb[0].mxu0
        %v1063 = vadd.f32 0.0, %v1062
        %v1064 = vpop.f32.mrb[0].mxu0
        %1065 = vmatprep.mubr.f32.mxu0 0.0
        %1066 = vmatmul.mubr.f32.gmra.mrb[0].mxu0 %v938
        %v1067 = vpop.f32.mrb[0].mxu0
        %v1068 = vadd.f32 0.0, %v1067
        %v1069 = vpop.f32.mrb[0].mxu0
        %1070 = vdwg.mxu0
        %v1071 = vadd.f32 %v909, %v1023
        %v1072 = vadd.f32 %v910, %v1028
        %v1073 = vadd.f32 %v911, %v1033
        %v1074 = vadd.f32 %v912, %v1038
        %v1075 = vadd.f32 %v913, %v1043
        %v1076 = vadd.f32 %v914, %v1048
        %v1077 = vadd.f32 %v915, %v1053
        %v1078 = vadd.f32 %v916, %v1058
        %v1079 = vadd.f32 %v917, %v1063
        %v1080 = vadd.f32 %v918, %v1068
        %v1081 = vld [vmem:[%s228 + $0x28] sm:$0xff]
        %v1082 = vld [vmem:[%s228 + $0xa8] sm:$0xff]
        %v1083 = vld [vmem:[%s228 + $0x128] sm:$0xff]
        %v1084 = vld [vmem:[%s228 + $0x1a8] sm:$0xff]
        %v1085 = vld [vmem:[%s228 + $0x228] sm:$0xff]
        %v1086 = vld [vmem:[%s228 + $0x2a8] sm:$0xff]
        %v1087 = vld [vmem:[%s228 + $0x328] sm:$0xff]
        %v1088 = vld [vmem:[%s228 + $0x3a8] sm:$0xff]
        %v1089 = vld [vmem:[%s228 + $0x428] sm:$0xff]
        %v1090 = vld [vmem:[%s228 + $0x4a8] sm:$0xff]
        %v1091 = vmul.f32 %v1081, %v282
        %v1092 = vmul.f32 %v1082, %v283
        %v1093 = vmul.f32 %v1083, %v284
        %v1094 = vmul.f32 %v1084, %v285
        %v1095 = vmul.f32 %v1085, %v286
        %v1096 = vmul.f32 %v1086, %v287
        %v1097 = vmul.f32 %v1087, %v288
        %v1098 = vmul.f32 %v1088, %v289
        %v1099 = vmul.f32 %v1089, %v290
        %v1100 = vmul.f32 %v1090, %v291
        %s1101 = scalar_lea.vmem %s2, 640
        %v1102 = vld [vmem:[%s1101] sm:$0xff]
        %v1103 = vld [vmem:[%s1101 + $0x8] sm:$0xff]
        %v1104 = vld [vmem:[%s1101 + $0x10] sm:$0xff]
        %v1105 = vld [vmem:[%s1101 + $0x18] sm:$0xff]
        %v1106 = vld [vmem:[%s1101 + $0x20] sm:$0xff]
        %v1107 = vld [vmem:[%s1101 + $0x28] sm:$0xff]
        %v1108 = vld [vmem:[%s1101 + $0x30] sm:$0xff]
        %v1109 = vld [vmem:[%s1101 + $0x38] sm:$0xff]
        %v1110 = vld [vmem:[%s1101 + $0x40] sm:$0xff]
        %v1111 = vld [vmem:[%s1101 + $0x48] sm:$0xff]
        %v1112 = vld [vmem:[%s1101 + $0x50] sm:$0xff]
        %v1113 = vld [vmem:[%s1101 + $0x58] sm:$0xff]
        %v1114 = vld [vmem:[%s1101 + $0x60] sm:$0xff]
        %v1115 = vld [vmem:[%s1101 + $0x68] sm:$0xff]
        %v1116 = vld [vmem:[%s1101 + $0x70] sm:$0xff]
        %v1117 = vld [vmem:[%s1101 + $0x78] sm:$0xff]
        %1118 = vmatprep.subr.mxu0 0.0
        %1119 = vmatpush1.msra.mxu0 %v1102
        %1120 = vmatprep.subr.mxu0 0.0
        %1121 = vmatpush1.msra.mxu0 %v1103
        %1122 = vmatprep.subr.mxu0 0.0
        %1123 = vmatpush1.msra.mxu0 %v1104
        %1124 = vmatprep.subr.mxu0 0.0
        %1125 = vmatpush1.msra.mxu0 %v1105
        %1126 = vmatprep.subr.mxu0 0.0
        %1127 = vmatpush1.msra.mxu0 %v1106
        %1128 = vmatprep.subr.mxu0 0.0
        %1129 = vmatpush1.msra.mxu0 %v1107
        %1130 = vmatprep.subr.mxu0 0.0
        %1131 = vmatpush1.msra.mxu0 %v1108
        %1132 = vmatprep.subr.mxu0 0.0
        %1133 = vmatpush1.msra.mxu0 %v1109
        %1134 = vmatprep.subr.mxu0 0.0
        %1135 = vmatpush1.msra.mxu0 %v1110
        %1136 = vmatprep.subr.mxu0 0.0
        %1137 = vmatpush1.msra.mxu0 %v1111
        %1138 = vmatprep.subr.mxu0 0.0
        %1139 = vmatpush1.msra.mxu0 %v1112
        %1140 = vmatprep.subr.mxu0 0.0
        %1141 = vmatpush1.msra.mxu0 %v1113
        %1142 = vmatprep.subr.mxu0 0.0
        %1143 = vmatpush1.msra.mxu0 %v1114
        %1144 = vmatprep.subr.mxu0 0.0
        %1145 = vmatpush1.msra.mxu0 %v1115
        %1146 = vmatprep.subr.mxu0 0.0
        %1147 = vmatpush1.msra.mxu0 %v1116
        %1148 = vmatprep.subr.mxu0 0.0
        %1149 = vmatpush1.msra.mxu0 %v1117
        %1150 = vmatprep.subr.mxu0 0.0
        %1151 = vmatpush1.msra.mxu0 0.0
        %1152 = vmatprep.subr.mxu0 0.0
        %1153 = vmatpush1.msra.mxu0 0.0
        %1154 = vmatprep.subr.mxu0 0.0
        %1155 = vmatpush1.msra.mxu0 0.0
        %1156 = vmatprep.subr.mxu0 0.0
        %1157 = vmatpush1.msra.mxu0 0.0
        %1158 = vmatprep.subr.mxu0 0.0
        %1159 = vmatpush1.msra.mxu0 0.0
        %1160 = vmatprep.subr.mxu0 0.0
        %1161 = vmatpush1.msra.mxu0 0.0
        %1162 = vmatprep.subr.mxu0 0.0
        %1163 = vmatpush1.msra.mxu0 0.0
        %1164 = vmatprep.subr.mxu0 0.0
        %1165 = vmatpush1.msra.mxu0 0.0
        %1166 = vmatprep.subr.mxu0 0.0
        %1167 = vmatpush1.msra.mxu0 0.0
        %1168 = vmatprep.subr.mxu0 0.0
        %1169 = vmatpush1.msra.mxu0 0.0
        %1170 = vmatprep.subr.mxu0 0.0
        %1171 = vmatpush1.msra.mxu0 0.0
        %1172 = vmatprep.subr.mxu0 0.0
        %1173 = vmatpush1.msra.mxu0 0.0
        %1174 = vmatprep.subr.mxu0 0.0
        %1175 = vmatpush1.msra.mxu0 0.0
        %1176 = vmatprep.subr.mxu0 0.0
        %1177 = vmatpush1.msra.mxu0 0.0
        %1178 = vmatprep.subr.mxu0 0.0
        %1179 = vmatpush1.msra.mxu0 0.0
        %1180 = vmatprep.subr.mxu0 0.0
        %1181 = vmatpush1.msra.mxu0 0.0
        %1182 = vmatprep.mubr.f32.mxu0 0.0
        %1183 = vmatmul.mubr.f32.gmra.mrb[0].mxu0 %v1091
        %v1184 = vpop.f32.mrb[0].mxu0
        %v1185 = vadd.f32 0.0, %v1184
        %v1186 = vpop.f32.mrb[0].mxu0
        %1187 = vmatprep.mubr.f32.mxu0 0.0
        %1188 = vmatmul.mubr.f32.gmra.mrb[0].mxu0 %v1092
        %v1189 = vpop.f32.mrb[0].mxu0
        %v1190 = vadd.f32 0.0, %v1189
        %v1191 = vpop.f32.mrb[0].mxu0
        %1192 = vmatprep.mubr.f32.mxu0 0.0
        %1193 = vmatmul.mubr.f32.gmra.mrb[0].mxu0 %v1093
        %v1194 = vpop.f32.mrb[0].mxu0
        %v1195 = vadd.f32 0.0, %v1194
        %v1196 = vpop.f32.mrb[0].mxu0
        %1197 = vmatprep.mubr.f32.mxu0 0.0
        %1198 = vmatmul.mubr.f32.gmra.mrb[0].mxu0 %v1094
        %v1199 = vpop.f32.mrb[0].mxu0
        %v1200 = vadd.f32 0.0, %v1199
        %v1201 = vpop.f32.mrb[0].mxu0
        %1202 = vmatprep.mubr.f32.mxu0 0.0
        %1203 = vmatmul.mubr.f32.gmra.mrb[0].mxu0 %v1095
        %v1204 = vpop.f32.mrb[0].mxu0
        %v1205 = vadd.f32 0.0, %v1204
        %v1206 = vpop.f32.mrb[0].mxu0
        %1207 = vmatprep.mubr.f32.mxu0 0.0
        %1208 = vmatmul.mubr.f32.gmra.mrb[0].mxu0 %v1096
        %v1209 = vpop.f32.mrb[0].mxu0
        %v1210 = vadd.f32 0.0, %v1209
        %v1211 = vpop.f32.mrb[0].mxu0
        %1212 = vmatprep.mubr.f32.mxu0 0.0
        %1213 = vmatmul.mubr.f32.gmra.mrb[0].mxu0 %v1097
        %v1214 = vpop.f32.mrb[0].mxu0
        %v1215 = vadd.f32 0.0, %v1214
        %v1216 = vpop.f32.mrb[0].mxu0
        %1217 = vmatprep.mubr.f32.mxu0 0.0
        %1218 = vmatmul.mubr.f32.gmra.mrb[0].mxu0 %v1098
        %v1219 = vpop.f32.mrb[0].mxu0
        %v1220 = vadd.f32 0.0, %v1219
        %v1221 = vpop.f32.mrb[0].mxu0
        %1222 = vmatprep.mubr.f32.mxu0 0.0
        %1223 = vmatmul.mubr.f32.gmra.mrb[0].mxu0 %v1099
        %v1224 = vpop.f32.mrb[0].mxu0
        %v1225 = vadd.f32 0.0, %v1224
        %v1226 = vpop.f32.mrb[0].mxu0
        %1227 = vmatprep.mubr.f32.mxu0 0.0
        %1228 = vmatmul.mubr.f32.gmra.mrb[0].mxu0 %v1100
        %v1229 = vpop.f32.mrb[0].mxu0
        %v1230 = vadd.f32 0.0, %v1229
        %v1231 = vpop.f32.mrb[0].mxu0
        %1232 = vdwg.mxu0
        %v1233 = vadd.f32 %v1071, %v1185
        %v1234 = vadd.f32 %v1072, %v1190
        %v1235 = vadd.f32 %v1073, %v1195
        %v1236 = vadd.f32 %v1074, %v1200
        %v1237 = vadd.f32 %v1075, %v1205
        %v1238 = vadd.f32 %v1076, %v1210
        %v1239 = vadd.f32 %v1077, %v1215
        %v1240 = vadd.f32 %v1078, %v1220
        %v1241 = vadd.f32 %v1079, %v1225
        %v1242 = vadd.f32 %v1080, %v1230
        %v1243 = vld [vmem:[%s228 + $0x30] sm:$0xff]
        %v1244 = vld [vmem:[%s228 + $0xb0] sm:$0xff]
        %v1245 = vld [vmem:[%s228 + $0x130] sm:$0xff]
        %v1246 = vld [vmem:[%s228 + $0x1b0] sm:$0xff]
        %v1247 = vld [vmem:[%s228 + $0x230] sm:$0xff]
        %v1248 = vld [vmem:[%s228 + $0x2b0] sm:$0xff]
        %v1249 = vld [vmem:[%s228 + $0x330] sm:$0xff]
        %v1250 = vld [vmem:[%s228 + $0x3b0] sm:$0xff]
        %v1251 = vld [vmem:[%s228 + $0x430] sm:$0xff]
        %v1252 = vld [vmem:[%s228 + $0x4b0] sm:$0xff]
        %v1253 = vmul.f32 %v1243, %v282
        %v1254 = vmul.f32 %v1244, %v283
        %v1255 = vmul.f32 %v1245, %v284
        %v1256 = vmul.f32 %v1246, %v285
        %v1257 = vmul.f32 %v1247, %v286
        %v1258 = vmul.f32 %v1248, %v287
        %v1259 = vmul.f32 %v1249, %v288
        %v1260 = vmul.f32 %v1250, %v289
        %v1261 = vmul.f32 %v1251, %v290
        %v1262 = vmul.f32 %v1252, %v291
        %s1263 = scalar_lea.vmem %s2, 768
        %v1264 = vld [vmem:[%s1263] sm:$0xff]
        %v1265 = vld [vmem:[%s1263 + $0x8] sm:$0xff]
        %v1266 = vld [vmem:[%s1263 + $0x10] sm:$0xff]
        %v1267 = vld [vmem:[%s1263 + $0x18] sm:$0xff]
        %v1268 = vld [vmem:[%s1263 + $0x20] sm:$0xff]
        %v1269 = vld [vmem:[%s1263 + $0x28] sm:$0xff]
        %v1270 = vld [vmem:[%s1263 + $0x30] sm:$0xff]
        %v1271 = vld [vmem:[%s1263 + $0x38] sm:$0xff]
        %v1272 = vld [vmem:[%s1263 + $0x40] sm:$0xff]
        %v1273 = vld [vmem:[%s1263 + $0x48] sm:$0xff]
        %v1274 = vld [vmem:[%s1263 + $0x50] sm:$0xff]
        %v1275 = vld [vmem:[%s1263 + $0x58] sm:$0xff]
        %v1276 = vld [vmem:[%s1263 + $0x60] sm:$0xff]
        %v1277 = vld [vmem:[%s1263 + $0x68] sm:$0xff]
        %v1278 = vld [vmem:[%s1263 + $0x70] sm:$0xff]
        %v1279 = vld [vmem:[%s1263 + $0x78] sm:$0xff]
        %1280 = vmatprep.subr.mxu0 0.0
        %1281 = vmatpush1.msra.mxu0 %v1264
        %1282 = vmatprep.subr.mxu0 0.0
        %1283 = vmatpush1.msra.mxu0 %v1265
        %1284 = vmatprep.subr.mxu0 0.0
        %1285 = vmatpush1.msra.mxu0 %v1266
        %1286 = vmatprep.subr.mxu0 0.0
        %1287 = vmatpush1.msra.mxu0 %v1267
        %1288 = vmatprep.subr.mxu0 0.0
        %1289 = vmatpush1.msra.mxu0 %v1268
        %1290 = vmatprep.subr.mxu0 0.0
        %1291 = vmatpush1.msra.mxu0 %v1269
        %1292 = vmatprep.subr.mxu0 0.0
        %1293 = vmatpush1.msra.mxu0 %v1270
        %1294 = vmatprep.subr.mxu0 0.0
        %1295 = vmatpush1.msra.mxu0 %v1271
        %1296 = vmatprep.subr.mxu0 0.0
        %1297 = vmatpush1.msra.mxu0 %v1272
        %1298 = vmatprep.subr.mxu0 0.0
        %1299 = vmatpush1.msra.mxu0 %v1273
        %1300 = vmatprep.subr.mxu0 0.0
        %1301 = vmatpush1.msra.mxu0 %v1274
        %1302 = vmatprep.subr.mxu0 0.0
        %1303 = vmatpush1.msra.mxu0 %v1275
        %1304 = vmatprep.subr.mxu0 0.0
        %1305 = vmatpush1.msra.mxu0 %v1276
        %1306 = vmatprep.subr.mxu0 0.0
        %1307 = vmatpush1.msra.mxu0 %v1277
        %1308 = vmatprep.subr.mxu0 0.0
        %1309 = vmatpush1.msra.mxu0 %v1278
        %1310 = vmatprep.subr.mxu0 0.0
        %1311 = vmatpush1.msra.mxu0 %v1279
        %1312 = vmatprep.subr.mxu0 0.0
        %1313 = vmatpush1.msra.mxu0 0.0
        %1314 = vmatprep.subr.mxu0 0.0
        %1315 = vmatpush1.msra.mxu0 0.0
        %1316 = vmatprep.subr.mxu0 0.0
        %1317 = vmatpush1.msra.mxu0 0.0
        %1318 = vmatprep.subr.mxu0 0.0
        %1319 = vmatpush1.msra.mxu0 0.0
        %1320 = vmatprep.subr.mxu0 0.0
        %1321 = vmatpush1.msra.mxu0 0.0
        %1322 = vmatprep.subr.mxu0 0.0
        %1323 = vmatpush1.msra.mxu0 0.0
        %1324 = vmatprep.subr.mxu0 0.0
        %1325 = vmatpush1.msra.mxu0 0.0
        %1326 = vmatprep.subr.mxu0 0.0
        %1327 = vmatpush1.msra.mxu0 0.0
        %1328 = vmatprep.subr.mxu0 0.0
        %1329 = vmatpush1.msra.mxu0 0.0
        %1330 = vmatprep.subr.mxu0 0.0
        %1331 = vmatpush1.msra.mxu0 0.0
        %1332 = vmatprep.subr.mxu0 0.0
        %1333 = vmatpush1.msra.mxu0 0.0
        %1334 = vmatprep.subr.mxu0 0.0
        %1335 = vmatpush1.msra.mxu0 0.0
        %1336 = vmatprep.subr.mxu0 0.0
        %1337 = vmatpush1.msra.mxu0 0.0
        %1338 = vmatprep.subr.mxu0 0.0
        %1339 = vmatpush1.msra.mxu0 0.0
        %1340 = vmatprep.subr.mxu0 0.0
        %1341 = vmatpush1.msra.mxu0 0.0
        %1342 = vmatprep.subr.mxu0 0.0
        %1343 = vmatpush1.msra.mxu0 0.0
        %1344 = vmatprep.mubr.f32.mxu0 0.0
        %1345 = vmatmul.mubr.f32.gmra.mrb[0].mxu0 %v1253
        %v1346 = vpop.f32.mrb[0].mxu0
        %v1347 = vadd.f32 0.0, %v1346
        %v1348 = vpop.f32.mrb[0].mxu0
        %1349 = vmatprep.mubr.f32.mxu0 0.0
        %1350 = vmatmul.mubr.f32.gmra.mrb[0].mxu0 %v1254
        %v1351 = vpop.f32.mrb[0].mxu0
        %v1352 = vadd.f32 0.0, %v1351
        %v1353 = vpop.f32.mrb[0].mxu0
        %1354 = vmatprep.mubr.f32.mxu0 0.0
        %1355 = vmatmul.mubr.f32.gmra.mrb[0].mxu0 %v1255
        %v1356 = vpop.f32.mrb[0].mxu0
        %v1357 = vadd.f32 0.0, %v1356
        %v1358 = vpop.f32.mrb[0].mxu0
        %1359 = vmatprep.mubr.f32.mxu0 0.0
        %1360 = vmatmul.mubr.f32.gmra.mrb[0].mxu0 %v1256
        %v1361 = vpop.f32.mrb[0].mxu0
        %v1362 = vadd.f32 0.0, %v1361
        %v1363 = vpop.f32.mrb[0].mxu0
        %1364 = vmatprep.mubr.f32.mxu0 0.0
        %1365 = vmatmul.mubr.f32.gmra.mrb[0].mxu0 %v1257
        %v1366 = vpop.f32.mrb[0].mxu0
        %v1367 = vadd.f32 0.0, %v1366
        %v1368 = vpop.f32.mrb[0].mxu0
        %1369 = vmatprep.mubr.f32.mxu0 0.0
        %1370 = vmatmul.mubr.f32.gmra.mrb[0].mxu0 %v1258
        %v1371 = vpop.f32.mrb[0].mxu0
        %v1372 = vadd.f32 0.0, %v1371
        %v1373 = vpop.f32.mrb[0].mxu0
        %1374 = vmatprep.mubr.f32.mxu0 0.0
        %1375 = vmatmul.mubr.f32.gmra.mrb[0].mxu0 %v1259
        %v1376 = vpop.f32.mrb[0].mxu0
        %v1377 = vadd.f32 0.0, %v1376
        %v1378 = vpop.f32.mrb[0].mxu0
        %1379 = vmatprep.mubr.f32.mxu0 0.0
        %1380 = vmatmul.mubr.f32.gmra.mrb[0].mxu0 %v1260
        %v1381 = vpop.f32.mrb[0].mxu0
        %v1382 = vadd.f32 0.0, %v1381
        %v1383 = vpop.f32.mrb[0].mxu0
        %1384 = vmatprep.mubr.f32.mxu0 0.0
        %1385 = vmatmul.mubr.f32.gmra.mrb[0].mxu0 %v1261
        %v1386 = vpop.f32.mrb[0].mxu0
        %v1387 = vadd.f32 0.0, %v1386
        %v1388 = vpop.f32.mrb[0].mxu0
        %1389 = vmatprep.mubr.f32.mxu0 0.0
        %1390 = vmatmul.mubr.f32.gmra.mrb[0].mxu0 %v1262
        %v1391 = vpop.f32.mrb[0].mxu0
        %v1392 = vadd.f32 0.0, %v1391
        %v1393 = vpop.f32.mrb[0].mxu0
        %1394 = vdwg.mxu0
        %v1395 = vadd.f32 %v1233, %v1347
        %v1396 = vadd.f32 %v1234, %v1352
        %v1397 = vadd.f32 %v1235, %v1357
        %v1398 = vadd.f32 %v1236, %v1362
        %v1399 = vadd.f32 %v1237, %v1367
        %v1400 = vadd.f32 %v1238, %v1372
        %v1401 = vadd.f32 %v1239, %v1377
        %v1402 = vadd.f32 %v1240, %v1382
        %v1403 = vadd.f32 %v1241, %v1387
        %v1404 = vadd.f32 %v1242, %v1392
        %v1405 = vld [vmem:[%s228 + $0x38] sm:$0xff]
        %v1406 = vld [vmem:[%s228 + $0xb8] sm:$0xff]
        %v1407 = vld [vmem:[%s228 + $0x138] sm:$0xff]
        %v1408 = vld [vmem:[%s228 + $0x1b8] sm:$0xff]
        %v1409 = vld [vmem:[%s228 + $0x238] sm:$0xff]
        %v1410 = vld [vmem:[%s228 + $0x2b8] sm:$0xff]
        %v1411 = vld [vmem:[%s228 + $0x338] sm:$0xff]
        %v1412 = vld [vmem:[%s228 + $0x3b8] sm:$0xff]
        %v1413 = vld [vmem:[%s228 + $0x438] sm:$0xff]
        %v1414 = vld [vmem:[%s228 + $0x4b8] sm:$0xff]
        %v1415 = vmul.f32 %v1405, %v282
        %v1416 = vmul.f32 %v1406, %v283
        %v1417 = vmul.f32 %v1407, %v284
        %v1418 = vmul.f32 %v1408, %v285
        %v1419 = vmul.f32 %v1409, %v286
        %v1420 = vmul.f32 %v1410, %v287
        %v1421 = vmul.f32 %v1411, %v288
        %v1422 = vmul.f32 %v1412, %v289
        %v1423 = vmul.f32 %v1413, %v290
        %v1424 = vmul.f32 %v1414, %v291
        %s1425 = scalar_lea.vmem %s2, 896
        %v1426 = vld [vmem:[%s1425] sm:$0xff]
        %v1427 = vld [vmem:[%s1425 + $0x8] sm:$0xff]
        %v1428 = vld [vmem:[%s1425 + $0x10] sm:$0xff]
        %v1429 = vld [vmem:[%s1425 + $0x18] sm:$0xff]
        %v1430 = vld [vmem:[%s1425 + $0x20] sm:$0xff]
        %v1431 = vld [vmem:[%s1425 + $0x28] sm:$0xff]
        %v1432 = vld [vmem:[%s1425 + $0x30] sm:$0xff]
        %v1433 = vld [vmem:[%s1425 + $0x38] sm:$0xff]
        %v1434 = vld [vmem:[%s1425 + $0x40] sm:$0xff]
        %v1435 = vld [vmem:[%s1425 + $0x48] sm:$0xff]
        %v1436 = vld [vmem:[%s1425 + $0x50] sm:$0xff]
        %v1437 = vld [vmem:[%s1425 + $0x58] sm:$0xff]
        %v1438 = vld [vmem:[%s1425 + $0x60] sm:$0xff]
        %v1439 = vld [vmem:[%s1425 + $0x68] sm:$0xff]
        %v1440 = vld [vmem:[%s1425 + $0x70] sm:$0xff]
        %v1441 = vld [vmem:[%s1425 + $0x78] sm:$0xff]
        %1442 = vmatprep.subr.mxu0 0.0
        %1443 = vmatpush1.msra.mxu0 %v1426
        %1444 = vmatprep.subr.mxu0 0.0
        %1445 = vmatpush1.msra.mxu0 %v1427
        %1446 = vmatprep.subr.mxu0 0.0
        %1447 = vmatpush1.msra.mxu0 %v1428
        %1448 = vmatprep.subr.mxu0 0.0
        %1449 = vmatpush1.msra.mxu0 %v1429
        %1450 = vmatprep.subr.mxu0 0.0
        %1451 = vmatpush1.msra.mxu0 %v1430
        %1452 = vmatprep.subr.mxu0 0.0
        %1453 = vmatpush1.msra.mxu0 %v1431
        %1454 = vmatprep.subr.mxu0 0.0
        %1455 = vmatpush1.msra.mxu0 %v1432
        %1456 = vmatprep.subr.mxu0 0.0
        %1457 = vmatpush1.msra.mxu0 %v1433
        %1458 = vmatprep.subr.mxu0 0.0
        %1459 = vmatpush1.msra.mxu0 %v1434
        %1460 = vmatprep.subr.mxu0 0.0
        %1461 = vmatpush1.msra.mxu0 %v1435
        %1462 = vmatprep.subr.mxu0 0.0
        %1463 = vmatpush1.msra.mxu0 %v1436
        %1464 = vmatprep.subr.mxu0 0.0
        %1465 = vmatpush1.msra.mxu0 %v1437
        %1466 = vmatprep.subr.mxu0 0.0
        %1467 = vmatpush1.msra.mxu0 %v1438
        %1468 = vmatprep.subr.mxu0 0.0
        %1469 = vmatpush1.msra.mxu0 %v1439
        %1470 = vmatprep.subr.mxu0 0.0
        %1471 = vmatpush1.msra.mxu0 %v1440
        %1472 = vmatprep.subr.mxu0 0.0
        %1473 = vmatpush1.msra.mxu0 %v1441
        %1474 = vmatprep.subr.mxu0 0.0
        %1475 = vmatpush1.msra.mxu0 0.0
        %1476 = vmatprep.subr.mxu0 0.0
        %1477 = vmatpush1.msra.mxu0 0.0
        %1478 = vmatprep.subr.mxu0 0.0
        %1479 = vmatpush1.msra.mxu0 0.0
        %1480 = vmatprep.subr.mxu0 0.0
        %1481 = vmatpush1.msra.mxu0 0.0
        %1482 = vmatprep.subr.mxu0 0.0
        %1483 = vmatpush1.msra.mxu0 0.0
        %1484 = vmatprep.subr.mxu0 0.0
        %1485 = vmatpush1.msra.mxu0 0.0
        %1486 = vmatprep.subr.mxu0 0.0
        %1487 = vmatpush1.msra.mxu0 0.0
        %1488 = vmatprep.subr.mxu0 0.0
        %1489 = vmatpush1.msra.mxu0 0.0
        %1490 = vmatprep.subr.mxu0 0.0
        %1491 = vmatpush1.msra.mxu0 0.0
        %1492 = vmatprep.subr.mxu0 0.0
        %1493 = vmatpush1.msra.mxu0 0.0
        %1494 = vmatprep.subr.mxu0 0.0
        %1495 = vmatpush1.msra.mxu0 0.0
        %1496 = vmatprep.subr.mxu0 0.0
        %1497 = vmatpush1.msra.mxu0 0.0
        %1498 = vmatprep.subr.mxu0 0.0
        %1499 = vmatpush1.msra.mxu0 0.0
        %1500 = vmatprep.subr.mxu0 0.0
        %1501 = vmatpush1.msra.mxu0 0.0
        %1502 = vmatprep.subr.mxu0 0.0
        %1503 = vmatpush1.msra.mxu0 0.0
        %1504 = vmatprep.subr.mxu0 0.0
        %1505 = vmatpush1.msra.mxu0 0.0
        %1506 = vmatprep.mubr.f32.mxu0 0.0
        %1507 = vmatmul.mubr.f32.gmra.mrb[0].mxu0 %v1415
        %v1508 = vpop.f32.mrb[0].mxu0
        %v1509 = vadd.f32 0.0, %v1508
        %v1510 = vpop.f32.mrb[0].mxu0
        %1511 = vmatprep.mubr.f32.mxu0 0.0
        %1512 = vmatmul.mubr.f32.gmra.mrb[0].mxu0 %v1416
        %v1513 = vpop.f32.mrb[0].mxu0
        %v1514 = vadd.f32 0.0, %v1513
        %v1515 = vpop.f32.mrb[0].mxu0
        %1516 = vmatprep.mubr.f32.mxu0 0.0
        %1517 = vmatmul.mubr.f32.gmra.mrb[0].mxu0 %v1417
        %v1518 = vpop.f32.mrb[0].mxu0
        %v1519 = vadd.f32 0.0, %v1518
        %v1520 = vpop.f32.mrb[0].mxu0
        %1521 = vmatprep.mubr.f32.mxu0 0.0
        %1522 = vmatmul.mubr.f32.gmra.mrb[0].mxu0 %v1418
        %v1523 = vpop.f32.mrb[0].mxu0
        %v1524 = vadd.f32 0.0, %v1523
        %v1525 = vpop.f32.mrb[0].mxu0
        %1526 = vmatprep.mubr.f32.mxu0 0.0
        %1527 = vmatmul.mubr.f32.gmra.mrb[0].mxu0 %v1419
        %v1528 = vpop.f32.mrb[0].mxu0
        %v1529 = vadd.f32 0.0, %v1528
        %v1530 = vpop.f32.mrb[0].mxu0
        %1531 = vmatprep.mubr.f32.mxu0 0.0
        %1532 = vmatmul.mubr.f32.gmra.mrb[0].mxu0 %v1420
        %v1533 = vpop.f32.mrb[0].mxu0
        %v1534 = vadd.f32 0.0, %v1533
        %v1535 = vpop.f32.mrb[0].mxu0
        %1536 = vmatprep.mubr.f32.mxu0 0.0
        %1537 = vmatmul.mubr.f32.gmra.mrb[0].mxu0 %v1421
        %v1538 = vpop.f32.mrb[0].mxu0
        %v1539 = vadd.f32 0.0, %v1538
        %v1540 = vpop.f32.mrb[0].mxu0
        %1541 = vmatprep.mubr.f32.mxu0 0.0
        %1542 = vmatmul.mubr.f32.gmra.mrb[0].mxu0 %v1422
        %v1543 = vpop.f32.mrb[0].mxu0
        %v1544 = vadd.f32 0.0, %v1543
        %v1545 = vpop.f32.mrb[0].mxu0
        %1546 = vmatprep.mubr.f32.mxu0 0.0
        %1547 = vmatmul.mubr.f32.gmra.mrb[0].mxu0 %v1423
        %v1548 = vpop.f32.mrb[0].mxu0
        %v1549 = vadd.f32 0.0, %v1548
        %v1550 = vpop.f32.mrb[0].mxu0
        %1551 = vmatprep.mubr.f32.mxu0 0.0
        %1552 = vmatmul.mubr.f32.gmra.mrb[0].mxu0 %v1424
        %v1553 = vpop.f32.mrb[0].mxu0
        %v1554 = vadd.f32 0.0, %v1553
        %v1555 = vpop.f32.mrb[0].mxu0
        %1556 = vdwg.mxu0
        %v1557 = vadd.f32 %v1395, %v1509
        %v1558 = vadd.f32 %v1396, %v1514
        %v1559 = vadd.f32 %v1397, %v1519
        %v1560 = vadd.f32 %v1398, %v1524
        %v1561 = vadd.f32 %v1399, %v1529
        %v1562 = vadd.f32 %v1400, %v1534
        %v1563 = vadd.f32 %v1401, %v1539
        %v1564 = vadd.f32 %v1402, %v1544
        %v1565 = vadd.f32 %v1403, %v1549
        %v1566 = vadd.f32 %v1404, %v1554
        %v1567 = vld [vmem:[%s228 + $0x40] sm:$0xff]
        %v1568 = vld [vmem:[%s228 + $0xc0] sm:$0xff]
        %v1569 = vld [vmem:[%s228 + $0x140] sm:$0xff]
        %v1570 = vld [vmem:[%s228 + $0x1c0] sm:$0xff]
        %v1571 = vld [vmem:[%s228 + $0x240] sm:$0xff]
        %v1572 = vld [vmem:[%s228 + $0x2c0] sm:$0xff]
        %v1573 = vld [vmem:[%s228 + $0x340] sm:$0xff]
        %v1574 = vld [vmem:[%s228 + $0x3c0] sm:$0xff]
        %v1575 = vld [vmem:[%s228 + $0x440] sm:$0xff]
        %v1576 = vld [vmem:[%s228 + $0x4c0] sm:$0xff]
        %v1577 = vmul.f32 %v1567, %v282
        %v1578 = vmul.f32 %v1568, %v283
        %v1579 = vmul.f32 %v1569, %v284
        %v1580 = vmul.f32 %v1570, %v285
        %v1581 = vmul.f32 %v1571, %v286
        %v1582 = vmul.f32 %v1572, %v287
        %v1583 = vmul.f32 %v1573, %v288
        %v1584 = vmul.f32 %v1574, %v289
        %v1585 = vmul.f32 %v1575, %v290
        %v1586 = vmul.f32 %v1576, %v291
        %s1587 = scalar_lea.vmem %s2, 1024
        %v1588 = vld [vmem:[%s1587] sm:$0xff]
        %v1589 = vld [vmem:[%s1587 + $0x8] sm:$0xff]
        %v1590 = vld [vmem:[%s1587 + $0x10] sm:$0xff]
        %v1591 = vld [vmem:[%s1587 + $0x18] sm:$0xff]
        %v1592 = vld [vmem:[%s1587 + $0x20] sm:$0xff]
        %v1593 = vld [vmem:[%s1587 + $0x28] sm:$0xff]
        %v1594 = vld [vmem:[%s1587 + $0x30] sm:$0xff]
        %v1595 = vld [vmem:[%s1587 + $0x38] sm:$0xff]
        %v1596 = vld [vmem:[%s1587 + $0x40] sm:$0xff]
        %v1597 = vld [vmem:[%s1587 + $0x48] sm:$0xff]
        %v1598 = vld [vmem:[%s1587 + $0x50] sm:$0xff]
        %v1599 = vld [vmem:[%s1587 + $0x58] sm:$0xff]
        %v1600 = vld [vmem:[%s1587 + $0x60] sm:$0xff]
        %v1601 = vld [vmem:[%s1587 + $0x68] sm:$0xff]
        %v1602 = vld [vmem:[%s1587 + $0x70] sm:$0xff]
        %v1603 = vld [vmem:[%s1587 + $0x78] sm:$0xff]
        %1604 = vmatprep.subr.mxu0 0.0
        %1605 = vmatpush1.msra.mxu0 %v1588
        %1606 = vmatprep.subr.mxu0 0.0
        %1607 = vmatpush1.msra.mxu0 %v1589
        %1608 = vmatprep.subr.mxu0 0.0
        %1609 = vmatpush1.msra.mxu0 %v1590
        %1610 = vmatprep.subr.mxu0 0.0
        %1611 = vmatpush1.msra.mxu0 %v1591
        %1612 = vmatprep.subr.mxu0 0.0
        %1613 = vmatpush1.msra.mxu0 %v1592
        %1614 = vmatprep.subr.mxu0 0.0
        %1615 = vmatpush1.msra.mxu0 %v1593
        %1616 = vmatprep.subr.mxu0 0.0
        %1617 = vmatpush1.msra.mxu0 %v1594
        %1618 = vmatprep.subr.mxu0 0.0
        %1619 = vmatpush1.msra.mxu0 %v1595
        %1620 = vmatprep.subr.mxu0 0.0
        %1621 = vmatpush1.msra.mxu0 %v1596
        %1622 = vmatprep.subr.mxu0 0.0
        %1623 = vmatpush1.msra.mxu0 %v1597
        %1624 = vmatprep.subr.mxu0 0.0
        %1625 = vmatpush1.msra.mxu0 %v1598
        %1626 = vmatprep.subr.mxu0 0.0
        %1627 = vmatpush1.msra.mxu0 %v1599
        %1628 = vmatprep.subr.mxu0 0.0
        %1629 = vmatpush1.msra.mxu0 %v1600
        %1630 = vmatprep.subr.mxu0 0.0
        %1631 = vmatpush1.msra.mxu0 %v1601
        %1632 = vmatprep.subr.mxu0 0.0
        %1633 = vmatpush1.msra.mxu0 %v1602
        %1634 = vmatprep.subr.mxu0 0.0
        %1635 = vmatpush1.msra.mxu0 %v1603
        %1636 = vmatprep.subr.mxu0 0.0
        %1637 = vmatpush1.msra.mxu0 0.0
        %1638 = vmatprep.subr.mxu0 0.0
        %1639 = vmatpush1.msra.mxu0 0.0
        %1640 = vmatprep.subr.mxu0 0.0
        %1641 = vmatpush1.msra.mxu0 0.0
        %1642 = vmatprep.subr.mxu0 0.0
        %1643 = vmatpush1.msra.mxu0 0.0
        %1644 = vmatprep.subr.mxu0 0.0
        %1645 = vmatpush1.msra.mxu0 0.0
        %1646 = vmatprep.subr.mxu0 0.0
        %1647 = vmatpush1.msra.mxu0 0.0
        %1648 = vmatprep.subr.mxu0 0.0
        %1649 = vmatpush1.msra.mxu0 0.0
        %1650 = vmatprep.subr.mxu0 0.0
        %1651 = vmatpush1.msra.mxu0 0.0
        %1652 = vmatprep.subr.mxu0 0.0
        %1653 = vmatpush1.msra.mxu0 0.0
        %1654 = vmatprep.subr.mxu0 0.0
        %1655 = vmatpush1.msra.mxu0 0.0
        %1656 = vmatprep.subr.mxu0 0.0
        %1657 = vmatpush1.msra.mxu0 0.0
        %1658 = vmatprep.subr.mxu0 0.0
        %1659 = vmatpush1.msra.mxu0 0.0
        %1660 = vmatprep.subr.mxu0 0.0
        %1661 = vmatpush1.msra.mxu0 0.0
        %1662 = vmatprep.subr.mxu0 0.0
        %1663 = vmatpush1.msra.mxu0 0.0
        %1664 = vmatprep.subr.mxu0 0.0
        %1665 = vmatpush1.msra.mxu0 0.0
        %1666 = vmatprep.subr.mxu0 0.0
        %1667 = vmatpush1.msra.mxu0 0.0
        %1668 = vmatprep.mubr.f32.mxu0 0.0
        %1669 = vmatmul.mubr.f32.gmra.mrb[0].mxu0 %v1577
        %v1670 = vpop.f32.mrb[0].mxu0
        %v1671 = vadd.f32 0.0, %v1670
        %v1672 = vpop.f32.mrb[0].mxu0
        %1673 = vmatprep.mubr.f32.mxu0 0.0
        %1674 = vmatmul.mubr.f32.gmra.mrb[0].mxu0 %v1578
        %v1675 = vpop.f32.mrb[0].mxu0
        %v1676 = vadd.f32 0.0, %v1675
        %v1677 = vpop.f32.mrb[0].mxu0
        %1678 = vmatprep.mubr.f32.mxu0 0.0
        %1679 = vmatmul.mubr.f32.gmra.mrb[0].mxu0 %v1579
        %v1680 = vpop.f32.mrb[0].mxu0
        %v1681 = vadd.f32 0.0, %v1680
        %v1682 = vpop.f32.mrb[0].mxu0
        %1683 = vmatprep.mubr.f32.mxu0 0.0
        %1684 = vmatmul.mubr.f32.gmra.mrb[0].mxu0 %v1580
        %v1685 = vpop.f32.mrb[0].mxu0
        %v1686 = vadd.f32 0.0, %v1685
        %v1687 = vpop.f32.mrb[0].mxu0
        %1688 = vmatprep.mubr.f32.mxu0 0.0
        %1689 = vmatmul.mubr.f32.gmra.mrb[0].mxu0 %v1581
        %v1690 = vpop.f32.mrb[0].mxu0
        %v1691 = vadd.f32 0.0, %v1690
        %v1692 = vpop.f32.mrb[0].mxu0
        %1693 = vmatprep.mubr.f32.mxu0 0.0
        %1694 = vmatmul.mubr.f32.gmra.mrb[0].mxu0 %v1582
        %v1695 = vpop.f32.mrb[0].mxu0
        %v1696 = vadd.f32 0.0, %v1695
        %v1697 = vpop.f32.mrb[0].mxu0
        %1698 = vmatprep.mubr.f32.mxu0 0.0
        %1699 = vmatmul.mubr.f32.gmra.mrb[0].mxu0 %v1583
        %v1700 = vpop.f32.mrb[0].mxu0
        %v1701 = vadd.f32 0.0, %v1700
        %v1702 = vpop.f32.mrb[0].mxu0
        %1703 = vmatprep.mubr.f32.mxu0 0.0
        %1704 = vmatmul.mubr.f32.gmra.mrb[0].mxu0 %v1584
        %v1705 = vpop.f32.mrb[0].mxu0
        %v1706 = vadd.f32 0.0, %v1705
        %v1707 = vpop.f32.mrb[0].mxu0
        %1708 = vmatprep.mubr.f32.mxu0 0.0
        %1709 = vmatmul.mubr.f32.gmra.mrb[0].mxu0 %v1585
        %v1710 = vpop.f32.mrb[0].mxu0
        %v1711 = vadd.f32 0.0, %v1710
        %v1712 = vpop.f32.mrb[0].mxu0
        %1713 = vmatprep.mubr.f32.mxu0 0.0
        %1714 = vmatmul.mubr.f32.gmra.mrb[0].mxu0 %v1586
        %v1715 = vpop.f32.mrb[0].mxu0
        %v1716 = vadd.f32 0.0, %v1715
        %v1717 = vpop.f32.mrb[0].mxu0
        %1718 = vdwg.mxu0
        %v1719 = vadd.f32 %v1557, %v1671
        %v1720 = vadd.f32 %v1558, %v1676
        %v1721 = vadd.f32 %v1559, %v1681
        %v1722 = vadd.f32 %v1560, %v1686
        %v1723 = vadd.f32 %v1561, %v1691
        %v1724 = vadd.f32 %v1562, %v1696
        %v1725 = vadd.f32 %v1563, %v1701
        %v1726 = vadd.f32 %v1564, %v1706
        %v1727 = vadd.f32 %v1565, %v1711
        %v1728 = vadd.f32 %v1566, %v1716
        %v1729 = vld [vmem:[%s228 + $0x48] sm:$0xff]
        %v1730 = vld [vmem:[%s228 + $0xc8] sm:$0xff]
        %v1731 = vld [vmem:[%s228 + $0x148] sm:$0xff]
        %v1732 = vld [vmem:[%s228 + $0x1c8] sm:$0xff]
        %v1733 = vld [vmem:[%s228 + $0x248] sm:$0xff]
        %v1734 = vld [vmem:[%s228 + $0x2c8] sm:$0xff]
        %v1735 = vld [vmem:[%s228 + $0x348] sm:$0xff]
        %v1736 = vld [vmem:[%s228 + $0x3c8] sm:$0xff]
        %v1737 = vld [vmem:[%s228 + $0x448] sm:$0xff]
        %v1738 = vld [vmem:[%s228 + $0x4c8] sm:$0xff]
        %v1739 = vmul.f32 %v1729, %v282
        %v1740 = vmul.f32 %v1730, %v283
        %v1741 = vmul.f32 %v1731, %v284
        %v1742 = vmul.f32 %v1732, %v285
        %v1743 = vmul.f32 %v1733, %v286
        %v1744 = vmul.f32 %v1734, %v287
        %v1745 = vmul.f32 %v1735, %v288
        %v1746 = vmul.f32 %v1736, %v289
        %v1747 = vmul.f32 %v1737, %v290
        %v1748 = vmul.f32 %v1738, %v291
        %s1749 = scalar_lea.vmem %s2, 1152
        %v1750 = vld [vmem:[%s1749] sm:$0xff]
        %v1751 = vld [vmem:[%s1749 + $0x8] sm:$0xff]
        %v1752 = vld [vmem:[%s1749 + $0x10] sm:$0xff]
        %v1753 = vld [vmem:[%s1749 + $0x18] sm:$0xff]
        %v1754 = vld [vmem:[%s1749 + $0x20] sm:$0xff]
        %v1755 = vld [vmem:[%s1749 + $0x28] sm:$0xff]
        %v1756 = vld [vmem:[%s1749 + $0x30] sm:$0xff]
        %v1757 = vld [vmem:[%s1749 + $0x38] sm:$0xff]
        %v1758 = vld [vmem:[%s1749 + $0x40] sm:$0xff]
        %v1759 = vld [vmem:[%s1749 + $0x48] sm:$0xff]
        %v1760 = vld [vmem:[%s1749 + $0x50] sm:$0xff]
        %v1761 = vld [vmem:[%s1749 + $0x58] sm:$0xff]
        %v1762 = vld [vmem:[%s1749 + $0x60] sm:$0xff]
        %v1763 = vld [vmem:[%s1749 + $0x68] sm:$0xff]
        %v1764 = vld [vmem:[%s1749 + $0x70] sm:$0xff]
        %v1765 = vld [vmem:[%s1749 + $0x78] sm:$0xff]
        %1766 = vmatprep.subr.mxu0 0.0
        %1767 = vmatpush1.msra.mxu0 %v1750
        %1768 = vmatprep.subr.mxu0 0.0
        %1769 = vmatpush1.msra.mxu0 %v1751
        %1770 = vmatprep.subr.mxu0 0.0
        %1771 = vmatpush1.msra.mxu0 %v1752
        %1772 = vmatprep.subr.mxu0 0.0
        %1773 = vmatpush1.msra.mxu0 %v1753
        %1774 = vmatprep.subr.mxu0 0.0
        %1775 = vmatpush1.msra.mxu0 %v1754
        %1776 = vmatprep.subr.mxu0 0.0
        %1777 = vmatpush1.msra.mxu0 %v1755
        %1778 = vmatprep.subr.mxu0 0.0
        %1779 = vmatpush1.msra.mxu0 %v1756
        %1780 = vmatprep.subr.mxu0 0.0
        %1781 = vmatpush1.msra.mxu0 %v1757
        %1782 = vmatprep.subr.mxu0 0.0
        %1783 = vmatpush1.msra.mxu0 %v1758
        %1784 = vmatprep.subr.mxu0 0.0
        %1785 = vmatpush1.msra.mxu0 %v1759
        %1786 = vmatprep.subr.mxu0 0.0
        %1787 = vmatpush1.msra.mxu0 %v1760
        %1788 = vmatprep.subr.mxu0 0.0
        %1789 = vmatpush1.msra.mxu0 %v1761
        %1790 = vmatprep.subr.mxu0 0.0
        %1791 = vmatpush1.msra.mxu0 %v1762
        %1792 = vmatprep.subr.mxu0 0.0
        %1793 = vmatpush1.msra.mxu0 %v1763
        %1794 = vmatprep.subr.mxu0 0.0
        %1795 = vmatpush1.msra.mxu0 %v1764
        %1796 = vmatprep.subr.mxu0 0.0
        %1797 = vmatpush1.msra.mxu0 %v1765
        %1798 = vmatprep.subr.mxu0 0.0
        %1799 = vmatpush1.msra.mxu0 0.0
        %1800 = vmatprep.subr.mxu0 0.0
        %1801 = vmatpush1.msra.mxu0 0.0
        %1802 = vmatprep.subr.mxu0 0.0
        %1803 = vmatpush1.msra.mxu0 0.0
        %1804 = vmatprep.subr.mxu0 0.0
        %1805 = vmatpush1.msra.mxu0 0.0
        %1806 = vmatprep.subr.mxu0 0.0
        %1807 = vmatpush1.msra.mxu0 0.0
        %1808 = vmatprep.subr.mxu0 0.0
        %1809 = vmatpush1.msra.mxu0 0.0
        %1810 = vmatprep.subr.mxu0 0.0
        %1811 = vmatpush1.msra.mxu0 0.0
        %1812 = vmatprep.subr.mxu0 0.0
        %1813 = vmatpush1.msra.mxu0 0.0
        %1814 = vmatprep.subr.mxu0 0.0
        %1815 = vmatpush1.msra.mxu0 0.0
        %1816 = vmatprep.subr.mxu0 0.0
        %1817 = vmatpush1.msra.mxu0 0.0
        %1818 = vmatprep.subr.mxu0 0.0
        %1819 = vmatpush1.msra.mxu0 0.0
        %1820 = vmatprep.subr.mxu0 0.0
        %1821 = vmatpush1.msra.mxu0 0.0
        %1822 = vmatprep.subr.mxu0 0.0
        %1823 = vmatpush1.msra.mxu0 0.0
        %1824 = vmatprep.subr.mxu0 0.0
        %1825 = vmatpush1.msra.mxu0 0.0
        %1826 = vmatprep.subr.mxu0 0.0
        %1827 = vmatpush1.msra.mxu0 0.0
        %1828 = vmatprep.subr.mxu0 0.0
        %1829 = vmatpush1.msra.mxu0 0.0
        %1830 = vmatprep.mubr.f32.mxu0 0.0
        %1831 = vmatmul.mubr.f32.gmra.mrb[0].mxu0 %v1739
        %v1832 = vpop.f32.mrb[0].mxu0
        %v1833 = vadd.f32 0.0, %v1832
        %v1834 = vpop.f32.mrb[0].mxu0
        %1835 = vmatprep.mubr.f32.mxu0 0.0
        %1836 = vmatmul.mubr.f32.gmra.mrb[0].mxu0 %v1740
        %v1837 = vpop.f32.mrb[0].mxu0
        %v1838 = vadd.f32 0.0, %v1837
        %v1839 = vpop.f32.mrb[0].mxu0
        %1840 = vmatprep.mubr.f32.mxu0 0.0
        %1841 = vmatmul.mubr.f32.gmra.mrb[0].mxu0 %v1741
        %v1842 = vpop.f32.mrb[0].mxu0
        %v1843 = vadd.f32 0.0, %v1842
        %v1844 = vpop.f32.mrb[0].mxu0
        %1845 = vmatprep.mubr.f32.mxu0 0.0
        %1846 = vmatmul.mubr.f32.gmra.mrb[0].mxu0 %v1742
        %v1847 = vpop.f32.mrb[0].mxu0
        %v1848 = vadd.f32 0.0, %v1847
        %v1849 = vpop.f32.mrb[0].mxu0
        %1850 = vmatprep.mubr.f32.mxu0 0.0
        %1851 = vmatmul.mubr.f32.gmra.mrb[0].mxu0 %v1743
        %v1852 = vpop.f32.mrb[0].mxu0
        %v1853 = vadd.f32 0.0, %v1852
        %v1854 = vpop.f32.mrb[0].mxu0
        %1855 = vmatprep.mubr.f32.mxu0 0.0
        %1856 = vmatmul.mubr.f32.gmra.mrb[0].mxu0 %v1744
        %v1857 = vpop.f32.mrb[0].mxu0
        %v1858 = vadd.f32 0.0, %v1857
        %v1859 = vpop.f32.mrb[0].mxu0
        %1860 = vmatprep.mubr.f32.mxu0 0.0
        %1861 = vmatmul.mubr.f32.gmra.mrb[0].mxu0 %v1745
        %v1862 = vpop.f32.mrb[0].mxu0
        %v1863 = vadd.f32 0.0, %v1862
        %v1864 = vpop.f32.mrb[0].mxu0
        %1865 = vmatprep.mubr.f32.mxu0 0.0
        %1866 = vmatmul.mubr.f32.gmra.mrb[0].mxu0 %v1746
        %v1867 = vpop.f32.mrb[0].mxu0
        %v1868 = vadd.f32 0.0, %v1867
        %v1869 = vpop.f32.mrb[0].mxu0
        %1870 = vmatprep.mubr.f32.mxu0 0.0
        %1871 = vmatmul.mubr.f32.gmra.mrb[0].mxu0 %v1747
        %v1872 = vpop.f32.mrb[0].mxu0
        %v1873 = vadd.f32 0.0, %v1872
        %v1874 = vpop.f32.mrb[0].mxu0
        %1875 = vmatprep.mubr.f32.mxu0 0.0
        %1876 = vmatmul.mubr.f32.gmra.mrb[0].mxu0 %v1748
        %v1877 = vpop.f32.mrb[0].mxu0
        %v1878 = vadd.f32 0.0, %v1877
        %v1879 = vpop.f32.mrb[0].mxu0
        %1880 = vdwg.mxu0
        %v1881 = vadd.f32 %v1719, %v1833
        %v1882 = vadd.f32 %v1720, %v1838
        %v1883 = vadd.f32 %v1721, %v1843
        %v1884 = vadd.f32 %v1722, %v1848
        %v1885 = vadd.f32 %v1723, %v1853
        %v1886 = vadd.f32 %v1724, %v1858
        %v1887 = vadd.f32 %v1725, %v1863
        %v1888 = vadd.f32 %v1726, %v1868
        %v1889 = vadd.f32 %v1727, %v1873
        %v1890 = vadd.f32 %v1728, %v1878
        %v1891 = vld [vmem:[%s228 + $0x50] sm:$0xff]
        %v1892 = vld [vmem:[%s228 + $0xd0] sm:$0xff]
        %v1893 = vld [vmem:[%s228 + $0x150] sm:$0xff]
        %v1894 = vld [vmem:[%s228 + $0x1d0] sm:$0xff]
        %v1895 = vld [vmem:[%s228 + $0x250] sm:$0xff]
        %v1896 = vld [vmem:[%s228 + $0x2d0] sm:$0xff]
        %v1897 = vld [vmem:[%s228 + $0x350] sm:$0xff]
        %v1898 = vld [vmem:[%s228 + $0x3d0] sm:$0xff]
        %v1899 = vld [vmem:[%s228 + $0x450] sm:$0xff]
        %v1900 = vld [vmem:[%s228 + $0x4d0] sm:$0xff]
        %v1901 = vmul.f32 %v1891, %v282
        %v1902 = vmul.f32 %v1892, %v283
        %v1903 = vmul.f32 %v1893, %v284
        %v1904 = vmul.f32 %v1894, %v285
        %v1905 = vmul.f32 %v1895, %v286
        %v1906 = vmul.f32 %v1896, %v287
        %v1907 = vmul.f32 %v1897, %v288
        %v1908 = vmul.f32 %v1898, %v289
        %v1909 = vmul.f32 %v1899, %v290
        %v1910 = vmul.f32 %v1900, %v291
        %s1911 = scalar_lea.vmem %s2, 1280
        %v1912 = vld [vmem:[%s1911] sm:$0xff]
        %v1913 = vld [vmem:[%s1911 + $0x8] sm:$0xff]
        %v1914 = vld [vmem:[%s1911 + $0x10] sm:$0xff]
        %v1915 = vld [vmem:[%s1911 + $0x18] sm:$0xff]
        %v1916 = vld [vmem:[%s1911 + $0x20] sm:$0xff]
        %v1917 = vld [vmem:[%s1911 + $0x28] sm:$0xff]
        %v1918 = vld [vmem:[%s1911 + $0x30] sm:$0xff]
        %v1919 = vld [vmem:[%s1911 + $0x38] sm:$0xff]
        %v1920 = vld [vmem:[%s1911 + $0x40] sm:$0xff]
        %v1921 = vld [vmem:[%s1911 + $0x48] sm:$0xff]
        %v1922 = vld [vmem:[%s1911 + $0x50] sm:$0xff]
        %v1923 = vld [vmem:[%s1911 + $0x58] sm:$0xff]
        %v1924 = vld [vmem:[%s1911 + $0x60] sm:$0xff]
        %v1925 = vld [vmem:[%s1911 + $0x68] sm:$0xff]
        %v1926 = vld [vmem:[%s1911 + $0x70] sm:$0xff]
        %v1927 = vld [vmem:[%s1911 + $0x78] sm:$0xff]
        %1928 = vmatprep.subr.mxu0 0.0
        %1929 = vmatpush1.msra.mxu0 %v1912
        %1930 = vmatprep.subr.mxu0 0.0
        %1931 = vmatpush1.msra.mxu0 %v1913
        %1932 = vmatprep.subr.mxu0 0.0
        %1933 = vmatpush1.msra.mxu0 %v1914
        %1934 = vmatprep.subr.mxu0 0.0
        %1935 = vmatpush1.msra.mxu0 %v1915
        %1936 = vmatprep.subr.mxu0 0.0
        %1937 = vmatpush1.msra.mxu0 %v1916
        %1938 = vmatprep.subr.mxu0 0.0
        %1939 = vmatpush1.msra.mxu0 %v1917
        %1940 = vmatprep.subr.mxu0 0.0
        %1941 = vmatpush1.msra.mxu0 %v1918
        %1942 = vmatprep.subr.mxu0 0.0
        %1943 = vmatpush1.msra.mxu0 %v1919
        %1944 = vmatprep.subr.mxu0 0.0
        %1945 = vmatpush1.msra.mxu0 %v1920
        %1946 = vmatprep.subr.mxu0 0.0
        %1947 = vmatpush1.msra.mxu0 %v1921
        %1948 = vmatprep.subr.mxu0 0.0
        %1949 = vmatpush1.msra.mxu0 %v1922
        %1950 = vmatprep.subr.mxu0 0.0
        %1951 = vmatpush1.msra.mxu0 %v1923
        %1952 = vmatprep.subr.mxu0 0.0
        %1953 = vmatpush1.msra.mxu0 %v1924
        %1954 = vmatprep.subr.mxu0 0.0
        %1955 = vmatpush1.msra.mxu0 %v1925
        %1956 = vmatprep.subr.mxu0 0.0
        %1957 = vmatpush1.msra.mxu0 %v1926
        %1958 = vmatprep.subr.mxu0 0.0
        %1959 = vmatpush1.msra.mxu0 %v1927
        %1960 = vmatprep.subr.mxu0 0.0
        %1961 = vmatpush1.msra.mxu0 0.0
        %1962 = vmatprep.subr.mxu0 0.0
        %1963 = vmatpush1.msra.mxu0 0.0
        %1964 = vmatprep.subr.mxu0 0.0
        %1965 = vmatpush1.msra.mxu0 0.0
        %1966 = vmatprep.subr.mxu0 0.0
        %1967 = vmatpush1.msra.mxu0 0.0
        %1968 = vmatprep.subr.mxu0 0.0
        %1969 = vmatpush1.msra.mxu0 0.0
        %1970 = vmatprep.subr.mxu0 0.0
        %1971 = vmatpush1.msra.mxu0 0.0
        %1972 = vmatprep.subr.mxu0 0.0
        %1973 = vmatpush1.msra.mxu0 0.0
        %1974 = vmatprep.subr.mxu0 0.0
        %1975 = vmatpush1.msra.mxu0 0.0
        %1976 = vmatprep.subr.mxu0 0.0
        %1977 = vmatpush1.msra.mxu0 0.0
        %1978 = vmatprep.subr.mxu0 0.0
        %1979 = vmatpush1.msra.mxu0 0.0
        %1980 = vmatprep.subr.mxu0 0.0
        %1981 = vmatpush1.msra.mxu0 0.0
        %1982 = vmatprep.subr.mxu0 0.0
        %1983 = vmatpush1.msra.mxu0 0.0
        %1984 = vmatprep.subr.mxu0 0.0
        %1985 = vmatpush1.msra.mxu0 0.0
        %1986 = vmatprep.subr.mxu0 0.0
        %1987 = vmatpush1.msra.mxu0 0.0
        %1988 = vmatprep.subr.mxu0 0.0
        %1989 = vmatpush1.msra.mxu0 0.0
        %1990 = vmatprep.subr.mxu0 0.0
        %1991 = vmatpush1.msra.mxu0 0.0
        %1992 = vmatprep.mubr.f32.mxu0 0.0
        %1993 = vmatmul.mubr.f32.gmra.mrb[0].mxu0 %v1901
        %v1994 = vpop.f32.mrb[0].mxu0
        %v1995 = vadd.f32 0.0, %v1994
        %v1996 = vpop.f32.mrb[0].mxu0
        %1997 = vmatprep.mubr.f32.mxu0 0.0
        %1998 = vmatmul.mubr.f32.gmra.mrb[0].mxu0 %v1902
        %v1999 = vpop.f32.mrb[0].mxu0
        %v2000 = vadd.f32 0.0, %v1999
        %v2001 = vpop.f32.mrb[0].mxu0
        %2002 = vmatprep.mubr.f32.mxu0 0.0
        %2003 = vmatmul.mubr.f32.gmra.mrb[0].mxu0 %v1903
        %v2004 = vpop.f32.mrb[0].mxu0
        %v2005 = vadd.f32 0.0, %v2004
        %v2006 = vpop.f32.mrb[0].mxu0
        %2007 = vmatprep.mubr.f32.mxu0 0.0
        %2008 = vmatmul.mubr.f32.gmra.mrb[0].mxu0 %v1904
        %v2009 = vpop.f32.mrb[0].mxu0
        %v2010 = vadd.f32 0.0, %v2009
        %v2011 = vpop.f32.mrb[0].mxu0
        %2012 = vmatprep.mubr.f32.mxu0 0.0
        %2013 = vmatmul.mubr.f32.gmra.mrb[0].mxu0 %v1905
        %v2014 = vpop.f32.mrb[0].mxu0
        %v2015 = vadd.f32 0.0, %v2014
        %v2016 = vpop.f32.mrb[0].mxu0
        %2017 = vmatprep.mubr.f32.mxu0 0.0
        %2018 = vmatmul.mubr.f32.gmra.mrb[0].mxu0 %v1906
        %v2019 = vpop.f32.mrb[0].mxu0
        %v2020 = vadd.f32 0.0, %v2019
        %v2021 = vpop.f32.mrb[0].mxu0
        %2022 = vmatprep.mubr.f32.mxu0 0.0
        %2023 = vmatmul.mubr.f32.gmra.mrb[0].mxu0 %v1907
        %v2024 = vpop.f32.mrb[0].mxu0
        %v2025 = vadd.f32 0.0, %v2024
        %v2026 = vpop.f32.mrb[0].mxu0
        %2027 = vmatprep.mubr.f32.mxu0 0.0
        %2028 = vmatmul.mubr.f32.gmra.mrb[0].mxu0 %v1908
        %v2029 = vpop.f32.mrb[0].mxu0
        %v2030 = vadd.f32 0.0, %v2029
        %v2031 = vpop.f32.mrb[0].mxu0
        %2032 = vmatprep.mubr.f32.mxu0 0.0
        %2033 = vmatmul.mubr.f32.gmra.mrb[0].mxu0 %v1909
        %v2034 = vpop.f32.mrb[0].mxu0
        %v2035 = vadd.f32 0.0, %v2034
        %v2036 = vpop.f32.mrb[0].mxu0
        %2037 = vmatprep.mubr.f32.mxu0 0.0
        %2038 = vmatmul.mubr.f32.gmra.mrb[0].mxu0 %v1910
        %v2039 = vpop.f32.mrb[0].mxu0
        %v2040 = vadd.f32 0.0, %v2039
        %v2041 = vpop.f32.mrb[0].mxu0
        %2042 = vdwg.mxu0
        %v2043 = vadd.f32 %v1881, %v1995
        %v2044 = vadd.f32 %v1882, %v2000
        %v2045 = vadd.f32 %v1883, %v2005
        %v2046 = vadd.f32 %v1884, %v2010
        %v2047 = vadd.f32 %v1885, %v2015
        %v2048 = vadd.f32 %v1886, %v2020
        %v2049 = vadd.f32 %v1887, %v2025
        %v2050 = vadd.f32 %v1888, %v2030
        %v2051 = vadd.f32 %v1889, %v2035
        %v2052 = vadd.f32 %v1890, %v2040
        %v2053 = vld [vmem:[%s228 + $0x58] sm:$0xff]
        %v2054 = vld [vmem:[%s228 + $0xd8] sm:$0xff]
        %v2055 = vld [vmem:[%s228 + $0x158] sm:$0xff]
        %v2056 = vld [vmem:[%s228 + $0x1d8] sm:$0xff]
        %v2057 = vld [vmem:[%s228 + $0x258] sm:$0xff]
        %v2058 = vld [vmem:[%s228 + $0x2d8] sm:$0xff]
        %v2059 = vld [vmem:[%s228 + $0x358] sm:$0xff]
        %v2060 = vld [vmem:[%s228 + $0x3d8] sm:$0xff]
        %v2061 = vld [vmem:[%s228 + $0x458] sm:$0xff]
        %v2062 = vld [vmem:[%s228 + $0x4d8] sm:$0xff]
        %v2063 = vmul.f32 %v2053, %v282
        %v2064 = vmul.f32 %v2054, %v283
        %v2065 = vmul.f32 %v2055, %v284
        %v2066 = vmul.f32 %v2056, %v285
        %v2067 = vmul.f32 %v2057, %v286
        %v2068 = vmul.f32 %v2058, %v287
        %v2069 = vmul.f32 %v2059, %v288
        %v2070 = vmul.f32 %v2060, %v289
        %v2071 = vmul.f32 %v2061, %v290
        %v2072 = vmul.f32 %v2062, %v291
        %s2073 = scalar_lea.vmem %s2, 1408
        %v2074 = vld [vmem:[%s2073] sm:$0xff]
        %v2075 = vld [vmem:[%s2073 + $0x8] sm:$0xff]
        %v2076 = vld [vmem:[%s2073 + $0x10] sm:$0xff]
        %v2077 = vld [vmem:[%s2073 + $0x18] sm:$0xff]
        %v2078 = vld [vmem:[%s2073 + $0x20] sm:$0xff]
        %v2079 = vld [vmem:[%s2073 + $0x28] sm:$0xff]
        %v2080 = vld [vmem:[%s2073 + $0x30] sm:$0xff]
        %v2081 = vld [vmem:[%s2073 + $0x38] sm:$0xff]
        %v2082 = vld [vmem:[%s2073 + $0x40] sm:$0xff]
        %v2083 = vld [vmem:[%s2073 + $0x48] sm:$0xff]
        %v2084 = vld [vmem:[%s2073 + $0x50] sm:$0xff]
        %v2085 = vld [vmem:[%s2073 + $0x58] sm:$0xff]
        %v2086 = vld [vmem:[%s2073 + $0x60] sm:$0xff]
        %v2087 = vld [vmem:[%s2073 + $0x68] sm:$0xff]
        %v2088 = vld [vmem:[%s2073 + $0x70] sm:$0xff]
        %v2089 = vld [vmem:[%s2073 + $0x78] sm:$0xff]
        %2090 = vmatprep.subr.mxu0 0.0
        %2091 = vmatpush1.msra.mxu0 %v2074
        %2092 = vmatprep.subr.mxu0 0.0
        %2093 = vmatpush1.msra.mxu0 %v2075
        %2094 = vmatprep.subr.mxu0 0.0
        %2095 = vmatpush1.msra.mxu0 %v2076
        %2096 = vmatprep.subr.mxu0 0.0
        %2097 = vmatpush1.msra.mxu0 %v2077
        %2098 = vmatprep.subr.mxu0 0.0
        %2099 = vmatpush1.msra.mxu0 %v2078
        %2100 = vmatprep.subr.mxu0 0.0
        %2101 = vmatpush1.msra.mxu0 %v2079
        %2102 = vmatprep.subr.mxu0 0.0
        %2103 = vmatpush1.msra.mxu0 %v2080
        %2104 = vmatprep.subr.mxu0 0.0
        %2105 = vmatpush1.msra.mxu0 %v2081
        %2106 = vmatprep.subr.mxu0 0.0
        %2107 = vmatpush1.msra.mxu0 %v2082
        %2108 = vmatprep.subr.mxu0 0.0
        %2109 = vmatpush1.msra.mxu0 %v2083
        %2110 = vmatprep.subr.mxu0 0.0
        %2111 = vmatpush1.msra.mxu0 %v2084
        %2112 = vmatprep.subr.mxu0 0.0
        %2113 = vmatpush1.msra.mxu0 %v2085
        %2114 = vmatprep.subr.mxu0 0.0
        %2115 = vmatpush1.msra.mxu0 %v2086
        %2116 = vmatprep.subr.mxu0 0.0
        %2117 = vmatpush1.msra.mxu0 %v2087
        %2118 = vmatprep.subr.mxu0 0.0
        %2119 = vmatpush1.msra.mxu0 %v2088
        %2120 = vmatprep.subr.mxu0 0.0
        %2121 = vmatpush1.msra.mxu0 %v2089
        %2122 = vmatprep.subr.mxu0 0.0
        %2123 = vmatpush1.msra.mxu0 0.0
        %2124 = vmatprep.subr.mxu0 0.0
        %2125 = vmatpush1.msra.mxu0 0.0
        %2126 = vmatprep.subr.mxu0 0.0
        %2127 = vmatpush1.msra.mxu0 0.0
        %2128 = vmatprep.subr.mxu0 0.0
        %2129 = vmatpush1.msra.mxu0 0.0
        %2130 = vmatprep.subr.mxu0 0.0
        %2131 = vmatpush1.msra.mxu0 0.0
        %2132 = vmatprep.subr.mxu0 0.0
        %2133 = vmatpush1.msra.mxu0 0.0
        %2134 = vmatprep.subr.mxu0 0.0
        %2135 = vmatpush1.msra.mxu0 0.0
        %2136 = vmatprep.subr.mxu0 0.0
        %2137 = vmatpush1.msra.mxu0 0.0
        %2138 = vmatprep.subr.mxu0 0.0
        %2139 = vmatpush1.msra.mxu0 0.0
        %2140 = vmatprep.subr.mxu0 0.0
        %2141 = vmatpush1.msra.mxu0 0.0
        %2142 = vmatprep.subr.mxu0 0.0
        %2143 = vmatpush1.msra.mxu0 0.0
        %2144 = vmatprep.subr.mxu0 0.0
        %2145 = vmatpush1.msra.mxu0 0.0
        %2146 = vmatprep.subr.mxu0 0.0
        %2147 = vmatpush1.msra.mxu0 0.0
        %2148 = vmatprep.subr.mxu0 0.0
        %2149 = vmatpush1.msra.mxu0 0.0
        %2150 = vmatprep.subr.mxu0 0.0
        %2151 = vmatpush1.msra.mxu0 0.0
        %2152 = vmatprep.subr.mxu0 0.0
        %2153 = vmatpush1.msra.mxu0 0.0
        %2154 = vmatprep.mubr.f32.mxu0 0.0
        %2155 = vmatmul.mubr.f32.gmra.mrb[0].mxu0 %v2063
        %v2156 = vpop.f32.mrb[0].mxu0
        %v2157 = vadd.f32 0.0, %v2156
        %v2158 = vpop.f32.mrb[0].mxu0
        %2159 = vmatprep.mubr.f32.mxu0 0.0
        %2160 = vmatmul.mubr.f32.gmra.mrb[0].mxu0 %v2064
        %v2161 = vpop.f32.mrb[0].mxu0
        %v2162 = vadd.f32 0.0, %v2161
        %v2163 = vpop.f32.mrb[0].mxu0
        %2164 = vmatprep.mubr.f32.mxu0 0.0
        %2165 = vmatmul.mubr.f32.gmra.mrb[0].mxu0 %v2065
        %v2166 = vpop.f32.mrb[0].mxu0
        %v2167 = vadd.f32 0.0, %v2166
        %v2168 = vpop.f32.mrb[0].mxu0
        %2169 = vmatprep.mubr.f32.mxu0 0.0
        %2170 = vmatmul.mubr.f32.gmra.mrb[0].mxu0 %v2066
        %v2171 = vpop.f32.mrb[0].mxu0
        %v2172 = vadd.f32 0.0, %v2171
        %v2173 = vpop.f32.mrb[0].mxu0
        %2174 = vmatprep.mubr.f32.mxu0 0.0
        %2175 = vmatmul.mubr.f32.gmra.mrb[0].mxu0 %v2067
        %v2176 = vpop.f32.mrb[0].mxu0
        %v2177 = vadd.f32 0.0, %v2176
        %v2178 = vpop.f32.mrb[0].mxu0
        %2179 = vmatprep.mubr.f32.mxu0 0.0
        %2180 = vmatmul.mubr.f32.gmra.mrb[0].mxu0 %v2068
        %v2181 = vpop.f32.mrb[0].mxu0
        %v2182 = vadd.f32 0.0, %v2181
        %v2183 = vpop.f32.mrb[0].mxu0
        %2184 = vmatprep.mubr.f32.mxu0 0.0
        %2185 = vmatmul.mubr.f32.gmra.mrb[0].mxu0 %v2069
        %v2186 = vpop.f32.mrb[0].mxu0
        %v2187 = vadd.f32 0.0, %v2186
        %v2188 = vpop.f32.mrb[0].mxu0
        %2189 = vmatprep.mubr.f32.mxu0 0.0
        %2190 = vmatmul.mubr.f32.gmra.mrb[0].mxu0 %v2070
        %v2191 = vpop.f32.mrb[0].mxu0
        %v2192 = vadd.f32 0.0, %v2191
        %v2193 = vpop.f32.mrb[0].mxu0
        %2194 = vmatprep.mubr.f32.mxu0 0.0
        %2195 = vmatmul.mubr.f32.gmra.mrb[0].mxu0 %v2071
        %v2196 = vpop.f32.mrb[0].mxu0
        %v2197 = vadd.f32 0.0, %v2196
        %v2198 = vpop.f32.mrb[0].mxu0
        %2199 = vmatprep.mubr.f32.mxu0 0.0
        %2200 = vmatmul.mubr.f32.gmra.mrb[0].mxu0 %v2072
        %v2201 = vpop.f32.mrb[0].mxu0
        %v2202 = vadd.f32 0.0, %v2201
        %v2203 = vpop.f32.mrb[0].mxu0
        %2204 = vdwg.mxu0
        %v2205 = vadd.f32 %v2043, %v2157
        %v2206 = vadd.f32 %v2044, %v2162
        %v2207 = vadd.f32 %v2045, %v2167
        %v2208 = vadd.f32 %v2046, %v2172
        %v2209 = vadd.f32 %v2047, %v2177
        %v2210 = vadd.f32 %v2048, %v2182
        %v2211 = vadd.f32 %v2049, %v2187
        %v2212 = vadd.f32 %v2050, %v2192
        %v2213 = vadd.f32 %v2051, %v2197
        %v2214 = vadd.f32 %v2052, %v2202
        %v2215 = vld [vmem:[%s228 + $0x60] sm:$0xff]
        %v2216 = vld [vmem:[%s228 + $0xe0] sm:$0xff]
        %v2217 = vld [vmem:[%s228 + $0x160] sm:$0xff]
        %v2218 = vld [vmem:[%s228 + $0x1e0] sm:$0xff]
        %v2219 = vld [vmem:[%s228 + $0x260] sm:$0xff]
        %v2220 = vld [vmem:[%s228 + $0x2e0] sm:$0xff]
        %v2221 = vld [vmem:[%s228 + $0x360] sm:$0xff]
        %v2222 = vld [vmem:[%s228 + $0x3e0] sm:$0xff]
        %v2223 = vld [vmem:[%s228 + $0x460] sm:$0xff]
        %v2224 = vld [vmem:[%s228 + $0x4e0] sm:$0xff]
        %v2225 = vmul.f32 %v2215, %v282
        %v2226 = vmul.f32 %v2216, %v283
        %v2227 = vmul.f32 %v2217, %v284
        %v2228 = vmul.f32 %v2218, %v285
        %v2229 = vmul.f32 %v2219, %v286
        %v2230 = vmul.f32 %v2220, %v287
        %v2231 = vmul.f32 %v2221, %v288
        %v2232 = vmul.f32 %v2222, %v289
        %v2233 = vmul.f32 %v2223, %v290
        %v2234 = vmul.f32 %v2224, %v291
        %s2235 = scalar_lea.vmem %s2, 1536
        %v2236 = vld [vmem:[%s2235] sm:$0xff]
        %v2237 = vld [vmem:[%s2235 + $0x8] sm:$0xff]
        %v2238 = vld [vmem:[%s2235 + $0x10] sm:$0xff]
        %v2239 = vld [vmem:[%s2235 + $0x18] sm:$0xff]
        %v2240 = vld [vmem:[%s2235 + $0x20] sm:$0xff]
        %v2241 = vld [vmem:[%s2235 + $0x28] sm:$0xff]
        %v2242 = vld [vmem:[%s2235 + $0x30] sm:$0xff]
        %v2243 = vld [vmem:[%s2235 + $0x38] sm:$0xff]
        %v2244 = vld [vmem:[%s2235 + $0x40] sm:$0xff]
        %v2245 = vld [vmem:[%s2235 + $0x48] sm:$0xff]
        %v2246 = vld [vmem:[%s2235 + $0x50] sm:$0xff]
        %v2247 = vld [vmem:[%s2235 + $0x58] sm:$0xff]
        %v2248 = vld [vmem:[%s2235 + $0x60] sm:$0xff]
        %v2249 = vld [vmem:[%s2235 + $0x68] sm:$0xff]
        %v2250 = vld [vmem:[%s2235 + $0x70] sm:$0xff]
        %v2251 = vld [vmem:[%s2235 + $0x78] sm:$0xff]
        %2252 = vmatprep.subr.mxu0 0.0
        %2253 = vmatpush1.msra.mxu0 %v2236
        %2254 = vmatprep.subr.mxu0 0.0
        %2255 = vmatpush1.msra.mxu0 %v2237
        %2256 = vmatprep.subr.mxu0 0.0
        %2257 = vmatpush1.msra.mxu0 %v2238
        %2258 = vmatprep.subr.mxu0 0.0
        %2259 = vmatpush1.msra.mxu0 %v2239
        %2260 = vmatprep.subr.mxu0 0.0
        %2261 = vmatpush1.msra.mxu0 %v2240
        %2262 = vmatprep.subr.mxu0 0.0
        %2263 = vmatpush1.msra.mxu0 %v2241
        %2264 = vmatprep.subr.mxu0 0.0
        %2265 = vmatpush1.msra.mxu0 %v2242
        %2266 = vmatprep.subr.mxu0 0.0
        %2267 = vmatpush1.msra.mxu0 %v2243
        %2268 = vmatprep.subr.mxu0 0.0
        %2269 = vmatpush1.msra.mxu0 %v2244
        %2270 = vmatprep.subr.mxu0 0.0
        %2271 = vmatpush1.msra.mxu0 %v2245
        %2272 = vmatprep.subr.mxu0 0.0
        %2273 = vmatpush1.msra.mxu0 %v2246
        %2274 = vmatprep.subr.mxu0 0.0
        %2275 = vmatpush1.msra.mxu0 %v2247
        %2276 = vmatprep.subr.mxu0 0.0
        %2277 = vmatpush1.msra.mxu0 %v2248
        %2278 = vmatprep.subr.mxu0 0.0
        %2279 = vmatpush1.msra.mxu0 %v2249
        %2280 = vmatprep.subr.mxu0 0.0
        %2281 = vmatpush1.msra.mxu0 %v2250
        %2282 = vmatprep.subr.mxu0 0.0
        %2283 = vmatpush1.msra.mxu0 %v2251
        %2284 = vmatprep.subr.mxu0 0.0
        %2285 = vmatpush1.msra.mxu0 0.0
        %2286 = vmatprep.subr.mxu0 0.0
        %2287 = vmatpush1.msra.mxu0 0.0
        %2288 = vmatprep.subr.mxu0 0.0
        %2289 = vmatpush1.msra.mxu0 0.0
        %2290 = vmatprep.subr.mxu0 0.0
        %2291 = vmatpush1.msra.mxu0 0.0
        %2292 = vmatprep.subr.mxu0 0.0
        %2293 = vmatpush1.msra.mxu0 0.0
        %2294 = vmatprep.subr.mxu0 0.0
        %2295 = vmatpush1.msra.mxu0 0.0
        %2296 = vmatprep.subr.mxu0 0.0
        %2297 = vmatpush1.msra.mxu0 0.0
        %2298 = vmatprep.subr.mxu0 0.0
        %2299 = vmatpush1.msra.mxu0 0.0
        %2300 = vmatprep.subr.mxu0 0.0
        %2301 = vmatpush1.msra.mxu0 0.0
        %2302 = vmatprep.subr.mxu0 0.0
        %2303 = vmatpush1.msra.mxu0 0.0
        %2304 = vmatprep.subr.mxu0 0.0
        %2305 = vmatpush1.msra.mxu0 0.0
        %2306 = vmatprep.subr.mxu0 0.0
        %2307 = vmatpush1.msra.mxu0 0.0
        %2308 = vmatprep.subr.mxu0 0.0
        %2309 = vmatpush1.msra.mxu0 0.0
        %2310 = vmatprep.subr.mxu0 0.0
        %2311 = vmatpush1.msra.mxu0 0.0
        %2312 = vmatprep.subr.mxu0 0.0
        %2313 = vmatpush1.msra.mxu0 0.0
        %2314 = vmatprep.subr.mxu0 0.0
        %2315 = vmatpush1.msra.mxu0 0.0
        %2316 = vmatprep.mubr.f32.mxu0 0.0
        %2317 = vmatmul.mubr.f32.gmra.mrb[0].mxu0 %v2225
        %v2318 = vpop.f32.mrb[0].mxu0
        %v2319 = vadd.f32 0.0, %v2318
        %v2320 = vpop.f32.mrb[0].mxu0
        %2321 = vmatprep.mubr.f32.mxu0 0.0
        %2322 = vmatmul.mubr.f32.gmra.mrb[0].mxu0 %v2226
        %v2323 = vpop.f32.mrb[0].mxu0
        %v2324 = vadd.f32 0.0, %v2323
        %v2325 = vpop.f32.mrb[0].mxu0
        %2326 = vmatprep.mubr.f32.mxu0 0.0
        %2327 = vmatmul.mubr.f32.gmra.mrb[0].mxu0 %v2227
        %v2328 = vpop.f32.mrb[0].mxu0
        %v2329 = vadd.f32 0.0, %v2328
        %v2330 = vpop.f32.mrb[0].mxu0
        %2331 = vmatprep.mubr.f32.mxu0 0.0
        %2332 = vmatmul.mubr.f32.gmra.mrb[0].mxu0 %v2228
        %v2333 = vpop.f32.mrb[0].mxu0
        %v2334 = vadd.f32 0.0, %v2333
        %v2335 = vpop.f32.mrb[0].mxu0
        %2336 = vmatprep.mubr.f32.mxu0 0.0
        %2337 = vmatmul.mubr.f32.gmra.mrb[0].mxu0 %v2229
        %v2338 = vpop.f32.mrb[0].mxu0
        %v2339 = vadd.f32 0.0, %v2338
        %v2340 = vpop.f32.mrb[0].mxu0
        %2341 = vmatprep.mubr.f32.mxu0 0.0
        %2342 = vmatmul.mubr.f32.gmra.mrb[0].mxu0 %v2230
        %v2343 = vpop.f32.mrb[0].mxu0
        %v2344 = vadd.f32 0.0, %v2343
        %v2345 = vpop.f32.mrb[0].mxu0
        %2346 = vmatprep.mubr.f32.mxu0 0.0
        %2347 = vmatmul.mubr.f32.gmra.mrb[0].mxu0 %v2231
        %v2348 = vpop.f32.mrb[0].mxu0
        %v2349 = vadd.f32 0.0, %v2348
        %v2350 = vpop.f32.mrb[0].mxu0
        %2351 = vmatprep.mubr.f32.mxu0 0.0
        %2352 = vmatmul.mubr.f32.gmra.mrb[0].mxu0 %v2232
        %v2353 = vpop.f32.mrb[0].mxu0
        %v2354 = vadd.f32 0.0, %v2353
        %v2355 = vpop.f32.mrb[0].mxu0
        %2356 = vmatprep.mubr.f32.mxu0 0.0
        %2357 = vmatmul.mubr.f32.gmra.mrb[0].mxu0 %v2233
        %v2358 = vpop.f32.mrb[0].mxu0
        %v2359 = vadd.f32 0.0, %v2358
        %v2360 = vpop.f32.mrb[0].mxu0
        %2361 = vmatprep.mubr.f32.mxu0 0.0
        %2362 = vmatmul.mubr.f32.gmra.mrb[0].mxu0 %v2234
        %v2363 = vpop.f32.mrb[0].mxu0
        %v2364 = vadd.f32 0.0, %v2363
        %v2365 = vpop.f32.mrb[0].mxu0
        %2366 = vdwg.mxu0
        %v2367 = vadd.f32 %v2205, %v2319
        %v2368 = vadd.f32 %v2206, %v2324
        %v2369 = vadd.f32 %v2207, %v2329
        %v2370 = vadd.f32 %v2208, %v2334
        %v2371 = vadd.f32 %v2209, %v2339
        %v2372 = vadd.f32 %v2210, %v2344
        %v2373 = vadd.f32 %v2211, %v2349
        %v2374 = vadd.f32 %v2212, %v2354
        %v2375 = vadd.f32 %v2213, %v2359
        %v2376 = vadd.f32 %v2214, %v2364
        %v2377 = vld [vmem:[%s228 + $0x68] sm:$0xff]
        %v2378 = vld [vmem:[%s228 + $0xe8] sm:$0xff]
        %v2379 = vld [vmem:[%s228 + $0x168] sm:$0xff]
        %v2380 = vld [vmem:[%s228 + $0x1e8] sm:$0xff]
        %v2381 = vld [vmem:[%s228 + $0x268] sm:$0xff]
        %v2382 = vld [vmem:[%s228 + $0x2e8] sm:$0xff]
        %v2383 = vld [vmem:[%s228 + $0x368] sm:$0xff]
        %v2384 = vld [vmem:[%s228 + $0x3e8] sm:$0xff]
        %v2385 = vld [vmem:[%s228 + $0x468] sm:$0xff]
        %v2386 = vld [vmem:[%s228 + $0x4e8] sm:$0xff]
        %v2387 = vmul.f32 %v2377, %v282
        %v2388 = vmul.f32 %v2378, %v283
        %v2389 = vmul.f32 %v2379, %v284
        %v2390 = vmul.f32 %v2380, %v285
        %v2391 = vmul.f32 %v2381, %v286
        %v2392 = vmul.f32 %v2382, %v287
        %v2393 = vmul.f32 %v2383, %v288
        %v2394 = vmul.f32 %v2384, %v289
        %v2395 = vmul.f32 %v2385, %v290
        %v2396 = vmul.f32 %v2386, %v291
        %s2397 = scalar_lea.vmem %s2, 1664
        %v2398 = vld [vmem:[%s2397] sm:$0xff]
        %v2399 = vld [vmem:[%s2397 + $0x8] sm:$0xff]
        %v2400 = vld [vmem:[%s2397 + $0x10] sm:$0xff]
        %v2401 = vld [vmem:[%s2397 + $0x18] sm:$0xff]
        %v2402 = vld [vmem:[%s2397 + $0x20] sm:$0xff]
        %v2403 = vld [vmem:[%s2397 + $0x28] sm:$0xff]
        %v2404 = vld [vmem:[%s2397 + $0x30] sm:$0xff]
        %v2405 = vld [vmem:[%s2397 + $0x38] sm:$0xff]
        %v2406 = vld [vmem:[%s2397 + $0x40] sm:$0xff]
        %v2407 = vld [vmem:[%s2397 + $0x48] sm:$0xff]
        %v2408 = vld [vmem:[%s2397 + $0x50] sm:$0xff]
        %v2409 = vld [vmem:[%s2397 + $0x58] sm:$0xff]
        %v2410 = vld [vmem:[%s2397 + $0x60] sm:$0xff]
        %v2411 = vld [vmem:[%s2397 + $0x68] sm:$0xff]
        %v2412 = vld [vmem:[%s2397 + $0x70] sm:$0xff]
        %v2413 = vld [vmem:[%s2397 + $0x78] sm:$0xff]
        %2414 = vmatprep.subr.mxu0 0.0
        %2415 = vmatpush1.msra.mxu0 %v2398
        %2416 = vmatprep.subr.mxu0 0.0
        %2417 = vmatpush1.msra.mxu0 %v2399
        %2418 = vmatprep.subr.mxu0 0.0
        %2419 = vmatpush1.msra.mxu0 %v2400
        %2420 = vmatprep.subr.mxu0 0.0
        %2421 = vmatpush1.msra.mxu0 %v2401
        %2422 = vmatprep.subr.mxu0 0.0
        %2423 = vmatpush1.msra.mxu0 %v2402
        %2424 = vmatprep.subr.mxu0 0.0
        %2425 = vmatpush1.msra.mxu0 %v2403
        %2426 = vmatprep.subr.mxu0 0.0
        %2427 = vmatpush1.msra.mxu0 %v2404
        %2428 = vmatprep.subr.mxu0 0.0
        %2429 = vmatpush1.msra.mxu0 %v2405
        %2430 = vmatprep.subr.mxu0 0.0
        %2431 = vmatpush1.msra.mxu0 %v2406
        %2432 = vmatprep.subr.mxu0 0.0
        %2433 = vmatpush1.msra.mxu0 %v2407
        %2434 = vmatprep.subr.mxu0 0.0
        %2435 = vmatpush1.msra.mxu0 %v2408
        %2436 = vmatprep.subr.mxu0 0.0
        %2437 = vmatpush1.msra.mxu0 %v2409
        %2438 = vmatprep.subr.mxu0 0.0
        %2439 = vmatpush1.msra.mxu0 %v2410
        %2440 = vmatprep.subr.mxu0 0.0
        %2441 = vmatpush1.msra.mxu0 %v2411
        %2442 = vmatprep.subr.mxu0 0.0
        %2443 = vmatpush1.msra.mxu0 %v2412
        %2444 = vmatprep.subr.mxu0 0.0
        %2445 = vmatpush1.msra.mxu0 %v2413
        %2446 = vmatprep.subr.mxu0 0.0
        %2447 = vmatpush1.msra.mxu0 0.0
        %2448 = vmatprep.subr.mxu0 0.0
        %2449 = vmatpush1.msra.mxu0 0.0
        %2450 = vmatprep.subr.mxu0 0.0
        %2451 = vmatpush1.msra.mxu0 0.0
        %2452 = vmatprep.subr.mxu0 0.0
        %2453 = vmatpush1.msra.mxu0 0.0
        %2454 = vmatprep.subr.mxu0 0.0
        %2455 = vmatpush1.msra.mxu0 0.0
        %2456 = vmatprep.subr.mxu0 0.0
        %2457 = vmatpush1.msra.mxu0 0.0
        %2458 = vmatprep.subr.mxu0 0.0
        %2459 = vmatpush1.msra.mxu0 0.0
        %2460 = vmatprep.subr.mxu0 0.0
        %2461 = vmatpush1.msra.mxu0 0.0
        %2462 = vmatprep.subr.mxu0 0.0
        %2463 = vmatpush1.msra.mxu0 0.0
        %2464 = vmatprep.subr.mxu0 0.0
        %2465 = vmatpush1.msra.mxu0 0.0
        %2466 = vmatprep.subr.mxu0 0.0
        %2467 = vmatpush1.msra.mxu0 0.0
        %2468 = vmatprep.subr.mxu0 0.0
        %2469 = vmatpush1.msra.mxu0 0.0
        %2470 = vmatprep.subr.mxu0 0.0
        %2471 = vmatpush1.msra.mxu0 0.0
        %2472 = vmatprep.subr.mxu0 0.0
        %2473 = vmatpush1.msra.mxu0 0.0
        %2474 = vmatprep.subr.mxu0 0.0
        %2475 = vmatpush1.msra.mxu0 0.0
        %2476 = vmatprep.subr.mxu0 0.0
        %2477 = vmatpush1.msra.mxu0 0.0
        %2478 = vmatprep.mubr.f32.mxu0 0.0
        %2479 = vmatmul.mubr.f32.gmra.mrb[0].mxu0 %v2387
        %v2480 = vpop.f32.mrb[0].mxu0
        %v2481 = vadd.f32 0.0, %v2480
        %v2482 = vpop.f32.mrb[0].mxu0
        %2483 = vmatprep.mubr.f32.mxu0 0.0
        %2484 = vmatmul.mubr.f32.gmra.mrb[0].mxu0 %v2388
        %v2485 = vpop.f32.mrb[0].mxu0
        %v2486 = vadd.f32 0.0, %v2485
        %v2487 = vpop.f32.mrb[0].mxu0
        %2488 = vmatprep.mubr.f32.mxu0 0.0
        %2489 = vmatmul.mubr.f32.gmra.mrb[0].mxu0 %v2389
        %v2490 = vpop.f32.mrb[0].mxu0
        %v2491 = vadd.f32 0.0, %v2490
        %v2492 = vpop.f32.mrb[0].mxu0
        %2493 = vmatprep.mubr.f32.mxu0 0.0
        %2494 = vmatmul.mubr.f32.gmra.mrb[0].mxu0 %v2390
        %v2495 = vpop.f32.mrb[0].mxu0
        %v2496 = vadd.f32 0.0, %v2495
        %v2497 = vpop.f32.mrb[0].mxu0
        %2498 = vmatprep.mubr.f32.mxu0 0.0
        %2499 = vmatmul.mubr.f32.gmra.mrb[0].mxu0 %v2391
        %v2500 = vpop.f32.mrb[0].mxu0
        %v2501 = vadd.f32 0.0, %v2500
        %v2502 = vpop.f32.mrb[0].mxu0
        %2503 = vmatprep.mubr.f32.mxu0 0.0
        %2504 = vmatmul.mubr.f32.gmra.mrb[0].mxu0 %v2392
        %v2505 = vpop.f32.mrb[0].mxu0
        %v2506 = vadd.f32 0.0, %v2505
        %v2507 = vpop.f32.mrb[0].mxu0
        %2508 = vmatprep.mubr.f32.mxu0 0.0
        %2509 = vmatmul.mubr.f32.gmra.mrb[0].mxu0 %v2393
        %v2510 = vpop.f32.mrb[0].mxu0
        %v2511 = vadd.f32 0.0, %v2510
        %v2512 = vpop.f32.mrb[0].mxu0
        %2513 = vmatprep.mubr.f32.mxu0 0.0
        %2514 = vmatmul.mubr.f32.gmra.mrb[0].mxu0 %v2394
        %v2515 = vpop.f32.mrb[0].mxu0
        %v2516 = vadd.f32 0.0, %v2515
        %v2517 = vpop.f32.mrb[0].mxu0
        %2518 = vmatprep.mubr.f32.mxu0 0.0
        %2519 = vmatmul.mubr.f32.gmra.mrb[0].mxu0 %v2395
        %v2520 = vpop.f32.mrb[0].mxu0
        %v2521 = vadd.f32 0.0, %v2520
        %v2522 = vpop.f32.mrb[0].mxu0
        %2523 = vmatprep.mubr.f32.mxu0 0.0
        %2524 = vmatmul.mubr.f32.gmra.mrb[0].mxu0 %v2396
        %v2525 = vpop.f32.mrb[0].mxu0
        %v2526 = vadd.f32 0.0, %v2525
        %v2527 = vpop.f32.mrb[0].mxu0
        %2528 = vdwg.mxu0
        %v2529 = vadd.f32 %v2367, %v2481
        %v2530 = vadd.f32 %v2368, %v2486
        %v2531 = vadd.f32 %v2369, %v2491
        %v2532 = vadd.f32 %v2370, %v2496
        %v2533 = vadd.f32 %v2371, %v2501
        %v2534 = vadd.f32 %v2372, %v2506
        %v2535 = vadd.f32 %v2373, %v2511
        %v2536 = vadd.f32 %v2374, %v2516
        %v2537 = vadd.f32 %v2375, %v2521
        %v2538 = vadd.f32 %v2376, %v2526
        %v2539 = vld [vmem:[%s228 + $0x70] sm:$0xff]
        %v2540 = vld [vmem:[%s228 + $0xf0] sm:$0xff]
        %v2541 = vld [vmem:[%s228 + $0x170] sm:$0xff]
        %v2542 = vld [vmem:[%s228 + $0x1f0] sm:$0xff]
        %v2543 = vld [vmem:[%s228 + $0x270] sm:$0xff]
        %v2544 = vld [vmem:[%s228 + $0x2f0] sm:$0xff]
        %v2545 = vld [vmem:[%s228 + $0x370] sm:$0xff]
        %v2546 = vld [vmem:[%s228 + $0x3f0] sm:$0xff]
        %v2547 = vld [vmem:[%s228 + $0x470] sm:$0xff]
        %v2548 = vld [vmem:[%s228 + $0x4f0] sm:$0xff]
        %v2549 = vmul.f32 %v2539, %v282
        %v2550 = vmul.f32 %v2540, %v283
        %v2551 = vmul.f32 %v2541, %v284
        %v2552 = vmul.f32 %v2542, %v285
        %v2553 = vmul.f32 %v2543, %v286
        %v2554 = vmul.f32 %v2544, %v287
        %v2555 = vmul.f32 %v2545, %v288
        %v2556 = vmul.f32 %v2546, %v289
        %v2557 = vmul.f32 %v2547, %v290
        %v2558 = vmul.f32 %v2548, %v291
        %s2559 = scalar_lea.vmem %s2, 1792
        %v2560 = vld [vmem:[%s2559] sm:$0xff]
        %v2561 = vld [vmem:[%s2559 + $0x8] sm:$0xff]
        %v2562 = vld [vmem:[%s2559 + $0x10] sm:$0xff]
        %v2563 = vld [vmem:[%s2559 + $0x18] sm:$0xff]
        %v2564 = vld [vmem:[%s2559 + $0x20] sm:$0xff]
        %v2565 = vld [vmem:[%s2559 + $0x28] sm:$0xff]
        %v2566 = vld [vmem:[%s2559 + $0x30] sm:$0xff]
        %v2567 = vld [vmem:[%s2559 + $0x38] sm:$0xff]
        %v2568 = vld [vmem:[%s2559 + $0x40] sm:$0xff]
        %v2569 = vld [vmem:[%s2559 + $0x48] sm:$0xff]
        %v2570 = vld [vmem:[%s2559 + $0x50] sm:$0xff]
        %v2571 = vld [vmem:[%s2559 + $0x58] sm:$0xff]
        %v2572 = vld [vmem:[%s2559 + $0x60] sm:$0xff]
        %v2573 = vld [vmem:[%s2559 + $0x68] sm:$0xff]
        %v2574 = vld [vmem:[%s2559 + $0x70] sm:$0xff]
        %v2575 = vld [vmem:[%s2559 + $0x78] sm:$0xff]
        %2576 = vmatprep.subr.mxu0 0.0
        %2577 = vmatpush1.msra.mxu0 %v2560
        %2578 = vmatprep.subr.mxu0 0.0
        %2579 = vmatpush1.msra.mxu0 %v2561
        %2580 = vmatprep.subr.mxu0 0.0
        %2581 = vmatpush1.msra.mxu0 %v2562
        %2582 = vmatprep.subr.mxu0 0.0
        %2583 = vmatpush1.msra.mxu0 %v2563
        %2584 = vmatprep.subr.mxu0 0.0
        %2585 = vmatpush1.msra.mxu0 %v2564
        %2586 = vmatprep.subr.mxu0 0.0
        %2587 = vmatpush1.msra.mxu0 %v2565
        %2588 = vmatprep.subr.mxu0 0.0
        %2589 = vmatpush1.msra.mxu0 %v2566
        %2590 = vmatprep.subr.mxu0 0.0
        %2591 = vmatpush1.msra.mxu0 %v2567
        %2592 = vmatprep.subr.mxu0 0.0
        %2593 = vmatpush1.msra.mxu0 %v2568
        %2594 = vmatprep.subr.mxu0 0.0
        %2595 = vmatpush1.msra.mxu0 %v2569
        %2596 = vmatprep.subr.mxu0 0.0
        %2597 = vmatpush1.msra.mxu0 %v2570
        %2598 = vmatprep.subr.mxu0 0.0
        %2599 = vmatpush1.msra.mxu0 %v2571
        %2600 = vmatprep.subr.mxu0 0.0
        %2601 = vmatpush1.msra.mxu0 %v2572
        %2602 = vmatprep.subr.mxu0 0.0
        %2603 = vmatpush1.msra.mxu0 %v2573
        %2604 = vmatprep.subr.mxu0 0.0
        %2605 = vmatpush1.msra.mxu0 %v2574
        %2606 = vmatprep.subr.mxu0 0.0
        %2607 = vmatpush1.msra.mxu0 %v2575
        %2608 = vmatprep.subr.mxu0 0.0
        %2609 = vmatpush1.msra.mxu0 0.0
        %2610 = vmatprep.subr.mxu0 0.0
        %2611 = vmatpush1.msra.mxu0 0.0
        %2612 = vmatprep.subr.mxu0 0.0
        %2613 = vmatpush1.msra.mxu0 0.0
        %2614 = vmatprep.subr.mxu0 0.0
        %2615 = vmatpush1.msra.mxu0 0.0
        %2616 = vmatprep.subr.mxu0 0.0
        %2617 = vmatpush1.msra.mxu0 0.0
        %2618 = vmatprep.subr.mxu0 0.0
        %2619 = vmatpush1.msra.mxu0 0.0
        %2620 = vmatprep.subr.mxu0 0.0
        %2621 = vmatpush1.msra.mxu0 0.0
        %2622 = vmatprep.subr.mxu0 0.0
        %2623 = vmatpush1.msra.mxu0 0.0
        %2624 = vmatprep.subr.mxu0 0.0
        %2625 = vmatpush1.msra.mxu0 0.0
        %2626 = vmatprep.subr.mxu0 0.0
        %2627 = vmatpush1.msra.mxu0 0.0
        %2628 = vmatprep.subr.mxu0 0.0
        %2629 = vmatpush1.msra.mxu0 0.0
        %2630 = vmatprep.subr.mxu0 0.0
        %2631 = vmatpush1.msra.mxu0 0.0
        %2632 = vmatprep.subr.mxu0 0.0
        %2633 = vmatpush1.msra.mxu0 0.0
        %2634 = vmatprep.subr.mxu0 0.0
        %2635 = vmatpush1.msra.mxu0 0.0
        %2636 = vmatprep.subr.mxu0 0.0
        %2637 = vmatpush1.msra.mxu0 0.0
        %2638 = vmatprep.subr.mxu0 0.0
        %2639 = vmatpush1.msra.mxu0 0.0
        %2640 = vmatprep.mubr.f32.mxu0 0.0
        %2641 = vmatmul.mubr.f32.gmra.mrb[0].mxu0 %v2549
        %v2642 = vpop.f32.mrb[0].mxu0
        %v2643 = vadd.f32 0.0, %v2642
        %v2644 = vpop.f32.mrb[0].mxu0
        %2645 = vmatprep.mubr.f32.mxu0 0.0
        %2646 = vmatmul.mubr.f32.gmra.mrb[0].mxu0 %v2550
        %v2647 = vpop.f32.mrb[0].mxu0
        %v2648 = vadd.f32 0.0, %v2647
        %v2649 = vpop.f32.mrb[0].mxu0
        %2650 = vmatprep.mubr.f32.mxu0 0.0
        %2651 = vmatmul.mubr.f32.gmra.mrb[0].mxu0 %v2551
        %v2652 = vpop.f32.mrb[0].mxu0
        %v2653 = vadd.f32 0.0, %v2652
        %v2654 = vpop.f32.mrb[0].mxu0
        %2655 = vmatprep.mubr.f32.mxu0 0.0
        %2656 = vmatmul.mubr.f32.gmra.mrb[0].mxu0 %v2552
        %v2657 = vpop.f32.mrb[0].mxu0
        %v2658 = vadd.f32 0.0, %v2657
        %v2659 = vpop.f32.mrb[0].mxu0
        %2660 = vmatprep.mubr.f32.mxu0 0.0
        %2661 = vmatmul.mubr.f32.gmra.mrb[0].mxu0 %v2553
        %v2662 = vpop.f32.mrb[0].mxu0
        %v2663 = vadd.f32 0.0, %v2662
        %v2664 = vpop.f32.mrb[0].mxu0
        %2665 = vmatprep.mubr.f32.mxu0 0.0
        %2666 = vmatmul.mubr.f32.gmra.mrb[0].mxu0 %v2554
        %v2667 = vpop.f32.mrb[0].mxu0
        %v2668 = vadd.f32 0.0, %v2667
        %v2669 = vpop.f32.mrb[0].mxu0
        %2670 = vmatprep.mubr.f32.mxu0 0.0
        %2671 = vmatmul.mubr.f32.gmra.mrb[0].mxu0 %v2555
        %v2672 = vpop.f32.mrb[0].mxu0
        %v2673 = vadd.f32 0.0, %v2672
        %v2674 = vpop.f32.mrb[0].mxu0
        %2675 = vmatprep.mubr.f32.mxu0 0.0
        %2676 = vmatmul.mubr.f32.gmra.mrb[0].mxu0 %v2556
        %v2677 = vpop.f32.mrb[0].mxu0
        %v2678 = vadd.f32 0.0, %v2677
        %v2679 = vpop.f32.mrb[0].mxu0
        %2680 = vmatprep.mubr.f32.mxu0 0.0
        %2681 = vmatmul.mubr.f32.gmra.mrb[0].mxu0 %v2557
        %v2682 = vpop.f32.mrb[0].mxu0
        %v2683 = vadd.f32 0.0, %v2682
        %v2684 = vpop.f32.mrb[0].mxu0
        %2685 = vmatprep.mubr.f32.mxu0 0.0
        %2686 = vmatmul.mubr.f32.gmra.mrb[0].mxu0 %v2558
        %v2687 = vpop.f32.mrb[0].mxu0
        %v2688 = vadd.f32 0.0, %v2687
        %v2689 = vpop.f32.mrb[0].mxu0
        %2690 = vdwg.mxu0
        %v2691 = vadd.f32 %v2529, %v2643
        %v2692 = vadd.f32 %v2530, %v2648
        %v2693 = vadd.f32 %v2531, %v2653
        %v2694 = vadd.f32 %v2532, %v2658
        %v2695 = vadd.f32 %v2533, %v2663
        %v2696 = vadd.f32 %v2534, %v2668
        %v2697 = vadd.f32 %v2535, %v2673
        %v2698 = vadd.f32 %v2536, %v2678
        %v2699 = vadd.f32 %v2537, %v2683
        %v2700 = vadd.f32 %v2538, %v2688
        %v2701 = vld [vmem:[%s228 + $0x78] sm:$0xff]
        %v2702 = vld [vmem:[%s228 + $0xf8] sm:$0xff]
        %v2703 = vld [vmem:[%s228 + $0x178] sm:$0xff]
        %v2704 = vld [vmem:[%s228 + $0x1f8] sm:$0xff]
        %v2705 = vld [vmem:[%s228 + $0x278] sm:$0xff]
        %v2706 = vld [vmem:[%s228 + $0x2f8] sm:$0xff]
        %v2707 = vld [vmem:[%s228 + $0x378] sm:$0xff]
        %v2708 = vld [vmem:[%s228 + $0x3f8] sm:$0xff]
        %v2709 = vld [vmem:[%s228 + $0x478] sm:$0xff]
        %v2710 = vld [vmem:[%s228 + $0x4f8] sm:$0xff]
        %v2711 = vmul.f32 %v2701, %v282
        %v2712 = vmul.f32 %v2702, %v283
        %v2713 = vmul.f32 %v2703, %v284
        %v2714 = vmul.f32 %v2704, %v285
        %v2715 = vmul.f32 %v2705, %v286
        %v2716 = vmul.f32 %v2706, %v287
        %v2717 = vmul.f32 %v2707, %v288
        %v2718 = vmul.f32 %v2708, %v289
        %v2719 = vmul.f32 %v2709, %v290
        %v2720 = vmul.f32 %v2710, %v291
        %s2721 = scalar_lea.vmem %s2, 1920
        %v2722 = vld [vmem:[%s2721] sm:$0xff]
        %v2723 = vld [vmem:[%s2721 + $0x8] sm:$0xff]
        %v2724 = vld [vmem:[%s2721 + $0x10] sm:$0xff]
        %v2725 = vld [vmem:[%s2721 + $0x18] sm:$0xff]
        %v2726 = vld [vmem:[%s2721 + $0x20] sm:$0xff]
        %v2727 = vld [vmem:[%s2721 + $0x28] sm:$0xff]
        %v2728 = vld [vmem:[%s2721 + $0x30] sm:$0xff]
        %v2729 = vld [vmem:[%s2721 + $0x38] sm:$0xff]
        %v2730 = vld [vmem:[%s2721 + $0x40] sm:$0xff]
        %v2731 = vld [vmem:[%s2721 + $0x48] sm:$0xff]
        %v2732 = vld [vmem:[%s2721 + $0x50] sm:$0xff]
        %v2733 = vld [vmem:[%s2721 + $0x58] sm:$0xff]
        %v2734 = vld [vmem:[%s2721 + $0x60] sm:$0xff]
        %v2735 = vld [vmem:[%s2721 + $0x68] sm:$0xff]
        %v2736 = vld [vmem:[%s2721 + $0x70] sm:$0xff]
        %v2737 = vld [vmem:[%s2721 + $0x78] sm:$0xff]
        %2738 = vmatprep.subr.mxu0 0.0
        %2739 = vmatpush1.msra.mxu0 %v2722
        %2740 = vmatprep.subr.mxu0 0.0
        %2741 = vmatpush1.msra.mxu0 %v2723
        %2742 = vmatprep.subr.mxu0 0.0
        %2743 = vmatpush1.msra.mxu0 %v2724
        %2744 = vmatprep.subr.mxu0 0.0
        %2745 = vmatpush1.msra.mxu0 %v2725
        %2746 = vmatprep.subr.mxu0 0.0
        %2747 = vmatpush1.msra.mxu0 %v2726
        %2748 = vmatprep.subr.mxu0 0.0
        %2749 = vmatpush1.msra.mxu0 %v2727
        %2750 = vmatprep.subr.mxu0 0.0
        %2751 = vmatpush1.msra.mxu0 %v2728
        %2752 = vmatprep.subr.mxu0 0.0
        %2753 = vmatpush1.msra.mxu0 %v2729
        %2754 = vmatprep.subr.mxu0 0.0
        %2755 = vmatpush1.msra.mxu0 %v2730
        %2756 = vmatprep.subr.mxu0 0.0
        %2757 = vmatpush1.msra.mxu0 %v2731
        %2758 = vmatprep.subr.mxu0 0.0
        %2759 = vmatpush1.msra.mxu0 %v2732
        %2760 = vmatprep.subr.mxu0 0.0
        %2761 = vmatpush1.msra.mxu0 %v2733
        %2762 = vmatprep.subr.mxu0 0.0
        %2763 = vmatpush1.msra.mxu0 %v2734
        %2764 = vmatprep.subr.mxu0 0.0
        %2765 = vmatpush1.msra.mxu0 %v2735
        %2766 = vmatprep.subr.mxu0 0.0
        %2767 = vmatpush1.msra.mxu0 %v2736
        %2768 = vmatprep.subr.mxu0 0.0
        %2769 = vmatpush1.msra.mxu0 %v2737
        %2770 = vmatprep.subr.mxu0 0.0
        %2771 = vmatpush1.msra.mxu0 0.0
        %2772 = vmatprep.subr.mxu0 0.0
        %2773 = vmatpush1.msra.mxu0 0.0
        %2774 = vmatprep.subr.mxu0 0.0
        %2775 = vmatpush1.msra.mxu0 0.0
        %2776 = vmatprep.subr.mxu0 0.0
        %2777 = vmatpush1.msra.mxu0 0.0
        %2778 = vmatprep.subr.mxu0 0.0
        %2779 = vmatpush1.msra.mxu0 0.0
        %2780 = vmatprep.subr.mxu0 0.0
        %2781 = vmatpush1.msra.mxu0 0.0
        %2782 = vmatprep.subr.mxu0 0.0
        %2783 = vmatpush1.msra.mxu0 0.0
        %2784 = vmatprep.subr.mxu0 0.0
        %2785 = vmatpush1.msra.mxu0 0.0
        %2786 = vmatprep.subr.mxu0 0.0
        %2787 = vmatpush1.msra.mxu0 0.0
        %2788 = vmatprep.subr.mxu0 0.0
        %2789 = vmatpush1.msra.mxu0 0.0
        %2790 = vmatprep.subr.mxu0 0.0
        %2791 = vmatpush1.msra.mxu0 0.0
        %2792 = vmatprep.subr.mxu0 0.0
        %2793 = vmatpush1.msra.mxu0 0.0
        %2794 = vmatprep.subr.mxu0 0.0
        %2795 = vmatpush1.msra.mxu0 0.0
        %2796 = vmatprep.subr.mxu0 0.0
        %2797 = vmatpush1.msra.mxu0 0.0
        %2798 = vmatprep.subr.mxu0 0.0
        %2799 = vmatpush1.msra.mxu0 0.0
        %2800 = vmatprep.subr.mxu0 0.0
        %2801 = vmatpush1.msra.mxu0 0.0
        %2802 = vmatprep.mubr.f32.mxu0 0.0
        %2803 = vmatmul.mubr.f32.gmra.mrb[0].mxu0 %v2711
        %v2804 = vpop.f32.mrb[0].mxu0
        %v2805 = vadd.f32 0.0, %v2804
        %v2806 = vpop.f32.mrb[0].mxu0
        %2807 = vmatprep.mubr.f32.mxu0 0.0
        %2808 = vmatmul.mubr.f32.gmra.mrb[0].mxu0 %v2712
        %v2809 = vpop.f32.mrb[0].mxu0
        %v2810 = vadd.f32 0.0, %v2809
        %v2811 = vpop.f32.mrb[0].mxu0
        %2812 = vmatprep.mubr.f32.mxu0 0.0
        %2813 = vmatmul.mubr.f32.gmra.mrb[0].mxu0 %v2713
        %v2814 = vpop.f32.mrb[0].mxu0
        %v2815 = vadd.f32 0.0, %v2814
        %v2816 = vpop.f32.mrb[0].mxu0
        %2817 = vmatprep.mubr.f32.mxu0 0.0
        %2818 = vmatmul.mubr.f32.gmra.mrb[0].mxu0 %v2714
        %v2819 = vpop.f32.mrb[0].mxu0
        %v2820 = vadd.f32 0.0, %v2819
        %v2821 = vpop.f32.mrb[0].mxu0
        %2822 = vmatprep.mubr.f32.mxu0 0.0
        %2823 = vmatmul.mubr.f32.gmra.mrb[0].mxu0 %v2715
        %v2824 = vpop.f32.mrb[0].mxu0
        %v2825 = vadd.f32 0.0, %v2824
        %v2826 = vpop.f32.mrb[0].mxu0
        %2827 = vmatprep.mubr.f32.mxu0 0.0
        %2828 = vmatmul.mubr.f32.gmra.mrb[0].mxu0 %v2716
        %v2829 = vpop.f32.mrb[0].mxu0
        %v2830 = vadd.f32 0.0, %v2829
        %v2831 = vpop.f32.mrb[0].mxu0
        %2832 = vmatprep.mubr.f32.mxu0 0.0
        %2833 = vmatmul.mubr.f32.gmra.mrb[0].mxu0 %v2717
        %v2834 = vpop.f32.mrb[0].mxu0
        %v2835 = vadd.f32 0.0, %v2834
        %v2836 = vpop.f32.mrb[0].mxu0
        %2837 = vmatprep.mubr.f32.mxu0 0.0
        %2838 = vmatmul.mubr.f32.gmra.mrb[0].mxu0 %v2718
        %v2839 = vpop.f32.mrb[0].mxu0
        %v2840 = vadd.f32 0.0, %v2839
        %v2841 = vpop.f32.mrb[0].mxu0
        %2842 = vmatprep.mubr.f32.mxu0 0.0
        %2843 = vmatmul.mubr.f32.gmra.mrb[0].mxu0 %v2719
        %v2844 = vpop.f32.mrb[0].mxu0
        %v2845 = vadd.f32 0.0, %v2844
        %v2846 = vpop.f32.mrb[0].mxu0
        %2847 = vmatprep.mubr.f32.mxu0 0.0
        %2848 = vmatmul.mubr.f32.gmra.mrb[0].mxu0 %v2720
        %v2849 = vpop.f32.mrb[0].mxu0
        %v2850 = vadd.f32 0.0, %v2849
        %v2851 = vpop.f32.mrb[0].mxu0
        %2852 = vdwg.mxu0
        %v2853 = vadd.f32 %v2691, %v2805
        %v2854 = vadd.f32 %v2692, %v2810
        %v2855 = vadd.f32 %v2693, %v2815
        %v2856 = vadd.f32 %v2694, %v2820
        %v2857 = vadd.f32 %v2695, %v2825
        %v2858 = vadd.f32 %v2696, %v2830
        %v2859 = vadd.f32 %v2697, %v2835
        %v2860 = vadd.f32 %v2698, %v2840
        %v2861 = vadd.f32 %v2699, %v2845
        %v2862 = vadd.f32 %v2700, %v2850
        %vm2863 = vcmask 523264
        %v2864 = vsel %vm2863, %v2853, -inf
        %2865 = vmax.xlane.f32.xlu0 %v2864
        %v2866 = vpop.xlane.xlu0 %2865
        %v2867 = vsel %vm2863, %v2854, -inf
        %2868 = vmax.xlane.f32.xlu0 %v2867
        %v2869 = vpop.xlane.xlu0 %2868
        %v2870 = vsel %vm2863, %v2855, -inf
        %2871 = vmax.xlane.f32.xlu0 %v2870
        %v2872 = vpop.xlane.xlu0 %2871
        %v2873 = vsel %vm2863, %v2856, -inf
        %2874 = vmax.xlane.f32.xlu0 %v2873
        %v2875 = vpop.xlane.xlu0 %2874
        %v2876 = vsel %vm2863, %v2857, -inf
        %2877 = vmax.xlane.f32.xlu0 %v2876
        %v2878 = vpop.xlane.xlu0 %2877
        %v2879 = vsel %vm2863, %v2858, -inf
        %2880 = vmax.xlane.f32.xlu0 %v2879
        %v2881 = vpop.xlane.xlu0 %2880
        %v2882 = vsel %vm2863, %v2859, -inf
        %2883 = vmax.xlane.f32.xlu0 %v2882
        %v2884 = vpop.xlane.xlu0 %2883
        %v2885 = vsel %vm2863, %v2860, -inf
        %2886 = vmax.xlane.f32.xlu0 %v2885
        %v2887 = vpop.xlane.xlu0 %2886
        %v2888 = vsel %vm2863, %v2861, -inf
        %2889 = vmax.xlane.f32.xlu0 %v2888
        %v2890 = vpop.xlane.xlu0 %2889
        %v2891 = vsel %vm2863, %v2862, -inf
        %2892 = vmax.xlane.f32.xlu0 %v2891
        %v2893 = vpop.xlane.xlu0 %2892
        %v2894 = vsub.f32 %v2853, %v2866
        %v2895 = vsub.f32 %v2854, %v2869
        %v2896 = vsub.f32 %v2855, %v2872
        %v2897 = vsub.f32 %v2856, %v2875
        %v2898 = vsub.f32 %v2857, %v2878
        %v2899 = vsub.f32 %v2858, %v2881
        %v2900 = vsub.f32 %v2859, %v2884
        %v2901 = vsub.f32 %v2860, %v2887
        %v2902 = vsub.f32 %v2861, %v2890
        %v2903 = vsub.f32 %v2862, %v2893
        %v2904 = vmul.f32 %v2894, 1.442695
        %v2905 = vpow.pop %v2904
        %v2906 = vmul.f32 %v2895, 1.442695
        %v2907 = vpow.pop %v2906
        %v2908 = vmul.f32 %v2896, 1.442695
        %v2909 = vpow.pop %v2908
        %v2910 = vmul.f32 %v2897, 1.442695
        %v2911 = vpow.pop %v2910
        %v2912 = vmul.f32 %v2898, 1.442695
        %v2913 = vpow.pop %v2912
        %v2914 = vmul.f32 %v2899, 1.442695
        %v2915 = vpow.pop %v2914
        %v2916 = vmul.f32 %v2900, 1.442695
        %v2917 = vpow.pop %v2916
        %v2918 = vmul.f32 %v2901, 1.442695
        %v2919 = vpow.pop %v2918
        %v2920 = vmul.f32 %v2902, 1.442695
        %v2921 = vpow.pop %v2920
        %v2922 = vmul.f32 %v2903, 1.442695
        %v2923 = vpow.pop %v2922
        %v2924 = vld [vmem:[%s3] sm:$0xff]
        %v2925 = vld [vmem:[%s3 + $0x8] sm:$0xff]
        %v2926 = vld [vmem:[%s3 + $0x10] sm:$0xff]
        %v2927 = vld [vmem:[%s3 + $0x18] sm:$0xff]
        %v2928 = vld [vmem:[%s3 + $0x20] sm:$0xff]
        %v2929 = vld [vmem:[%s3 + $0x28] sm:$0xff]
        %v2930 = vld [vmem:[%s3 + $0x30] sm:$0xff]
        %v2931 = vld [vmem:[%s3 + $0x38] sm:$0xff]
        %v2933 = vsel %vm2863, %v2905, 0
        %v2936 = vsel %vm2863, %v2907, 0
        %v2939 = vsel %vm2863, %v2909, 0
        %v2942 = vsel %vm2863, %v2911, 0
        %v2945 = vsel %vm2863, %v2913, 0
        %v2948 = vsel %vm2863, %v2915, 0
        %v2951 = vsel %vm2863, %v2917, 0
        %v2954 = vsel %vm2863, %v2919, 0
        %v2957 = vsel %vm2863, %v2921, 0
        %v2960 = vsel %vm2863, %v2923, 0
        %2962 = vmatprep.subr.mxu0 0.0
        %2963 = vmatpush1.msra.mxu0 %v2924
        %2964 = vmatprep.subr.mxu0 0.0
        %2965 = vmatpush1.msra.mxu0 %v2925
        %2966 = vmatprep.subr.mxu0 0.0
        %2967 = vmatpush1.msra.mxu0 %v2926
        %2968 = vmatprep.subr.mxu0 0.0
        %2969 = vmatpush1.msra.mxu0 %v2927
        %2970 = vmatprep.subr.mxu0 0.0
        %2971 = vmatpush1.msra.mxu0 %v2928
        %2972 = vmatprep.subr.mxu0 0.0
        %2973 = vmatpush1.msra.mxu0 %v2929
        %2974 = vmatprep.subr.mxu0 0.0
        %2975 = vmatpush1.msra.mxu0 %v2930
        %2976 = vmatprep.subr.mxu0 0.0
        %2977 = vmatpush1.msra.mxu0 %v2931
        %2978 = vmatprep.subr.mxu0 0.0
        %2979 = vmatpush1.msra.mxu0 0.0
        %2980 = vmatprep.subr.mxu0 0.0
        %2981 = vmatpush1.msra.mxu0 0.0
        %2982 = vmatprep.subr.mxu0 0.0
        %2983 = vmatpush1.msra.mxu0 0.0
        %2984 = vmatprep.subr.mxu0 0.0
        %2985 = vmatpush1.msra.mxu0 0.0
        %2986 = vmatprep.subr.mxu0 0.0
        %2987 = vmatpush1.msra.mxu0 0.0
        %2988 = vmatprep.subr.mxu0 0.0
        %2989 = vmatpush1.msra.mxu0 0.0
        %2990 = vmatprep.subr.mxu0 0.0
        %2991 = vmatpush1.msra.mxu0 0.0
        %2992 = vmatprep.subr.mxu0 0.0
        %2993 = vmatpush1.msra.mxu0 0.0
        %2994 = vmatprep.subr.mxu0 0.0
        %2995 = vmatpush1.msra.mxu0 0.0
        %2996 = vmatprep.subr.mxu0 0.0
        %2997 = vmatpush1.msra.mxu0 0.0
        %2998 = vmatprep.subr.mxu0 0.0
        %2999 = vmatpush1.msra.mxu0 0.0
        %3000 = vmatprep.subr.mxu0 0.0
        %3001 = vmatpush1.msra.mxu0 0.0
        %3002 = vmatprep.subr.mxu0 0.0
        %3003 = vmatpush1.msra.mxu0 0.0
        %3004 = vmatprep.subr.mxu0 0.0
        %3005 = vmatpush1.msra.mxu0 0.0
        %3006 = vmatprep.subr.mxu0 0.0
        %3007 = vmatpush1.msra.mxu0 0.0
        %3008 = vmatprep.subr.mxu0 0.0
        %3009 = vmatpush1.msra.mxu0 0.0
        %3010 = vmatprep.subr.mxu0 0.0
        %3011 = vmatpush1.msra.mxu0 0.0
        %3012 = vmatprep.subr.mxu0 0.0
        %3013 = vmatpush1.msra.mxu0 0.0
        %3014 = vmatprep.subr.mxu0 0.0
        %3015 = vmatpush1.msra.mxu0 0.0
        %3016 = vmatprep.subr.mxu0 0.0
        %3017 = vmatpush1.msra.mxu0 0.0
        %3018 = vmatprep.subr.mxu0 0.0
        %3019 = vmatpush1.msra.mxu0 0.0
        %3020 = vmatprep.subr.mxu0 0.0
        %3021 = vmatpush1.msra.mxu0 0.0
        %3022 = vmatprep.subr.mxu0 0.0
        %3023 = vmatpush1.msra.mxu0 0.0
        %3024 = vmatprep.subr.mxu0 0.0
        %3025 = vmatpush1.msra.mxu0 0.0
        %3026 = vmatprep.mubr.f32.mxu0 0.0
        %3027 = vmatmul.mubr.f32.gmra.mrb[0].mxu0 %v2933
        %v3028 = vpop.f32.mrb[0].mxu0
        %v3029 = vadd.f32 0.0, %v3028
        %v3030 = vpop.f32.mrb[0].mxu0
        %3031 = vmatprep.mubr.f32.mxu0 0.0
        %3032 = vmatmul.mubr.f32.gmra.mrb[0].mxu0 %v2936
        %v3033 = vpop.f32.mrb[0].mxu0
        %v3034 = vadd.f32 0.0, %v3033
        %v3035 = vpop.f32.mrb[0].mxu0
        %3036 = vmatprep.mubr.f32.mxu0 0.0
        %3037 = vmatmul.mubr.f32.gmra.mrb[0].mxu0 %v2939
        %v3038 = vpop.f32.mrb[0].mxu0
        %v3039 = vadd.f32 0.0, %v3038
        %v3040 = vpop.f32.mrb[0].mxu0
        %3041 = vmatprep.mubr.f32.mxu0 0.0
        %3042 = vmatmul.mubr.f32.gmra.mrb[0].mxu0 %v2942
        %v3043 = vpop.f32.mrb[0].mxu0
        %v3044 = vadd.f32 0.0, %v3043
        %v3045 = vpop.f32.mrb[0].mxu0
        %3046 = vmatprep.mubr.f32.mxu0 0.0
        %3047 = vmatmul.mubr.f32.gmra.mrb[0].mxu0 %v2945
        %v3048 = vpop.f32.mrb[0].mxu0
        %v3049 = vadd.f32 0.0, %v3048
        %v3050 = vpop.f32.mrb[0].mxu0
        %3051 = vmatprep.mubr.f32.mxu0 0.0
        %3052 = vmatmul.mubr.f32.gmra.mrb[0].mxu0 %v2948
        %v3053 = vpop.f32.mrb[0].mxu0
        %v3054 = vadd.f32 0.0, %v3053
        %v3055 = vpop.f32.mrb[0].mxu0
        %3056 = vmatprep.mubr.f32.mxu0 0.0
        %3057 = vmatmul.mubr.f32.gmra.mrb[0].mxu0 %v2951
        %v3058 = vpop.f32.mrb[0].mxu0
        %v3059 = vadd.f32 0.0, %v3058
        %v3060 = vpop.f32.mrb[0].mxu0
        %3061 = vmatprep.mubr.f32.mxu0 0.0
        %3062 = vmatmul.mubr.f32.gmra.mrb[0].mxu0 %v2954
        %v3063 = vpop.f32.mrb[0].mxu0
        %v3064 = vadd.f32 0.0, %v3063
        %v3065 = vpop.f32.mrb[0].mxu0
        %3066 = vmatprep.mubr.f32.mxu0 0.0
        %3067 = vmatmul.mubr.f32.gmra.mrb[0].mxu0 %v2957
        %v3068 = vpop.f32.mrb[0].mxu0
        %v3069 = vadd.f32 0.0, %v3068
        %v3070 = vpop.f32.mrb[0].mxu0
        %3071 = vmatprep.mubr.f32.mxu0 0.0
        %3072 = vmatmul.mubr.f32.gmra.mrb[0].mxu0 %v2960
        %v3073 = vpop.f32.mrb[0].mxu0
        %v3074 = vadd.f32 0.0, %v3073
        %v3075 = vpop.f32.mrb[0].mxu0
        %3076 = vdwg.mxu0
        %v3077 = vrcp.pop %v3029
        %v3078 = vmul.f32 1.0, %v3077
        %v3079 = vrcp.pop %v3034
        %v3080 = vmul.f32 1.0, %v3079
        %v3081 = vrcp.pop %v3039
        %v3082 = vmul.f32 1.0, %v3081
        %v3083 = vrcp.pop %v3044
        %v3084 = vmul.f32 1.0, %v3083
        %v3085 = vrcp.pop %v3049
        %v3086 = vmul.f32 1.0, %v3085
        %v3087 = vrcp.pop %v3054
        %v3088 = vmul.f32 1.0, %v3087
        %v3089 = vrcp.pop %v3059
        %v3090 = vmul.f32 1.0, %v3089
        %v3091 = vrcp.pop %v3064
        %v3092 = vmul.f32 1.0, %v3091
        %v3093 = vrcp.pop %v3069
        %v3094 = vmul.f32 1.0, %v3093
        %v3095 = vrcp.pop %v3074
        %v3096 = vmul.f32 1.0, %v3095
        %3107 = vrot.lane.b32.xlu0 %v3078, 1
        %v3108 = vpop.permute.xlu0 %3107
        %3109 = vrot.lane.b32.xlu0 %v3080, 1
        %v3110 = vpop.permute.xlu0 %3109
        %3111 = vrot.lane.b32.xlu0 %v3082, 1
        %v3112 = vpop.permute.xlu0 %3111
        %3113 = vrot.lane.b32.xlu0 %v3084, 1
        %v3114 = vpop.permute.xlu0 %3113
        %3115 = vrot.lane.b32.xlu0 %v3086, 1
        %v3116 = vpop.permute.xlu0 %3115
        %3117 = vrot.lane.b32.xlu0 %v3088, 1
        %v3118 = vpop.permute.xlu0 %3117
        %3119 = vrot.lane.b32.xlu0 %v3090, 1
        %v3120 = vpop.permute.xlu0 %3119
        %3121 = vrot.lane.b32.xlu0 %v3092, 1
        %v3122 = vpop.permute.xlu0 %3121
        %3123 = vrot.lane.b32.xlu0 %v3094, 1
        %v3124 = vpop.permute.xlu0 %3123
        %3125 = vrot.lane.b32.xlu0 %v3096, 1
        %v3126 = vpop.permute.xlu0 %3125
        %v3137 = vmul.f32 %v3029, %v3108
        %v3138 = vmul.f32 %v3034, %v3110
        %v3139 = vmul.f32 %v3039, %v3112
        %v3140 = vmul.f32 %v3044, %v3114
        %v3141 = vmul.f32 %v3049, %v3116
        %v3142 = vmul.f32 %v3054, %v3118
        %v3143 = vmul.f32 %v3059, %v3120
        %v3144 = vmul.f32 %v3064, %v3122
        %v3145 = vmul.f32 %v3069, %v3124
        %v3146 = vmul.f32 %v3074, %v3126
        %3147 = vrot.lane.b32.xlu0 %v3078, 2
        %v3148 = vpop.permute.xlu0 %3147
        %3149 = vrot.lane.b32.xlu0 %v3080, 2
        %v3150 = vpop.permute.xlu0 %3149
        %3151 = vrot.lane.b32.xlu0 %v3082, 2
        %v3152 = vpop.permute.xlu0 %3151
        %3153 = vrot.lane.b32.xlu0 %v3084, 2
        %v3154 = vpop.permute.xlu0 %3153
        %3155 = vrot.lane.b32.xlu0 %v3086, 2
        %v3156 = vpop.permute.xlu0 %3155
        %3157 = vrot.lane.b32.xlu0 %v3088, 2
        %v3158 = vpop.permute.xlu0 %3157
        %3159 = vrot.lane.b32.xlu0 %v3090, 2
        %v3160 = vpop.permute.xlu0 %3159
        %3161 = vrot.lane.b32.xlu0 %v3092, 2
        %v3162 = vpop.permute.xlu0 %3161
        %3163 = vrot.lane.b32.xlu0 %v3094, 2
        %v3164 = vpop.permute.xlu0 %3163
        %3165 = vrot.lane.b32.xlu0 %v3096, 2
        %v3166 = vpop.permute.xlu0 %3165
        %v3177 = vmul.f32 %v3029, %v3148
        %v3178 = vmul.f32 %v3034, %v3150
        %v3179 = vmul.f32 %v3039, %v3152
        %v3180 = vmul.f32 %v3044, %v3154
        %v3181 = vmul.f32 %v3049, %v3156
        %v3182 = vmul.f32 %v3054, %v3158
        %v3183 = vmul.f32 %v3059, %v3160
        %v3184 = vmul.f32 %v3064, %v3162
        %v3185 = vmul.f32 %v3069, %v3164
        %v3186 = vmul.f32 %v3074, %v3166
        %3187 = vrot.lane.b32.xlu0 %v3078, 3
        %v3188 = vpop.permute.xlu0 %3187
        %3189 = vrot.lane.b32.xlu0 %v3080, 3
        %v3190 = vpop.permute.xlu0 %3189
        %3191 = vrot.lane.b32.xlu0 %v3082, 3
        %v3192 = vpop.permute.xlu0 %3191
        %3193 = vrot.lane.b32.xlu0 %v3084, 3
        %v3194 = vpop.permute.xlu0 %3193
        %3195 = vrot.lane.b32.xlu0 %v3086, 3
        %v3196 = vpop.permute.xlu0 %3195
        %3197 = vrot.lane.b32.xlu0 %v3088, 3
        %v3198 = vpop.permute.xlu0 %3197
        %3199 = vrot.lane.b32.xlu0 %v3090, 3
        %v3200 = vpop.permute.xlu0 %3199
        %3201 = vrot.lane.b32.xlu0 %v3092, 3
        %v3202 = vpop.permute.xlu0 %3201
        %3203 = vrot.lane.b32.xlu0 %v3094, 3
        %v3204 = vpop.permute.xlu0 %3203
        %3205 = vrot.lane.b32.xlu0 %v3096, 3
        %v3206 = vpop.permute.xlu0 %3205
        %v3217 = vmul.f32 %v3029, %v3188
        %v3218 = vmul.f32 %v3034, %v3190
        %v3219 = vmul.f32 %v3039, %v3192
        %v3220 = vmul.f32 %v3044, %v3194
        %v3221 = vmul.f32 %v3049, %v3196
        %v3222 = vmul.f32 %v3054, %v3198
        %v3223 = vmul.f32 %v3059, %v3200
        %v3224 = vmul.f32 %v3064, %v3202
        %v3225 = vmul.f32 %v3069, %v3204
        %v3226 = vmul.f32 %v3074, %v3206
        %v3227 = vmul.f32 %v3137, %v3137
        %v3228 = vmul.f32 %v3138, %v3138
        %v3229 = vmul.f32 %v3139, %v3139
        %v3230 = vmul.f32 %v3140, %v3140
        %v3231 = vmul.f32 %v3141, %v3141
        %v3232 = vmul.f32 %v3142, %v3142
        %v3233 = vmul.f32 %v3143, %v3143
        %v3234 = vmul.f32 %v3144, %v3144
        %v3235 = vmul.f32 %v3145, %v3145
        %v3236 = vmul.f32 %v3146, %v3146
        %3247 = vrot.lane.b32.xlu0 %v3227, 2
        %v3248 = vpop.permute.xlu0 %3247
        %3249 = vrot.lane.b32.xlu0 %v3228, 2
        %v3250 = vpop.permute.xlu0 %3249
        %3251 = vrot.lane.b32.xlu0 %v3229, 2
        %v3252 = vpop.permute.xlu0 %3251
        %3253 = vrot.lane.b32.xlu0 %v3230, 2
        %v3254 = vpop.permute.xlu0 %3253
        %3255 = vrot.lane.b32.xlu0 %v3231, 2
        %v3256 = vpop.permute.xlu0 %3255
        %3257 = vrot.lane.b32.xlu0 %v3232, 2
        %v3258 = vpop.permute.xlu0 %3257
        %3259 = vrot.lane.b32.xlu0 %v3233, 2
        %v3260 = vpop.permute.xlu0 %3259
        %3261 = vrot.lane.b32.xlu0 %v3234, 2
        %v3262 = vpop.permute.xlu0 %3261
        %3263 = vrot.lane.b32.xlu0 %v3235, 2
        %v3264 = vpop.permute.xlu0 %3263
        %3265 = vrot.lane.b32.xlu0 %v3236, 2
        %v3266 = vpop.permute.xlu0 %3265
        %v3277 = vsub.f32 %v3217, %v3248
        %v3278 = vsub.f32 %v3218, %v3250
        %v3279 = vsub.f32 %v3219, %v3252
        %v3280 = vsub.f32 %v3220, %v3254
        %v3281 = vsub.f32 %v3221, %v3256
        %v3282 = vsub.f32 %v3222, %v3258
        %v3283 = vsub.f32 %v3223, %v3260
        %v3284 = vsub.f32 %v3224, %v3262
        %v3285 = vsub.f32 %v3225, %v3264
        %v3286 = vsub.f32 %v3226, %v3266
        %3287 = vrot.lane.b32.xlu0 %v3078, 4
        %v3288 = vpop.permute.xlu0 %3287
        %3289 = vrot.lane.b32.xlu0 %v3080, 4
        %v3290 = vpop.permute.xlu0 %3289
        %3291 = vrot.lane.b32.xlu0 %v3082, 4
        %v3292 = vpop.permute.xlu0 %3291
        %3293 = vrot.lane.b32.xlu0 %v3084, 4
        %v3294 = vpop.permute.xlu0 %3293
        %3295 = vrot.lane.b32.xlu0 %v3086, 4
        %v3296 = vpop.permute.xlu0 %3295
        %3297 = vrot.lane.b32.xlu0 %v3088, 4
        %v3298 = vpop.permute.xlu0 %3297
        %3299 = vrot.lane.b32.xlu0 %v3090, 4
        %v3300 = vpop.permute.xlu0 %3299
        %3301 = vrot.lane.b32.xlu0 %v3092, 4
        %v3302 = vpop.permute.xlu0 %3301
        %3303 = vrot.lane.b32.xlu0 %v3094, 4
        %v3304 = vpop.permute.xlu0 %3303
        %3305 = vrot.lane.b32.xlu0 %v3096, 4
        %v3306 = vpop.permute.xlu0 %3305
        %v3317 = vmul.f32 %v3029, %v3288
        %v3318 = vmul.f32 %v3034, %v3290
        %v3319 = vmul.f32 %v3039, %v3292
        %v3320 = vmul.f32 %v3044, %v3294
        %v3321 = vmul.f32 %v3049, %v3296
        %v3322 = vmul.f32 %v3054, %v3298
        %v3323 = vmul.f32 %v3059, %v3300
        %v3324 = vmul.f32 %v3064, %v3302
        %v3325 = vmul.f32 %v3069, %v3304
        %v3326 = vmul.f32 %v3074, %v3306
        %v3327 = vmul.f32 %v3177, %v3177
        %v3328 = vmul.f32 %v3178, %v3178
        %v3329 = vmul.f32 %v3179, %v3179
        %v3330 = vmul.f32 %v3180, %v3180
        %v3331 = vmul.f32 %v3181, %v3181
        %v3332 = vmul.f32 %v3182, %v3182
        %v3333 = vmul.f32 %v3183, %v3183
        %v3334 = vmul.f32 %v3184, %v3184
        %v3335 = vmul.f32 %v3185, %v3185
        %v3336 = vmul.f32 %v3186, %v3186
        %3347 = vrot.lane.b32.xlu0 %v3327, 2
        %v3348 = vpop.permute.xlu0 %3347
        %3349 = vrot.lane.b32.xlu0 %v3328, 2
        %v3350 = vpop.permute.xlu0 %3349
        %3351 = vrot.lane.b32.xlu0 %v3329, 2
        %v3352 = vpop.permute.xlu0 %3351
        %3353 = vrot.lane.b32.xlu0 %v3330, 2
        %v3354 = vpop.permute.xlu0 %3353
        %3355 = vrot.lane.b32.xlu0 %v3331, 2
        %v3356 = vpop.permute.xlu0 %3355
        %3357 = vrot.lane.b32.xlu0 %v3332, 2
        %v3358 = vpop.permute.xlu0 %3357
        %3359 = vrot.lane.b32.xlu0 %v3333, 2
        %v3360 = vpop.permute.xlu0 %3359
        %3361 = vrot.lane.b32.xlu0 %v3334, 2
        %v3362 = vpop.permute.xlu0 %3361
        %3363 = vrot.lane.b32.xlu0 %v3335, 2
        %v3364 = vpop.permute.xlu0 %3363
        %3365 = vrot.lane.b32.xlu0 %v3336, 2
        %v3366 = vpop.permute.xlu0 %3365
        %v3377 = vsub.f32 %v3317, %v3348
        %v3378 = vsub.f32 %v3318, %v3350
        %v3379 = vsub.f32 %v3319, %v3352
        %v3380 = vsub.f32 %v3320, %v3354
        %v3381 = vsub.f32 %v3321, %v3356
        %v3382 = vsub.f32 %v3322, %v3358
        %v3383 = vsub.f32 %v3323, %v3360
        %v3384 = vsub.f32 %v3324, %v3362
        %v3385 = vsub.f32 %v3325, %v3364
        %v3386 = vsub.f32 %v3326, %v3366
        %v3387 = vmax.f32 %v3277, 1e-10
        %v3388 = vmax.f32 %v3278, 1e-10
        %v3389 = vmax.f32 %v3279, 1e-10
        %v3390 = vmax.f32 %v3280, 1e-10
        %v3391 = vmax.f32 %v3281, 1e-10
        %v3392 = vmax.f32 %v3282, 1e-10
        %v3393 = vmax.f32 %v3283, 1e-10
        %v3394 = vmax.f32 %v3284, 1e-10
        %v3395 = vmax.f32 %v3285, 1e-10
        %v3396 = vmax.f32 %v3286, 1e-10
        %v3397 = vrsqrt.pop %v3387
        %v3398 = vmul.f32 %v3387, %v3397
        %vm3399 = vcmp.eq.f32.partialorder %v3387, inf
        %v3400 = vsel %vm3399, %v3387, %v3398
        %vm3401 = vcmp.eq.f32.partialorder %v3387, 0.0
        %v3402 = vand.u32 %v3387, 2147483648
        %v3403 = vsel %vm3401, %v3402, %v3400
        %v3404 = vrsqrt.pop %v3388
        %v3405 = vmul.f32 %v3388, %v3404
        %vm3406 = vcmp.eq.f32.partialorder %v3388, inf
        %v3407 = vsel %vm3406, %v3388, %v3405
        %vm3408 = vcmp.eq.f32.partialorder %v3388, 0.0
        %v3409 = vand.u32 %v3388, 2147483648
        %v3410 = vsel %vm3408, %v3409, %v3407
        %v3411 = vrsqrt.pop %v3389
        %v3412 = vmul.f32 %v3389, %v3411
        %vm3413 = vcmp.eq.f32.partialorder %v3389, inf
        %v3414 = vsel %vm3413, %v3389, %v3412
        %vm3415 = vcmp.eq.f32.partialorder %v3389, 0.0
        %v3416 = vand.u32 %v3389, 2147483648
        %v3417 = vsel %vm3415, %v3416, %v3414
        %v3418 = vrsqrt.pop %v3390
        %v3419 = vmul.f32 %v3390, %v3418
        %vm3420 = vcmp.eq.f32.partialorder %v3390, inf
        %v3421 = vsel %vm3420, %v3390, %v3419
        %vm3422 = vcmp.eq.f32.partialorder %v3390, 0.0
        %v3423 = vand.u32 %v3390, 2147483648
        %v3424 = vsel %vm3422, %v3423, %v3421
        %v3425 = vrsqrt.pop %v3391
        %v3426 = vmul.f32 %v3391, %v3425
        %vm3427 = vcmp.eq.f32.partialorder %v3391, inf
        %v3428 = vsel %vm3427, %v3391, %v3426
        %vm3429 = vcmp.eq.f32.partialorder %v3391, 0.0
        %v3430 = vand.u32 %v3391, 2147483648
        %v3431 = vsel %vm3429, %v3430, %v3428
        %v3432 = vrsqrt.pop %v3392
        %v3433 = vmul.f32 %v3392, %v3432
        %vm3434 = vcmp.eq.f32.partialorder %v3392, inf
        %v3435 = vsel %vm3434, %v3392, %v3433
        %vm3436 = vcmp.eq.f32.partialorder %v3392, 0.0
        %v3437 = vand.u32 %v3392, 2147483648
        %v3438 = vsel %vm3436, %v3437, %v3435
        %v3439 = vrsqrt.pop %v3393
        %v3440 = vmul.f32 %v3393, %v3439
        %vm3441 = vcmp.eq.f32.partialorder %v3393, inf
        %v3442 = vsel %vm3441, %v3393, %v3440
        %vm3443 = vcmp.eq.f32.partialorder %v3393, 0.0
        %v3444 = vand.u32 %v3393, 2147483648
        %v3445 = vsel %vm3443, %v3444, %v3442
        %v3446 = vrsqrt.pop %v3394
        %v3447 = vmul.f32 %v3394, %v3446
        %vm3448 = vcmp.eq.f32.partialorder %v3394, inf
        %v3449 = vsel %vm3448, %v3394, %v3447
        %vm3450 = vcmp.eq.f32.partialorder %v3394, 0.0
        %v3451 = vand.u32 %v3394, 2147483648
        %v3452 = vsel %vm3450, %v3451, %v3449
        %v3453 = vrsqrt.pop %v3395
        %v3454 = vmul.f32 %v3395, %v3453
        %vm3455 = vcmp.eq.f32.partialorder %v3395, inf
        %v3456 = vsel %vm3455, %v3395, %v3454
        %vm3457 = vcmp.eq.f32.partialorder %v3395, 0.0
        %v3458 = vand.u32 %v3395, 2147483648
        %v3459 = vsel %vm3457, %v3458, %v3456
        %v3460 = vrsqrt.pop %v3396
        %v3461 = vmul.f32 %v3396, %v3460
        %vm3462 = vcmp.eq.f32.partialorder %v3396, inf
        %v3463 = vsel %vm3462, %v3396, %v3461
        %vm3464 = vcmp.eq.f32.partialorder %v3396, 0.0
        %v3465 = vand.u32 %v3396, 2147483648
        %v3466 = vsel %vm3464, %v3465, %v3463
        %v3467 = vmax.f32 %v3377, 1e-10
        %v3468 = vmax.f32 %v3378, 1e-10
        %v3469 = vmax.f32 %v3379, 1e-10
        %v3470 = vmax.f32 %v3380, 1e-10
        %v3471 = vmax.f32 %v3381, 1e-10
        %v3472 = vmax.f32 %v3382, 1e-10
        %v3473 = vmax.f32 %v3383, 1e-10
        %v3474 = vmax.f32 %v3384, 1e-10
        %v3475 = vmax.f32 %v3385, 1e-10
        %v3476 = vmax.f32 %v3386, 1e-10
        %v3477 = vrsqrt.pop %v3467
        %v3478 = vmul.f32 %v3467, %v3477
        %vm3479 = vcmp.eq.f32.partialorder %v3467, inf
        %v3480 = vsel %vm3479, %v3467, %v3478
        %vm3481 = vcmp.eq.f32.partialorder %v3467, 0.0
        %v3482 = vand.u32 %v3467, 2147483648
        %v3483 = vsel %vm3481, %v3482, %v3480
        %v3484 = vrsqrt.pop %v3468
        %v3485 = vmul.f32 %v3468, %v3484
        %vm3486 = vcmp.eq.f32.partialorder %v3468, inf
        %v3487 = vsel %vm3486, %v3468, %v3485
        %vm3488 = vcmp.eq.f32.partialorder %v3468, 0.0
        %v3489 = vand.u32 %v3468, 2147483648
        %v3490 = vsel %vm3488, %v3489, %v3487
        %v3491 = vrsqrt.pop %v3469
        %v3492 = vmul.f32 %v3469, %v3491
        %vm3493 = vcmp.eq.f32.partialorder %v3469, inf
        %v3494 = vsel %vm3493, %v3469, %v3492
        %vm3495 = vcmp.eq.f32.partialorder %v3469, 0.0
        %v3496 = vand.u32 %v3469, 2147483648
        %v3497 = vsel %vm3495, %v3496, %v3494
        %v3498 = vrsqrt.pop %v3470
        %v3499 = vmul.f32 %v3470, %v3498
        %vm3500 = vcmp.eq.f32.partialorder %v3470, inf
        %v3501 = vsel %vm3500, %v3470, %v3499
        %vm3502 = vcmp.eq.f32.partialorder %v3470, 0.0
        %v3503 = vand.u32 %v3470, 2147483648
        %v3504 = vsel %vm3502, %v3503, %v3501
        %v3505 = vrsqrt.pop %v3471
        %v3506 = vmul.f32 %v3471, %v3505
        %vm3507 = vcmp.eq.f32.partialorder %v3471, inf
        %v3508 = vsel %vm3507, %v3471, %v3506
        %vm3509 = vcmp.eq.f32.partialorder %v3471, 0.0
        %v3510 = vand.u32 %v3471, 2147483648
        %v3511 = vsel %vm3509, %v3510, %v3508
        %v3512 = vrsqrt.pop %v3472
        %v3513 = vmul.f32 %v3472, %v3512
        %vm3514 = vcmp.eq.f32.partialorder %v3472, inf
        %v3515 = vsel %vm3514, %v3472, %v3513
        %vm3516 = vcmp.eq.f32.partialorder %v3472, 0.0
        %v3517 = vand.u32 %v3472, 2147483648
        %v3518 = vsel %vm3516, %v3517, %v3515
        %v3519 = vrsqrt.pop %v3473
        %v3520 = vmul.f32 %v3473, %v3519
        %vm3521 = vcmp.eq.f32.partialorder %v3473, inf
        %v3522 = vsel %vm3521, %v3473, %v3520
        %vm3523 = vcmp.eq.f32.partialorder %v3473, 0.0
        %v3524 = vand.u32 %v3473, 2147483648
        %v3525 = vsel %vm3523, %v3524, %v3522
        %v3526 = vrsqrt.pop %v3474
        %v3527 = vmul.f32 %v3474, %v3526
        %vm3528 = vcmp.eq.f32.partialorder %v3474, inf
        %v3529 = vsel %vm3528, %v3474, %v3527
        %vm3530 = vcmp.eq.f32.partialorder %v3474, 0.0
        %v3531 = vand.u32 %v3474, 2147483648
        %v3532 = vsel %vm3530, %v3531, %v3529
        %v3533 = vrsqrt.pop %v3475
        %v3534 = vmul.f32 %v3475, %v3533
        %vm3535 = vcmp.eq.f32.partialorder %v3475, inf
        %v3536 = vsel %vm3535, %v3475, %v3534
        %vm3537 = vcmp.eq.f32.partialorder %v3475, 0.0
        %v3538 = vand.u32 %v3475, 2147483648
        %v3539 = vsel %vm3537, %v3538, %v3536
        %v3540 = vrsqrt.pop %v3476
        %v3541 = vmul.f32 %v3476, %v3540
        %vm3542 = vcmp.eq.f32.partialorder %v3476, inf
        %v3543 = vsel %vm3542, %v3476, %v3541
        %vm3544 = vcmp.eq.f32.partialorder %v3476, 0.0
        %v3545 = vand.u32 %v3476, 2147483648
        %v3546 = vsel %vm3544, %v3545, %v3543
        %3557 = vrot.lane.b32.xlu0 %v3483, 127
        %v3558 = vpop.permute.xlu0 %3557
        %3559 = vrot.lane.b32.xlu0 %v3490, 127
        %v3560 = vpop.permute.xlu0 %3559
        %3561 = vrot.lane.b32.xlu0 %v3497, 127
        %v3562 = vpop.permute.xlu0 %3561
        %3563 = vrot.lane.b32.xlu0 %v3504, 127
        %v3564 = vpop.permute.xlu0 %3563
        %3565 = vrot.lane.b32.xlu0 %v3511, 127
        %v3566 = vpop.permute.xlu0 %3565
        %3567 = vrot.lane.b32.xlu0 %v3518, 127
        %v3568 = vpop.permute.xlu0 %3567
        %3569 = vrot.lane.b32.xlu0 %v3525, 127
        %v3570 = vpop.permute.xlu0 %3569
        %3571 = vrot.lane.b32.xlu0 %v3532, 127
        %v3572 = vpop.permute.xlu0 %3571
        %3573 = vrot.lane.b32.xlu0 %v3539, 127
        %v3574 = vpop.permute.xlu0 %3573
        %3575 = vrot.lane.b32.xlu0 %v3546, 127
        %v3576 = vpop.permute.xlu0 %3575
        %v3587 = vadd.f32 %v3403, %v3558
        %v3588 = vadd.f32 %v3410, %v3560
        %v3589 = vadd.f32 %v3417, %v3562
        %v3590 = vadd.f32 %v3424, %v3564
        %v3591 = vadd.f32 %v3431, %v3566
        %v3592 = vadd.f32 %v3438, %v3568
        %v3593 = vadd.f32 %v3445, %v3570
        %v3594 = vadd.f32 %v3452, %v3572
        %v3595 = vadd.f32 %v3459, %v3574
        %v3596 = vadd.f32 %v3466, %v3576
        %3607 = vrot.lane.b32.xlu0 %v3137, 127
        %v3608 = vpop.permute.xlu0 %3607
        %3609 = vrot.lane.b32.xlu0 %v3138, 127
        %v3610 = vpop.permute.xlu0 %3609
        %3611 = vrot.lane.b32.xlu0 %v3139, 127
        %v3612 = vpop.permute.xlu0 %3611
        %3613 = vrot.lane.b32.xlu0 %v3140, 127
        %v3614 = vpop.permute.xlu0 %3613
        %3615 = vrot.lane.b32.xlu0 %v3141, 127
        %v3616 = vpop.permute.xlu0 %3615
        %3617 = vrot.lane.b32.xlu0 %v3142, 127
        %v3618 = vpop.permute.xlu0 %3617
        %3619 = vrot.lane.b32.xlu0 %v3143, 127
        %v3620 = vpop.permute.xlu0 %3619
        %3621 = vrot.lane.b32.xlu0 %v3144, 127
        %v3622 = vpop.permute.xlu0 %3621
        %3623 = vrot.lane.b32.xlu0 %v3145, 127
        %v3624 = vpop.permute.xlu0 %3623
        %3625 = vrot.lane.b32.xlu0 %v3146, 127
        %v3626 = vpop.permute.xlu0 %3625
        %3647 = vrot.lane.b32.xlu0 %v3177, 127
        %v3648 = vpop.permute.xlu0 %3647
        %3649 = vrot.lane.b32.xlu0 %v3178, 127
        %v3650 = vpop.permute.xlu0 %3649
        %3651 = vrot.lane.b32.xlu0 %v3179, 127
        %v3652 = vpop.permute.xlu0 %3651
        %3653 = vrot.lane.b32.xlu0 %v3180, 127
        %v3654 = vpop.permute.xlu0 %3653
        %3655 = vrot.lane.b32.xlu0 %v3181, 127
        %v3656 = vpop.permute.xlu0 %3655
        %3657 = vrot.lane.b32.xlu0 %v3182, 127
        %v3658 = vpop.permute.xlu0 %3657
        %3659 = vrot.lane.b32.xlu0 %v3183, 127
        %v3660 = vpop.permute.xlu0 %3659
        %3661 = vrot.lane.b32.xlu0 %v3184, 127
        %v3662 = vpop.permute.xlu0 %3661
        %3663 = vrot.lane.b32.xlu0 %v3185, 127
        %v3664 = vpop.permute.xlu0 %3663
        %3665 = vrot.lane.b32.xlu0 %v3186, 127
        %v3666 = vpop.permute.xlu0 %3665
        %3687 = vrot.lane.b32.xlu0 %v3587, 127
        %v3688 = vpop.permute.xlu0 %3687
        %3689 = vrot.lane.b32.xlu0 %v3588, 127
        %v3690 = vpop.permute.xlu0 %3689
        %3691 = vrot.lane.b32.xlu0 %v3589, 127
        %v3692 = vpop.permute.xlu0 %3691
        %3693 = vrot.lane.b32.xlu0 %v3590, 127
        %v3694 = vpop.permute.xlu0 %3693
        %3695 = vrot.lane.b32.xlu0 %v3591, 127
        %v3696 = vpop.permute.xlu0 %3695
        %3697 = vrot.lane.b32.xlu0 %v3592, 127
        %v3698 = vpop.permute.xlu0 %3697
        %3699 = vrot.lane.b32.xlu0 %v3593, 127
        %v3700 = vpop.permute.xlu0 %3699
        %3701 = vrot.lane.b32.xlu0 %v3594, 127
        %v3702 = vpop.permute.xlu0 %3701
        %3703 = vrot.lane.b32.xlu0 %v3595, 127
        %v3704 = vpop.permute.xlu0 %3703
        %3705 = vrot.lane.b32.xlu0 %v3596, 127
        %v3706 = vpop.permute.xlu0 %3705
        %vm3717 = vcmask 7168
        %v3718 = vsel %vm3717, %v3608, %v3648
        %v3719 = vsel %vm3717, %v3610, %v3650
        %v3720 = vsel %vm3717, %v3612, %v3652
        %v3721 = vsel %vm3717, %v3614, %v3654
        %v3722 = vsel %vm3717, %v3616, %v3656
        %v3723 = vsel %vm3717, %v3618, %v3658
        %v3724 = vsel %vm3717, %v3620, %v3660
        %v3725 = vsel %vm3717, %v3622, %v3662
        %v3726 = vsel %vm3717, %v3624, %v3664
        %v3727 = vsel %vm3717, %v3626, %v3666
        %vm3728 = vcmask 15360
        %v3729 = vsel %vm3728, %v3718, %v3688
        %v3730 = vsel %vm3728, %v3719, %v3690
        %v3731 = vsel %vm3728, %v3720, %v3692
        %v3732 = vsel %vm3728, %v3721, %v3694
        %v3733 = vsel %vm3728, %v3722, %v3696
        %v3734 = vsel %vm3728, %v3723, %v3698
        %v3735 = vsel %vm3728, %v3724, %v3700
        %v3736 = vsel %vm3728, %v3725, %v3702
        %v3737 = vsel %vm3728, %v3726, %v3704
        %v3738 = vsel %vm3728, %v3727, %v3706
        %vm3739 = vcmask 23552
        %3740 = vst.msk [vmem:[%s265] sm:$0xff] %vm3739, %v3729
        %3741 = vst.msk [vmem:[%s265 + $0x8] sm:$0xff] %vm3739, %v3730
        %3742 = vst.msk [vmem:[%s265 + $0x10] sm:$0xff] %vm3739, %v3731
        %3743 = vst.msk [vmem:[%s265 + $0x18] sm:$0xff] %vm3739, %v3732
        %3744 = vst.msk [vmem:[%s265 + $0x20] sm:$0xff] %vm3739, %v3733
        %3745 = vst.msk [vmem:[%s265 + $0x28] sm:$0xff] %vm3739, %v3734
        %3746 = vst.msk [vmem:[%s265 + $0x30] sm:$0xff] %vm3739, %v3735
        %3747 = vst.msk [vmem:[%s265 + $0x38] sm:$0xff] %vm3739, %v3736
        %3748 = vst.msk [vmem:[%s265 + $0x40] sm:$0xff] %vm3739, %v3737
        %3749 = vst.msk [vmem:[%s265 + $0x48] sm:$0xff] %vm3739, %v3738
        %s3750 = sand.u32 %s123, 1
        %s3751 = sand.u32 %s123, 1
        %s3752 = smul.addr %s3751, 80
        %s3753 = scalar_lea.vmem [#allocation6], %s3752
        // Predicated region
        $region45: #{tpu_custom_call.1} parent=35 // pred_check
          %p3754 = pneg %p133
        $region46: #{tpu_custom_call.1} parent=35 // pred_check_branch
          %3756 = sbr.rel (%p3754) target = $region48
        $region47: #{tpu_custom_call.1} parent=35 // pred_region
          %s3757 = smul.u32 10, %s21
          %s3758 = ssub.s32 38, %s3757
          %p3759 = scmp.lt.s32.totalorder %s3758, 10
          %s3760 = scalar_select %p3759, %s3758, 10
          %s3761 = smul.u32 128, %s3760
          %p3762 = scmp.ne.s32.totalorder 0, %s3761
          %s3763 = smul.addr %s3757, 8
          %s3764 = scalar_lea.vmem %s4, %s3763
          // Predicated region
          $region49: #{tpu_custom_call.1} parent=47 // pred_check
            %p3765 = pneg %p3762
          $region50: #{tpu_custom_call.1} parent=47 // pred_check_branch
            %3767 = sbr.rel (%p3765) target = $region52
          $region51: #{tpu_custom_call.1} parent=47 // pred_region
            // Predicated region
            $region53: #{tpu_custom_call.1} parent=51 // pred_check
              _
            $region54: #{tpu_custom_call.1} parent=51 // pred_check_branch
              %3769 = sbr.rel (0) target = $region56
            $region55: #{tpu_custom_call.1} parent=51 // pred_region
              // Predicated region
              $region75: #{tpu_custom_call.1} parent=55 // pred_check
                _
              $region76: #{tpu_custom_call.1} parent=55 // pred_check_branch
                %3837 = sbr.rel (0) target = $region78
              $region77: #{tpu_custom_call.1} parent=55 // pred_region
                %s3838 = sdiv.u32.pop %s3760, 10
                %s3839 = srem.u32.pop %s3760, 10
                // While loop
                $region79: #{tpu_custom_call.1} parent=77 // loop_pre_header
                  _
                $region80: #{tpu_custom_call.1} parent=77 // loop_header
                  %s3841 = sphi 0, %s3843
                  %p3842 = scmp.ge.s32.totalorder %s3841, %s3838
                  %s3846 = sphi 0, %s3871
                  %s3847 = sphi %s3753, %s3874
                  %s3848 = sphi %s3764, %s3875
                $region81: #{tpu_custom_call.1} parent=77 // loop_header_branch
                  %3845 = sbr.rel (%p3842) target = $region85
                $region82: #{tpu_custom_call.1} parent=77 // loop_body
                  %v3849 = vld [vmem:[%s3847] sm:$0xff]
                  %3850 = vst [vmem:[%s3848] sm:$0xff] %v3849
                  %v3851 = vld [vmem:[%s3847 + $0x8] sm:$0xff]
                  %3852 = vst [vmem:[%s3848 + $0x8] sm:$0xff] %v3851
                  %v3853 = vld [vmem:[%s3847 + $0x10] sm:$0xff]
                  %3854 = vst [vmem:[%s3848 + $0x10] sm:$0xff] %v3853
                  %v3855 = vld [vmem:[%s3847 + $0x18] sm:$0xff]
                  %3856 = vst [vmem:[%s3848 + $0x18] sm:$0xff] %v3855
                  %v3857 = vld [vmem:[%s3847 + $0x20] sm:$0xff]
                  %3858 = vst [vmem:[%s3848 + $0x20] sm:$0xff] %v3857
                  %v3859 = vld [vmem:[%s3847 + $0x28] sm:$0xff]
                  %3860 = vst [vmem:[%s3848 + $0x28] sm:$0xff] %v3859
                  %v3861 = vld [vmem:[%s3847 + $0x30] sm:$0xff]
                  %3862 = vst [vmem:[%s3848 + $0x30] sm:$0xff] %v3861
                  %v3863 = vld [vmem:[%s3847 + $0x38] sm:$0xff]
                  %3864 = vst [vmem:[%s3848 + $0x38] sm:$0xff] %v3863
                  %v3865 = vld [vmem:[%s3847 + $0x40] sm:$0xff]
                  %3866 = vst [vmem:[%s3848 + $0x40] sm:$0xff] %v3865
                  %v3867 = vld [vmem:[%s3847 + $0x48] sm:$0xff]
                  %3868 = vst [vmem:[%s3848 + $0x48] sm:$0xff] %v3867
                  %s3869 = sadd.s32 1, %s3846
                  %p3870 = scmp.ge.s32.totalorder %s3869, %s3838
                  %s3871 = scalar_select %p3870, 0, %s3869
                  %s3872 = smul.u32 %s3871, 80
                  %s3873 = smul.u32 %s3871, 80
                  %s3874 = scalar_lea.vmem %s3753, %s3872 [#allocation6]
                  %s3875 = scalar_lea.vmem %s3764, %s3873
                $region83: #{tpu_custom_call.1} parent=77 // loop_footer
                  %s3843 = sadd.s32 %s3841, 1
                $region84: #{tpu_custom_call.1} parent=77 // loop_footer_branch
                  %3840 = sbr.rel target = $region80
                $region85: #{tpu_custom_call.1} parent=77 // loop_exit
                  _
                %s3876 = sdiv.u32.pop %s3760, 10
                %s3877 = srem.u32.pop %s3760, 10
                %s3878 = smul.u32 %s3876, 10
                %s3879 = smul.u32 8, %s3878
                %s3880 = scalar_lea.vmem %s3753, %s3879 [#allocation6]
                %s3881 = smul.u32 8, %s3878
                %s3882 = scalar_lea.vmem %s3764, %s3881
                // While loop
                $region86: #{tpu_custom_call.1} parent=77 // loop_pre_header
                  _
                $region87: #{tpu_custom_call.1} parent=77 // loop_header
                  %s3884 = sphi 0, %s3886
                  %p3885 = scmp.ge.s32.totalorder %s3884, %s3877
                  %s3889 = sphi 0, %s3896
                  %s3890 = sphi %s3880, %s3899
                  %s3891 = sphi %s3882, %s3900
                $region88: #{tpu_custom_call.1} parent=77 // loop_header_branch
                  %3888 = sbr.rel (%p3885) target = $region92
                $region89: #{tpu_custom_call.1} parent=77 // loop_body
                  %v3892 = vld [vmem:[%s3890] sm:$0xff]
                  %3893 = vst [vmem:[%s3891] sm:$0xff] %v3892
                  %s3894 = sadd.s32 1, %s3889
                  %p3895 = scmp.ge.s32.totalorder %s3894, %s3877
                  %s3896 = scalar_select %p3895, 0, %s3894
                  %s3897 = smul.u32 %s3896, 8
                  %s3898 = smul.u32 %s3896, 8
                  %s3899 = scalar_lea.vmem %s3880, %s3897 [#allocation6]
                  %s3900 = scalar_lea.vmem %s3882, %s3898
                $region90: #{tpu_custom_call.1} parent=77 // loop_footer
                  %s3886 = sadd.s32 %s3884, 1
                $region91: #{tpu_custom_call.1} parent=77 // loop_footer_branch
                  %3883 = sbr.rel target = $region87
                $region92: #{tpu_custom_call.1} parent=77 // loop_exit
                  _
              $region78: #{tpu_custom_call.1} parent=55 // pred_fallthru
                _
              // Predicated region
              $region93: #{tpu_custom_call.1} parent=55 // pred_check
                _
              $region94: #{tpu_custom_call.1} parent=55 // pred_check_branch
                %3902 = sbr.rel target = $region96
              $region95: #{tpu_custom_call.1} parent=55 // pred_region
                _
              $region96: #{tpu_custom_call.1} parent=55 // pred_fallthru
                _
            $region56: #{tpu_custom_call.1} parent=51 // pred_fallthru
              _
            // Predicated region
            $region57: #{tpu_custom_call.1} parent=51 // pred_check
              _
            $region58: #{tpu_custom_call.1} parent=51 // pred_check_branch
              %3771 = sbr.rel target = $region60
            $region59: #{tpu_custom_call.1} parent=51 // pred_region
              %s3773 = sdiv.u32.pop %s3760, 10
              %s3774 = srem.u32.pop %s3760, 10
              // While loop
              $region61: #{tpu_custom_call.1} parent=59 // loop_pre_header
                _
              $region62: #{tpu_custom_call.1} parent=59 // loop_header
                %s3776 = sphi 0, %s3778
                %p3777 = scmp.ge.s32.totalorder %s3776, %s3773
                %s3781 = sphi 0, %s3806
                %s3782 = sphi %s3753, %s3809
                %s3783 = sphi %s3764, %s3810
              $region63: #{tpu_custom_call.1} parent=59 // loop_header_branch
                %3780 = sbr.rel (%p3777) target = $region67
              $region64: #{tpu_custom_call.1} parent=59 // loop_body
                %v3784 = vld [vmem:[%s3782] sm:$0xff]
                %3785 = vst [vmem:[%s3783] sm:$0xff] %v3784
                %v3786 = vld [vmem:[%s3782 + $0x8] sm:$0xff]
                %3787 = vst [vmem:[%s3783 + $0x8] sm:$0xff] %v3786
                %v3788 = vld [vmem:[%s3782 + $0x10] sm:$0xff]
                %3789 = vst [vmem:[%s3783 + $0x10] sm:$0xff] %v3788
                %v3790 = vld [vmem:[%s3782 + $0x18] sm:$0xff]
                %3791 = vst [vmem:[%s3783 + $0x18] sm:$0xff] %v3790
                %v3792 = vld [vmem:[%s3782 + $0x20] sm:$0xff]
                %3793 = vst [vmem:[%s3783 + $0x20] sm:$0xff] %v3792
                %v3794 = vld [vmem:[%s3782 + $0x28] sm:$0xff]
                %3795 = vst [vmem:[%s3783 + $0x28] sm:$0xff] %v3794
                %v3796 = vld [vmem:[%s3782 + $0x30] sm:$0xff]
                %3797 = vst [vmem:[%s3783 + $0x30] sm:$0xff] %v3796
                %v3798 = vld [vmem:[%s3782 + $0x38] sm:$0xff]
                %3799 = vst [vmem:[%s3783 + $0x38] sm:$0xff] %v3798
                %v3800 = vld [vmem:[%s3782 + $0x40] sm:$0xff]
                %3801 = vst [vmem:[%s3783 + $0x40] sm:$0xff] %v3800
                %v3802 = vld [vmem:[%s3782 + $0x48] sm:$0xff]
                %3803 = vst [vmem:[%s3783 + $0x48] sm:$0xff] %v3802
                %s3804 = sadd.s32 1, %s3781
                %p3805 = scmp.ge.s32.totalorder %s3804, %s3773
                %s3806 = scalar_select %p3805, 0, %s3804
                %s3807 = smul.u32 %s3806, 80
                %s3808 = smul.u32 %s3806, 80
                %s3809 = scalar_lea.vmem %s3753, %s3807 [#allocation6]
                %s3810 = scalar_lea.vmem %s3764, %s3808
              $region65: #{tpu_custom_call.1} parent=59 // loop_footer
                %s3778 = sadd.s32 %s3776, 1
              $region66: #{tpu_custom_call.1} parent=59 // loop_footer_branch
                %3775 = sbr.rel target = $region62
              $region67: #{tpu_custom_call.1} parent=59 // loop_exit
                _
              %s3811 = sdiv.u32.pop %s3760, 10
              %s3812 = srem.u32.pop %s3760, 10
              %s3813 = smul.u32 %s3811, 10
              %s3814 = smul.u32 8, %s3813
              %s3815 = scalar_lea.vmem %s3753, %s3814 [#allocation6]
              %s3816 = smul.u32 8, %s3813
              %s3817 = scalar_lea.vmem %s3764, %s3816
              // While loop
              $region68: #{tpu_custom_call.1} parent=59 // loop_pre_header
                _
              $region69: #{tpu_custom_call.1} parent=59 // loop_header
                %s3819 = sphi 0, %s3821
                %p3820 = scmp.ge.s32.totalorder %s3819, %s3812
                %s3824 = sphi 0, %s3831
                %s3825 = sphi %s3815, %s3834
                %s3826 = sphi %s3817, %s3835
              $region70: #{tpu_custom_call.1} parent=59 // loop_header_branch
                %3823 = sbr.rel (%p3820) target = $region74
              $region71: #{tpu_custom_call.1} parent=59 // loop_body
                %v3827 = vld [vmem:[%s3825] sm:$0xff]
                %3828 = vst [vmem:[%s3826] sm:$0xff] %v3827
                %s3829 = sadd.s32 1, %s3824
                %p3830 = scmp.ge.s32.totalorder %s3829, %s3812
                %s3831 = scalar_select %p3830, 0, %s3829
                %s3832 = smul.u32 %s3831, 8
                %s3833 = smul.u32 %s3831, 8
                %s3834 = scalar_lea.vmem %s3815, %s3832 [#allocation6]
                %s3835 = scalar_lea.vmem %s3817, %s3833
              $region72: #{tpu_custom_call.1} parent=59 // loop_footer
                %s3821 = sadd.s32 %s3819, 1
              $region73: #{tpu_custom_call.1} parent=59 // loop_footer_branch
                %3818 = sbr.rel target = $region69
              $region74: #{tpu_custom_call.1} parent=59 // loop_exit
                _
            $region60: #{tpu_custom_call.1} parent=51 // pred_fallthru
              _
          $region52: #{tpu_custom_call.1} parent=47 // pred_fallthru
            _
          %3903 = vnop
        $region48: #{tpu_custom_call.1} parent=35 // pred_fallthru
          _
      $region36: #{tpu_custom_call.1} parent=5 // pred_fallthru
        _
      %p3904 = scmp.le.s32.totalorder 2, %s16
      // Predicated region
      $region97: #{tpu_custom_call.1} parent=5 // pred_check
        %p3905 = pneg %p3904
      $region98: #{tpu_custom_call.1} parent=5 // pred_check_branch
        %3907 = sbr.rel (%p3905) target = $region100
      $region99: #{tpu_custom_call.1} parent=5 // pred_region
        %s3908 = ssub.s32 %s16, 2
        // Predicated region
        $region101: #{tpu_custom_call.1} parent=99 // pred_check
          %p3909 = pneg %p139
        $region102: #{tpu_custom_call.1} parent=99 // pred_check_branch
          %3911 = sbr.rel (%p3909) target = $region104
        $region103: #{tpu_custom_call.1} parent=99 // pred_region
          %s3912 = sand.u32 %s124, 1
          %s3913 = sand.u32 %s124, 1
          %s3914 = smul.addr %s3913, 80
          %s3915 = scalar_lea.vmem [#allocation6], %s3914
        $region104: #{tpu_custom_call.1} parent=99 // pred_fallthru
          _
      $region100: #{tpu_custom_call.1} parent=5 // pred_fallthru
        _
    $region6: #{tpu_custom_call.1} parent=1 // loop_footer
      %s20 = sadd.s32 1, %s16
    $region7: #{tpu_custom_call.1} parent=1 // loop_footer_branch
      %15 = sbr.rel target = $region3
    $region8: #{tpu_custom_call.1} parent=1 // loop_exit
      _
    %3916 = vsyncpa [#allocation3], 1
    %s3917 = scalar_lea.sflag [#allocation3], 1
    %3918 = vsyncpa %s3917, 1
    %3919 = vsyncpa [#allocation5], 1
    %s3920 = scalar_lea.sflag [#allocation5], 1
    %3921 = vsyncpa %s3920, 1

</llo_original>
